<compile_context>
chip_gen: v6e
topology: v6e:2x2x1
jax: 0.10.0
libtpu: 0.0.40
codegen_flags: <defaults>
</compile_context>

<pallas_src>
import functools
import math

import jax
import jax.numpy as jnp
from jax.experimental import pallas as pl
from jax.experimental.pallas import tpu as pltpu


# ---------------------------------------------------------------------------
# Kernel
# ---------------------------------------------------------------------------

def _layernorm(h, g, b, eps=1e-5):
    mu = jnp.mean(h, axis=-1, keepdims=True)
    var = jnp.mean((h - mu) ** 2, axis=-1, keepdims=True)
    return (h - mu) * jax.lax.rsqrt(var + eps) * g + b


def fused_localizer_kernel(*refs, nhead, num_layers):
    """Full TransformerLocalizer forward for one batch element.

    refs = (x, pe, mask, <12 weight refs per layer>..., wcls_t, bcls,
            start_out, end_out)
    """
    n_lw = 12
    x_ref, pe_ref, mask_ref = refs[0], refs[1], refs[2]
    layer_refs = refs[3:-4]
    wcls_ref, bcls_ref = refs[-4], refs[-3]
    start_ref, end_ref = refs[-2], refs[-1]

    x = x_ref[0].astype(jnp.float32) + pe_ref[0]      # (S, E); PE broadcasts over S
    add_mask = mask_ref[...]                          # (1, 1, S): -1e9 at padded keys
    S, E = x.shape
    dh = E // nhead
    scale = 1.0 / math.sqrt(dh)

    for l in range(num_layers):                       # static unroll, num_layers small
        (wqkv, bqkv, wo_t, bo, ln1_g, ln1_b,
         w1_t, b1, w2_t, b2, ln2_g, ln2_b) = layer_refs[l * n_lw:(l + 1) * n_lw]

        # ---- multi-head self-attention, all heads batched -------------------
        # QKV projection in transposed orientation: (3E, E) @ (E, S) -> (3E, S),
        # so the per-head split below is a tile-aligned sublane/leading reshape.
        qkv_t = jnp.dot(wqkv[...], x.T, preferred_element_type=jnp.float32) + bqkv[...]
        q_t = qkv_t[:E, :].reshape(nhead, dh, S)       # (h, dh, S)
        k_t = qkv_t[E:2 * E, :].reshape(nhead, dh, S)
        v_t = qkv_t[2 * E:, :].reshape(nhead, dh, S)

        q = jnp.swapaxes(q_t, 1, 2) * scale            # (h, S, dh)
        sc = jnp.einsum('hqd,hdk->hqk', q, k_t,
                        preferred_element_type=jnp.float32) + add_mask   # (h, S, S)
        sc = sc - jnp.max(sc, axis=-1, keepdims=True)
        p = jnp.exp(sc)
        p = p * pl.reciprocal(jnp.sum(p, axis=-1, keepdims=True), approx=True)
        o_t = jnp.einsum('hdk,hqk->hdq', v_t, p,
                         preferred_element_type=jnp.float32)             # (h, dh, S)
        attn = o_t.reshape(E, S).T                                       # (S, E)
        attn = jnp.dot(attn, wo_t[...], preferred_element_type=jnp.float32) + bo[...]

        x = _layernorm(x + attn, ln1_g[...], ln1_b[...])

        # ---- feed-forward (ReLU) ---------------------------------------------
        ff = jnp.dot(x, w1_t[...], preferred_element_type=jnp.float32) + b1[...]
        ff = jnp.maximum(ff, 0.0)
        ff = jnp.dot(ff, w2_t[...], preferred_element_type=jnp.float32) + b2[...]
        x = _layernorm(x + ff, ln2_g[...], ln2_b[...])

    # ---- fused start/end classifiers: one (S, E) @ (E, 2L) lane-dense matmul --
    logits = jnp.dot(x, wcls_ref[...], preferred_element_type=jnp.float32) + bcls_ref[...]
    L = start_ref.shape[-1]
    start_ref[0] = logits[:, :L].astype(start_ref.dtype)
    end_ref[0] = logits[:, L:].astype(end_ref.dtype)


# ---------------------------------------------------------------------------
# pallas_call wrapper
# ---------------------------------------------------------------------------

def _const_spec(arr):
    # Grid-invariant weight block (index map constant => no re-DMA across steps).
    # TODO(synk): pipeline_mode=pl.Buffered(1) could single-buffer these, but the
    # whole model is ~100 KB so the default is already far under every VMEM limit.
    zeros = (0,) * arr.ndim
    return pl.BlockSpec(arr.shape, lambda b, _z=zeros: _z)


def transformer_localizer_forward(x, src_key_padding_mask, kp):
    """x: (B, S, E) float32; src_key_padding_mask: (B, S) bool (True = pad)."""
    B, S, E = x.shape
    L = kp["max_seq_length"]

    # Positional encoding: pe[:B] is (B, 1, E) and broadcasts over S -- the
    # PyTorch module indexes the *batch* dim; that quirk is preserved.
    pe_b = kp["pe"][:B]
    # bool key-padding mask -> additive float mask (B, 1, S).
    # TODO(synk): fully-masked rows give a near-uniform softmax here (-1e9) instead
    # of PyTorch's NaNs (-inf); dropout is omitted (eval-mode semantics).
    add_mask = jnp.where(src_key_padding_mask, -1e9, 0.0).astype(jnp.float32)[:, None, :]

    weights = list(kp["layer_weights"]) + [kp["wcls_t"], kp["bcls"]]

    in_specs = [
        pl.BlockSpec((1, S, E), lambda b: (b, 0, 0)),   # x
        pl.BlockSpec((1, 1, E), lambda b: (b, 0, 0)),   # pe row for this batch elem
        pl.BlockSpec((1, 1, S), lambda b: (b, 0, 0)),   # additive key mask
    ] + [_const_spec(w) for w in weights]
    out_spec = pl.BlockSpec((1, S, L), lambda b: (b, 0, 0))

    kernel = functools.partial(fused_localizer_kernel,
                               nhead=kp["nhead"], num_layers=kp["num_layers"])
    start_logits, end_logits = pl.pallas_call(
        kernel,
        out_shape=(jax.ShapeDtypeStruct((B, S, L), jnp.float32),
                   jax.ShapeDtypeStruct((B, S, L), jnp.float32)),
        grid_spec=pltpu.PrefetchScalarGridSpec(
            num_scalar_prefetch=0,
            grid=(B,),
            in_specs=in_specs,
            out_specs=(out_spec, out_spec),
        ),
        compiler_params=pltpu.CompilerParams(
            dimension_semantics=("parallel",)),        # batch axis -> both TCs on v7x
    )(x, pe_b, add_mask, *weights)
    return start_logits, end_logits


# ---------------------------------------------------------------------------
# Model setup (deterministic synthetic parameters) + one-time host-side prep
# ---------------------------------------------------------------------------

def positional_encoding(max_len, d_model):
    position = jnp.arange(max_len, dtype=jnp.float32)[:, None]
    div_term = jnp.exp(jnp.arange(0, d_model, 2, dtype=jnp.float32)
                       * (-math.log(10000.0) / d_model))
    pe = jnp.zeros((max_len, d_model), jnp.float32)
    pe = pe.at[:, 0::2].set(jnp.sin(position * div_term))
    pe = pe.at[:, 1::2].set(jnp.cos(position * div_term))
    return pe[:, None, :]                              # (max_len, 1, d_model)


def init_params(key, emb_dim, nhead, num_layers, dim_feedforward, max_seq_length):
    """PyTorch-convention parameters (weights are (out_features, in_features))."""
    def dense(k, out_dim, in_dim, scale=0.05):
        return scale * jax.random.normal(k, (out_dim, in_dim), jnp.float32)

    layers = []
    for _ in range(num_layers):
        key, *ks = jax.random.split(key, 5)
        layers.append(dict(
            in_proj_weight=dense(ks[0], 3 * emb_dim, emb_dim),
            in_proj_bias=jnp.zeros((3 * emb_dim,), jnp.float32),
            out_proj_weight=dense(ks[1], emb_dim, emb_dim),
            out_proj_bias=jnp.zeros((emb_dim,), jnp.float32),
            norm1_weight=jnp.ones((emb_dim,), jnp.float32),
            norm1_bias=jnp.zeros((emb_dim,), jnp.float32),
            linear1_weight=dense(ks[2], dim_feedforward, emb_dim),
            linear1_bias=jnp.zeros((dim_feedforward,), jnp.float32),
            linear2_weight=dense(ks[3], emb_dim, dim_feedforward),
            linear2_bias=jnp.zeros((emb_dim,), jnp.float32),
            norm2_weight=jnp.ones((emb_dim,), jnp.float32),
            norm2_bias=jnp.zeros((emb_dim,), jnp.float32),
        ))
    key, k1, k2 = jax.random.split(key, 3)
    return dict(
        pe=positional_encoding(5000, emb_dim),
        layers=layers,
        start_w=dense(k1, max_seq_length, emb_dim),
        start_b=jnp.zeros((max_seq_length,), jnp.float32),
        end_w=dense(k2, max_seq_length, emb_dim),
        end_b=jnp.zeros((max_seq_length,), jnp.float32),
        nhead=nhead,
    )


def prepare_kernel_params(params):
    """One-time host-side prep: transpose / reshape / stack weights so the kernel
    body never relayouts a weight per grid step."""
    flat = []
    for lp in params["layers"]:
        flat += [
            lp["in_proj_weight"],                       # (3E, E)  used against x.T
            lp["in_proj_bias"].reshape(-1, 1),          # (3E, 1)
            lp["out_proj_weight"].T,                    # (E, E)
            lp["out_proj_bias"].reshape(1, -1),         # (1, E)
            lp["norm1_weight"].reshape(1, -1),
            lp["norm1_bias"].reshape(1, -1),
            lp["linear1_weight"].T,                     # (E, F)
            lp["linear1_bias"].reshape(1, -1),          # (1, F)
            lp["linear2_weight"].T,                     # (F, E)
            lp["linear2_bias"].reshape(1, -1),          # (1, E)
            lp["norm2_weight"].reshape(1, -1),
            lp["norm2_bias"].reshape(1, -1),
        ]
    # start/end classifiers stacked into one lane-dense (E, 2L) matmul.
    wcls_t = jnp.concatenate([params["start_w"], params["end_w"]], axis=0).T
    bcls = jnp.concatenate([params["start_b"], params["end_b"]], axis=0).reshape(1, -1)
    return dict(
        pe=params["pe"],
        layer_weights=tuple(flat),
        wcls_t=wcls_t,
        bcls=bcls,
        nhead=params["nhead"],
        num_layers=len(params["layers"]),
        max_seq_length=params["start_w"].shape[0],
    )


# ---------------------------------------------------------------------------
# Main
# ---------------------------------------------------------------------------

if __name__ == "__main__":
    B, S = 2, 8
    emb_dim, nhead, num_layers, dim_feedforward, max_seq_length = 32, 4, 2, 64, 256

    root = jax.random.PRNGKey(0)
    k_x, k_p = jax.random.split(root)

    x = jax.random.normal(k_x, (B, S, emb_dim), jnp.float32)
    # last two tokens of the second batch element are padding
    src_key_padding_mask = jnp.zeros((B, S), jnp.bool_).at[1, -2:].set(True)

    params = init_params(k_p, emb_dim, nhead, num_layers, dim_feedforward, max_seq_length)
    kparams = prepare_kernel_params(params)   # host-side, one-time weight prep

    start_logits, end_logits = transformer_localizer_forward(x, src_key_padding_mask, kparams)
    jax.block_until_ready((start_logits, end_logits))

    assert start_logits.shape == (B, S, max_seq_length)
    assert end_logits.shape == (B, S, max_seq_length)
    assert bool(jnp.all(jnp.isfinite(start_logits))) and bool(jnp.all(jnp.isfinite(end_logits)))
    print("KERNEL_OK")
</pallas_src>

<mosaic_0001>
module attributes {stable_mosaic.version = 11 : i64} {
  func.func @fused_localizer_kernel(%arg0: i32, %arg1: memref<1x8x32xf32, #tpu.memory_space<vmem>>, %arg2: memref<1x1x32xf32, #tpu.memory_space<vmem>>, %arg3: memref<1x1x8xf32, #tpu.memory_space<vmem>>, %arg4: memref<96x32xf32, #tpu.memory_space<vmem>>, %arg5: memref<96x1xf32, #tpu.memory_space<vmem>>, %arg6: memref<32x32xf32, #tpu.memory_space<vmem>>, %arg7: memref<1x32xf32, #tpu.memory_space<vmem>>, %arg8: memref<1x32xf32, #tpu.memory_space<vmem>>, %arg9: memref<1x32xf32, #tpu.memory_space<vmem>>, %arg10: memref<32x64xf32, #tpu.memory_space<vmem>>, %arg11: memref<1x64xf32, #tpu.memory_space<vmem>>, %arg12: memref<64x32xf32, #tpu.memory_space<vmem>>, %arg13: memref<1x32xf32, #tpu.memory_space<vmem>>, %arg14: memref<1x32xf32, #tpu.memory_space<vmem>>, %arg15: memref<1x32xf32, #tpu.memory_space<vmem>>, %arg16: memref<96x32xf32, #tpu.memory_space<vmem>>, %arg17: memref<96x1xf32, #tpu.memory_space<vmem>>, %arg18: memref<32x32xf32, #tpu.memory_space<vmem>>, %arg19: memref<1x32xf32, #tpu.memory_space<vmem>>, %arg20: memref<1x32xf32, #tpu.memory_space<vmem>>, %arg21: memref<1x32xf32, #tpu.memory_space<vmem>>, %arg22: memref<32x64xf32, #tpu.memory_space<vmem>>, %arg23: memref<1x64xf32, #tpu.memory_space<vmem>>, %arg24: memref<64x32xf32, #tpu.memory_space<vmem>>, %arg25: memref<1x32xf32, #tpu.memory_space<vmem>>, %arg26: memref<1x32xf32, #tpu.memory_space<vmem>>, %arg27: memref<1x32xf32, #tpu.memory_space<vmem>>, %arg28: memref<32x512xf32, #tpu.memory_space<vmem>>, %arg29: memref<1x512xf32, #tpu.memory_space<vmem>>, %arg30: memref<1x8x256xf32, #tpu.memory_space<vmem>>, %arg31: memref<1x8x256xf32, #tpu.memory_space<vmem>>) attributes {dimension_semantics = [#tpu.dimension_semantics<parallel>], iteration_bounds = array<i64: 2>, scalar_prefetch = 0 : i64, scratch_operands = 0 : i64, tpu.core_type = #tpu.core_type<tc>, window_params = [{transform_indices = @transform_0, window_bounds = array<i64: 1, 8, 32>}, {transform_indices = @transform_1, window_bounds = array<i64: 1, 1, 32>}, {transform_indices = @transform_2, window_bounds = array<i64: 1, 1, 8>}, {pipeline_mode = #tpu.pipeline_mode<synchronous>, transform_indices = @transform_3, window_bounds = array<i64: 96, 32>}, {pipeline_mode = #tpu.pipeline_mode<synchronous>, transform_indices = @transform_4, window_bounds = array<i64: 96, 1>}, {pipeline_mode = #tpu.pipeline_mode<synchronous>, transform_indices = @transform_5, window_bounds = array<i64: 32, 32>}, {pipeline_mode = #tpu.pipeline_mode<synchronous>, transform_indices = @transform_6, window_bounds = array<i64: 1, 32>}, {pipeline_mode = #tpu.pipeline_mode<synchronous>, transform_indices = @transform_7, window_bounds = array<i64: 1, 32>}, {pipeline_mode = #tpu.pipeline_mode<synchronous>, transform_indices = @transform_8, window_bounds = array<i64: 1, 32>}, {pipeline_mode = #tpu.pipeline_mode<synchronous>, transform_indices = @transform_9, window_bounds = array<i64: 32, 64>}, {pipeline_mode = #tpu.pipeline_mode<synchronous>, transform_indices = @transform_10, window_bounds = array<i64: 1, 64>}, {pipeline_mode = #tpu.pipeline_mode<synchronous>, transform_indices = @transform_11, window_bounds = array<i64: 64, 32>}, {pipeline_mode = #tpu.pipeline_mode<synchronous>, transform_indices = @transform_12, window_bounds = array<i64: 1, 32>}, {pipeline_mode = #tpu.pipeline_mode<synchronous>, transform_indices = @transform_13, window_bounds = array<i64: 1, 32>}, {pipeline_mode = #tpu.pipeline_mode<synchronous>, transform_indices = @transform_14, window_bounds = array<i64: 1, 32>}, {pipeline_mode = #tpu.pipeline_mode<synchronous>, transform_indices = @transform_15, window_bounds = array<i64: 96, 32>}, {pipeline_mode = #tpu.pipeline_mode<synchronous>, transform_indices = @transform_16, window_bounds = array<i64: 96, 1>}, {pipeline_mode = #tpu.pipeline_mode<synchronous>, transform_indices = @transform_17, window_bounds = array<i64: 32, 32>}, {pipeline_mode = #tpu.pipeline_mode<synchronous>, transform_indices = @transform_18, window_bounds = array<i64: 1, 32>}, {pipeline_mode = #tpu.pipeline_mode<synchronous>, transform_indices = @transform_19, window_bounds = array<i64: 1, 32>}, {pipeline_mode = #tpu.pipeline_mode<synchronous>, transform_indices = @transform_20, window_bounds = array<i64: 1, 32>}, {pipeline_mode = #tpu.pipeline_mode<synchronous>, transform_indices = @transform_21, window_bounds = array<i64: 32, 64>}, {pipeline_mode = #tpu.pipeline_mode<synchronous>, transform_indices = @transform_22, window_bounds = array<i64: 1, 64>}, {pipeline_mode = #tpu.pipeline_mode<synchronous>, transform_indices = @transform_23, window_bounds = array<i64: 64, 32>}, {pipeline_mode = #tpu.pipeline_mode<synchronous>, transform_indices = @transform_24, window_bounds = array<i64: 1, 32>}, {pipeline_mode = #tpu.pipeline_mode<synchronous>, transform_indices = @transform_25, window_bounds = array<i64: 1, 32>}, {pipeline_mode = #tpu.pipeline_mode<synchronous>, transform_indices = @transform_26, window_bounds = array<i64: 1, 32>}, {pipeline_mode = #tpu.pipeline_mode<synchronous>, transform_indices = @transform_27, window_bounds = array<i64: 32, 512>}, {pipeline_mode = #tpu.pipeline_mode<synchronous>, transform_indices = @transform_28, window_bounds = array<i64: 1, 512>}, {transform_indices = @transform_29, window_bounds = array<i64: 1, 8, 256>}, {transform_indices = @transform_30, window_bounds = array<i64: 1, 8, 256>}]} {
    %c0 = arith.constant 0 : index
    %c0_0 = arith.constant 0 : index
    %c0_1 = arith.constant 0 : index
    %0 = vector.load %arg1[%c0, %c0_0, %c0_1] : memref<1x8x32xf32, #tpu.memory_space<vmem>>, vector<1x8x32xf32>
    %1 = vector.shape_cast %0 : vector<1x8x32xf32> to vector<8x32xf32>
    %c0_2 = arith.constant 0 : index
    %c0_3 = arith.constant 0 : index
    %c0_4 = arith.constant 0 : index
    %2 = vector.load %arg2[%c0_2, %c0_3, %c0_4] : memref<1x1x32xf32, #tpu.memory_space<vmem>>, vector<1x1x32xf32>
    %3 = vector.shape_cast %2 : vector<1x1x32xf32> to vector<1x32xf32>
    %4 = vector.broadcast %3 : vector<1x32xf32> to vector<8x32xf32>
    %5 = arith.addf %1, %4 : vector<8x32xf32>
    %c0_5 = arith.constant 0 : index
    %c0_6 = arith.constant 0 : index
    %c0_7 = arith.constant 0 : index
    %6 = vector.load %arg3[%c0_5, %c0_6, %c0_7] : memref<1x1x8xf32, #tpu.memory_space<vmem>>, vector<1x1x8xf32>
    %c0_8 = arith.constant 0 : index
    %c0_9 = arith.constant 0 : index
    %7 = vector.load %arg4[%c0_8, %c0_9] : memref<96x32xf32, #tpu.memory_space<vmem>>, vector<96x32xf32>
    %8 = tpu.transpose %5, [1, 0] : vector<8x32xf32> -> vector<32x8xf32>
    %cst = arith.constant dense<0.000000e+00> : vector<96x8xf32>
    %9 = tpu.matmul %7, %8, %cst {dimension_numbers = #tpu.dot_dimension_numbers<[1], [0], [0], [1], [0, 0, 1, 1], [], []>} : vector<96x32xf32>, vector<32x8xf32>, vector<96x8xf32> -> vector<96x8xf32>
    %c0_10 = arith.constant 0 : index
    %c0_11 = arith.constant 0 : index
    %10 = vector.load %arg5[%c0_10, %c0_11] : memref<96x1xf32, #tpu.memory_space<vmem>>, vector<96x1xf32>
    %11 = vector.broadcast %10 : vector<96x1xf32> to vector<96x8xf32>
    %12 = arith.addf %9, %11 : vector<96x8xf32>
    %13 = vector.extract_strided_slice %12 {offsets = [0, 0], sizes = [32, 8], strides = [1, 1]} : vector<96x8xf32> to vector<32x8xf32>
    %14 = vector.shape_cast %13 : vector<32x8xf32> to vector<4x8x8xf32>
    %15 = vector.extract_strided_slice %12 {offsets = [32, 0], sizes = [32, 8], strides = [1, 1]} : vector<96x8xf32> to vector<32x8xf32>
    %16 = vector.shape_cast %15 : vector<32x8xf32> to vector<4x8x8xf32>
    %17 = vector.extract_strided_slice %12 {offsets = [64, 0], sizes = [32, 8], strides = [1, 1]} : vector<96x8xf32> to vector<32x8xf32>
    %18 = vector.shape_cast %17 : vector<32x8xf32> to vector<4x8x8xf32>
    %19 = tpu.transpose %14, [0, 2, 1] : vector<4x8x8xf32> -> vector<4x8x8xf32>
    %cst_12 = arith.constant 0.353553385 : f32
    %20 = vector.broadcast %cst_12 : f32 to vector<4x8x8xf32>
    %21 = arith.mulf %19, %20 : vector<4x8x8xf32>
    "tpu.trace_start"() <{level = 10 : i32, message = "hqd,hdk->hqk"}> : () -> ()
    %cst_13 = arith.constant dense<0.000000e+00> : vector<4x8x8xf32>
    %22 = tpu.matmul %21, %16, %cst_13 {dimension_numbers = #tpu.dot_dimension_numbers<[2], [1], [1], [2], [0, 0, 0, 1, 1, 2], [0], [0]>} : vector<4x8x8xf32>, vector<4x8x8xf32>, vector<4x8x8xf32> -> vector<4x8x8xf32>
    "tpu.trace_stop"() : () -> ()
    %23 = vector.broadcast %6 : vector<1x1x8xf32> to vector<4x8x8xf32>
    %24 = arith.addf %22, %23 : vector<4x8x8xf32>
    %cst_14 = arith.constant dense<0xFF800000> : vector<4x8xf32>
    %25 = vector.multi_reduction <maximumf>, %24, %cst_14 [2] : vector<4x8x8xf32> to vector<4x8xf32>
    %26 = vector.shape_cast %25 : vector<4x8xf32> to vector<4x8x1xf32>
    %27 = vector.broadcast %26 : vector<4x8x1xf32> to vector<4x8x8xf32>
    %28 = arith.subf %24, %27 : vector<4x8x8xf32>
    %29 = math.exp %28 : vector<4x8x8xf32>
    %cst_15 = arith.constant dense<0.000000e+00> : vector<4x8xf32>
    %30 = vector.multi_reduction <add>, %29, %cst_15 [2] : vector<4x8x8xf32> to vector<4x8xf32>
    %31 = vector.shape_cast %30 : vector<4x8xf32> to vector<4x8x1xf32>
    %32 = tpu.reciprocal %31 {approx = true} : vector<4x8x1xf32> -> vector<4x8x1xf32>
    %33 = vector.broadcast %32 : vector<4x8x1xf32> to vector<4x8x8xf32>
    %34 = arith.mulf %29, %33 : vector<4x8x8xf32>
    "tpu.trace_start"() <{level = 10 : i32, message = "hdk,hqk->hdq"}> : () -> ()
    %cst_16 = arith.constant dense<0.000000e+00> : vector<4x8x8xf32>
    %35 = tpu.matmul %18, %34, %cst_16 {dimension_numbers = #tpu.dot_dimension_numbers<[2], [2], [1], [1], [0, 0, 0, 1, 1, 1], [0], [0]>} : vector<4x8x8xf32>, vector<4x8x8xf32>, vector<4x8x8xf32> -> vector<4x8x8xf32>
    "tpu.trace_stop"() : () -> ()
    %36 = vector.shape_cast %35 : vector<4x8x8xf32> to vector<32x8xf32>
    %37 = tpu.transpose %36, [1, 0] : vector<32x8xf32> -> vector<8x32xf32>
    %c0_17 = arith.constant 0 : index
    %c0_18 = arith.constant 0 : index
    %38 = vector.load %arg6[%c0_17, %c0_18] : memref<32x32xf32, #tpu.memory_space<vmem>>, vector<32x32xf32>
    %cst_19 = arith.constant dense<0.000000e+00> : vector<8x32xf32>
    %39 = tpu.matmul %37, %38, %cst_19 {dimension_numbers = #tpu.dot_dimension_numbers<[1], [0], [0], [1], [0, 0, 1, 1], [], []>} : vector<8x32xf32>, vector<32x32xf32>, vector<8x32xf32> -> vector<8x32xf32>
    %c0_20 = arith.constant 0 : index
    %c0_21 = arith.constant 0 : index
    %40 = vector.load %arg7[%c0_20, %c0_21] : memref<1x32xf32, #tpu.memory_space<vmem>>, vector<1x32xf32>
    %41 = vector.broadcast %40 : vector<1x32xf32> to vector<8x32xf32>
    %42 = arith.addf %39, %41 : vector<8x32xf32>
    %43 = arith.addf %5, %42 : vector<8x32xf32>
    %c0_22 = arith.constant 0 : index
    %c0_23 = arith.constant 0 : index
    %44 = vector.load %arg8[%c0_22, %c0_23] : memref<1x32xf32, #tpu.memory_space<vmem>>, vector<1x32xf32>
    %c0_24 = arith.constant 0 : index
    %c0_25 = arith.constant 0 : index
    %45 = vector.load %arg9[%c0_24, %c0_25] : memref<1x32xf32, #tpu.memory_space<vmem>>, vector<1x32xf32>
    %cst_26 = arith.constant dense<0.000000e+00> : vector<8xf32>
    %46 = vector.multi_reduction <add>, %43, %cst_26 [1] : vector<8x32xf32> to vector<8xf32>
    %47 = vector.shape_cast %46 : vector<8xf32> to vector<8x1xf32>
    %cst_27 = arith.constant 3.200000e+01 : f32
    %48 = vector.broadcast %cst_27 : f32 to vector<8x1xf32>
    %49 = arith.divf %47, %48 : vector<8x1xf32>
    %50 = vector.broadcast %49 : vector<8x1xf32> to vector<8x32xf32>
    %51 = arith.subf %43, %50 : vector<8x32xf32>
    %52 = arith.mulf %51, %51 : vector<8x32xf32>
    %cst_28 = arith.constant dense<0.000000e+00> : vector<8xf32>
    %53 = vector.multi_reduction <add>, %52, %cst_28 [1] : vector<8x32xf32> to vector<8xf32>
    %54 = vector.shape_cast %53 : vector<8xf32> to vector<8x1xf32>
    %cst_29 = arith.constant 3.200000e+01 : f32
    %55 = vector.broadcast %cst_29 : f32 to vector<8x1xf32>
    %56 = arith.divf %54, %55 : vector<8x1xf32>
    %57 = vector.broadcast %49 : vector<8x1xf32> to vector<8x32xf32>
    %58 = arith.subf %43, %57 : vector<8x32xf32>
    %cst_30 = arith.constant 9.99999974E-6 : f32
    %59 = vector.broadcast %cst_30 : f32 to vector<8x1xf32>
    %60 = arith.addf %56, %59 : vector<8x1xf32>
    %61 = math.rsqrt %60 : vector<8x1xf32>
    %62 = vector.broadcast %61 : vector<8x1xf32> to vector<8x32xf32>
    %63 = arith.mulf %58, %62 : vector<8x32xf32>
    %64 = vector.broadcast %44 : vector<1x32xf32> to vector<8x32xf32>
    %65 = arith.mulf %63, %64 : vector<8x32xf32>
    %66 = vector.broadcast %45 : vector<1x32xf32> to vector<8x32xf32>
    %67 = arith.addf %65, %66 : vector<8x32xf32>
    %c0_31 = arith.constant 0 : index
    %c0_32 = arith.constant 0 : index
    %68 = vector.load %arg10[%c0_31, %c0_32] : memref<32x64xf32, #tpu.memory_space<vmem>>, vector<32x64xf32>
    %cst_33 = arith.constant dense<0.000000e+00> : vector<8x64xf32>
    %69 = tpu.matmul %67, %68, %cst_33 {dimension_numbers = #tpu.dot_dimension_numbers<[1], [0], [0], [1], [0, 0, 1, 1], [], []>} : vector<8x32xf32>, vector<32x64xf32>, vector<8x64xf32> -> vector<8x64xf32>
    %c0_34 = arith.constant 0 : index
    %c0_35 = arith.constant 0 : index
    %70 = vector.load %arg11[%c0_34, %c0_35] : memref<1x64xf32, #tpu.memory_space<vmem>>, vector<1x64xf32>
    %71 = vector.broadcast %70 : vector<1x64xf32> to vector<8x64xf32>
    %72 = arith.addf %69, %71 : vector<8x64xf32>
    %cst_36 = arith.constant 0.000000e+00 : f32
    %73 = vector.broadcast %cst_36 : f32 to vector<8x64xf32>
    %74 = arith.maximumf %72, %73 : vector<8x64xf32>
    %c0_37 = arith.constant 0 : index
    %c0_38 = arith.constant 0 : index
    %75 = vector.load %arg12[%c0_37, %c0_38] : memref<64x32xf32, #tpu.memory_space<vmem>>, vector<64x32xf32>
    %cst_39 = arith.constant dense<0.000000e+00> : vector<8x32xf32>
    %76 = tpu.matmul %74, %75, %cst_39 {dimension_numbers = #tpu.dot_dimension_numbers<[1], [0], [0], [1], [0, 0, 1, 1], [], []>} : vector<8x64xf32>, vector<64x32xf32>, vector<8x32xf32> -> vector<8x32xf32>
    %c0_40 = arith.constant 0 : index
    %c0_41 = arith.constant 0 : index
    %77 = vector.load %arg13[%c0_40, %c0_41] : memref<1x32xf32, #tpu.memory_space<vmem>>, vector<1x32xf32>
    %78 = vector.broadcast %77 : vector<1x32xf32> to vector<8x32xf32>
    %79 = arith.addf %76, %78 : vector<8x32xf32>
    %80 = arith.addf %67, %79 : vector<8x32xf32>
    %c0_42 = arith.constant 0 : index
    %c0_43 = arith.constant 0 : index
    %81 = vector.load %arg14[%c0_42, %c0_43] : memref<1x32xf32, #tpu.memory_space<vmem>>, vector<1x32xf32>
    %c0_44 = arith.constant 0 : index
    %c0_45 = arith.constant 0 : index
    %82 = vector.load %arg15[%c0_44, %c0_45] : memref<1x32xf32, #tpu.memory_space<vmem>>, vector<1x32xf32>
    %cst_46 = arith.constant dense<0.000000e+00> : vector<8xf32>
    %83 = vector.multi_reduction <add>, %80, %cst_46 [1] : vector<8x32xf32> to vector<8xf32>
    %84 = vector.shape_cast %83 : vector<8xf32> to vector<8x1xf32>
    %cst_47 = arith.constant 3.200000e+01 : f32
    %85 = vector.broadcast %cst_47 : f32 to vector<8x1xf32>
    %86 = arith.divf %84, %85 : vector<8x1xf32>
    %87 = vector.broadcast %86 : vector<8x1xf32> to vector<8x32xf32>
    %88 = arith.subf %80, %87 : vector<8x32xf32>
    %89 = arith.mulf %88, %88 : vector<8x32xf32>
    %cst_48 = arith.constant dense<0.000000e+00> : vector<8xf32>
    %90 = vector.multi_reduction <add>, %89, %cst_48 [1] : vector<8x32xf32> to vector<8xf32>
    %91 = vector.shape_cast %90 : vector<8xf32> to vector<8x1xf32>
    %cst_49 = arith.constant 3.200000e+01 : f32
    %92 = vector.broadcast %cst_49 : f32 to vector<8x1xf32>
    %93 = arith.divf %91, %92 : vector<8x1xf32>
    %94 = vector.broadcast %86 : vector<8x1xf32> to vector<8x32xf32>
    %95 = arith.subf %80, %94 : vector<8x32xf32>
    %cst_50 = arith.constant 9.99999974E-6 : f32
    %96 = vector.broadcast %cst_50 : f32 to vector<8x1xf32>
    %97 = arith.addf %93, %96 : vector<8x1xf32>
    %98 = math.rsqrt %97 : vector<8x1xf32>
    %99 = vector.broadcast %98 : vector<8x1xf32> to vector<8x32xf32>
    %100 = arith.mulf %95, %99 : vector<8x32xf32>
    %101 = vector.broadcast %81 : vector<1x32xf32> to vector<8x32xf32>
    %102 = arith.mulf %100, %101 : vector<8x32xf32>
    %103 = vector.broadcast %82 : vector<1x32xf32> to vector<8x32xf32>
    %104 = arith.addf %102, %103 : vector<8x32xf32>
    %c0_51 = arith.constant 0 : index
    %c0_52 = arith.constant 0 : index
    %105 = vector.load %arg16[%c0_51, %c0_52] : memref<96x32xf32, #tpu.memory_space<vmem>>, vector<96x32xf32>
    %106 = tpu.transpose %104, [1, 0] : vector<8x32xf32> -> vector<32x8xf32>
    %cst_53 = arith.constant dense<0.000000e+00> : vector<96x8xf32>
    %107 = tpu.matmul %105, %106, %cst_53 {dimension_numbers = #tpu.dot_dimension_numbers<[1], [0], [0], [1], [0, 0, 1, 1], [], []>} : vector<96x32xf32>, vector<32x8xf32>, vector<96x8xf32> -> vector<96x8xf32>
    %c0_54 = arith.constant 0 : index
    %c0_55 = arith.constant 0 : index
    %108 = vector.load %arg17[%c0_54, %c0_55] : memref<96x1xf32, #tpu.memory_space<vmem>>, vector<96x1xf32>
    %109 = vector.broadcast %108 : vector<96x1xf32> to vector<96x8xf32>
    %110 = arith.addf %107, %109 : vector<96x8xf32>
    %111 = vector.extract_strided_slice %110 {offsets = [0, 0], sizes = [32, 8], strides = [1, 1]} : vector<96x8xf32> to vector<32x8xf32>
    %112 = vector.shape_cast %111 : vector<32x8xf32> to vector<4x8x8xf32>
    %113 = vector.extract_strided_slice %110 {offsets = [32, 0], sizes = [32, 8], strides = [1, 1]} : vector<96x8xf32> to vector<32x8xf32>
    %114 = vector.shape_cast %113 : vector<32x8xf32> to vector<4x8x8xf32>
    %115 = vector.extract_strided_slice %110 {offsets = [64, 0], sizes = [32, 8], strides = [1, 1]} : vector<96x8xf32> to vector<32x8xf32>
    %116 = vector.shape_cast %115 : vector<32x8xf32> to vector<4x8x8xf32>
    %117 = tpu.transpose %112, [0, 2, 1] : vector<4x8x8xf32> -> vector<4x8x8xf32>
    %cst_56 = arith.constant 0.353553385 : f32
    %118 = vector.broadcast %cst_56 : f32 to vector<4x8x8xf32>
    %119 = arith.mulf %117, %118 : vector<4x8x8xf32>
    "tpu.trace_start"() <{level = 10 : i32, message = "hqd,hdk->hqk"}> : () -> ()
    %cst_57 = arith.constant dense<0.000000e+00> : vector<4x8x8xf32>
    %120 = tpu.matmul %119, %114, %cst_57 {dimension_numbers = #tpu.dot_dimension_numbers<[2], [1], [1], [2], [0, 0, 0, 1, 1, 2], [0], [0]>} : vector<4x8x8xf32>, vector<4x8x8xf32>, vector<4x8x8xf32> -> vector<4x8x8xf32>
    "tpu.trace_stop"() : () -> ()
    %121 = vector.broadcast %6 : vector<1x1x8xf32> to vector<4x8x8xf32>
    %122 = arith.addf %120, %121 : vector<4x8x8xf32>
    %cst_58 = arith.constant dense<0xFF800000> : vector<4x8xf32>
    %123 = vector.multi_reduction <maximumf>, %122, %cst_58 [2] : vector<4x8x8xf32> to vector<4x8xf32>
    %124 = vector.shape_cast %123 : vector<4x8xf32> to vector<4x8x1xf32>
    %125 = vector.broadcast %124 : vector<4x8x1xf32> to vector<4x8x8xf32>
    %126 = arith.subf %122, %125 : vector<4x8x8xf32>
    %127 = math.exp %126 : vector<4x8x8xf32>
    %cst_59 = arith.constant dense<0.000000e+00> : vector<4x8xf32>
    %128 = vector.multi_reduction <add>, %127, %cst_59 [2] : vector<4x8x8xf32> to vector<4x8xf32>
    %129 = vector.shape_cast %128 : vector<4x8xf32> to vector<4x8x1xf32>
    %130 = tpu.reciprocal %129 {approx = true} : vector<4x8x1xf32> -> vector<4x8x1xf32>
    %131 = vector.broadcast %130 : vector<4x8x1xf32> to vector<4x8x8xf32>
    %132 = arith.mulf %127, %131 : vector<4x8x8xf32>
    "tpu.trace_start"() <{level = 10 : i32, message = "hdk,hqk->hdq"}> : () -> ()
    %cst_60 = arith.constant dense<0.000000e+00> : vector<4x8x8xf32>
    %133 = tpu.matmul %116, %132, %cst_60 {dimension_numbers = #tpu.dot_dimension_numbers<[2], [2], [1], [1], [0, 0, 0, 1, 1, 1], [0], [0]>} : vector<4x8x8xf32>, vector<4x8x8xf32>, vector<4x8x8xf32> -> vector<4x8x8xf32>
    "tpu.trace_stop"() : () -> ()
    %134 = vector.shape_cast %133 : vector<4x8x8xf32> to vector<32x8xf32>
    %135 = tpu.transpose %134, [1, 0] : vector<32x8xf32> -> vector<8x32xf32>
    %c0_61 = arith.constant 0 : index
    %c0_62 = arith.constant 0 : index
    %136 = vector.load %arg18[%c0_61, %c0_62] : memref<32x32xf32, #tpu.memory_space<vmem>>, vector<32x32xf32>
    %cst_63 = arith.constant dense<0.000000e+00> : vector<8x32xf32>
    %137 = tpu.matmul %135, %136, %cst_63 {dimension_numbers = #tpu.dot_dimension_numbers<[1], [0], [0], [1], [0, 0, 1, 1], [], []>} : vector<8x32xf32>, vector<32x32xf32>, vector<8x32xf32> -> vector<8x32xf32>
    %c0_64 = arith.constant 0 : index
    %c0_65 = arith.constant 0 : index
    %138 = vector.load %arg19[%c0_64, %c0_65] : memref<1x32xf32, #tpu.memory_space<vmem>>, vector<1x32xf32>
    %139 = vector.broadcast %138 : vector<1x32xf32> to vector<8x32xf32>
    %140 = arith.addf %137, %139 : vector<8x32xf32>
    %141 = arith.addf %104, %140 : vector<8x32xf32>
    %c0_66 = arith.constant 0 : index
    %c0_67 = arith.constant 0 : index
    %142 = vector.load %arg20[%c0_66, %c0_67] : memref<1x32xf32, #tpu.memory_space<vmem>>, vector<1x32xf32>
    %c0_68 = arith.constant 0 : index
    %c0_69 = arith.constant 0 : index
    %143 = vector.load %arg21[%c0_68, %c0_69] : memref<1x32xf32, #tpu.memory_space<vmem>>, vector<1x32xf32>
    %cst_70 = arith.constant dense<0.000000e+00> : vector<8xf32>
    %144 = vector.multi_reduction <add>, %141, %cst_70 [1] : vector<8x32xf32> to vector<8xf32>
    %145 = vector.shape_cast %144 : vector<8xf32> to vector<8x1xf32>
    %cst_71 = arith.constant 3.200000e+01 : f32
    %146 = vector.broadcast %cst_71 : f32 to vector<8x1xf32>
    %147 = arith.divf %145, %146 : vector<8x1xf32>
    %148 = vector.broadcast %147 : vector<8x1xf32> to vector<8x32xf32>
    %149 = arith.subf %141, %148 : vector<8x32xf32>
    %150 = arith.mulf %149, %149 : vector<8x32xf32>
    %cst_72 = arith.constant dense<0.000000e+00> : vector<8xf32>
    %151 = vector.multi_reduction <add>, %150, %cst_72 [1] : vector<8x32xf32> to vector<8xf32>
    %152 = vector.shape_cast %151 : vector<8xf32> to vector<8x1xf32>
    %cst_73 = arith.constant 3.200000e+01 : f32
    %153 = vector.broadcast %cst_73 : f32 to vector<8x1xf32>
    %154 = arith.divf %152, %153 : vector<8x1xf32>
    %155 = vector.broadcast %147 : vector<8x1xf32> to vector<8x32xf32>
    %156 = arith.subf %141, %155 : vector<8x32xf32>
    %cst_74 = arith.constant 9.99999974E-6 : f32
    %157 = vector.broadcast %cst_74 : f32 to vector<8x1xf32>
    %158 = arith.addf %154, %157 : vector<8x1xf32>
    %159 = math.rsqrt %158 : vector<8x1xf32>
    %160 = vector.broadcast %159 : vector<8x1xf32> to vector<8x32xf32>
    %161 = arith.mulf %156, %160 : vector<8x32xf32>
    %162 = vector.broadcast %142 : vector<1x32xf32> to vector<8x32xf32>
    %163 = arith.mulf %161, %162 : vector<8x32xf32>
    %164 = vector.broadcast %143 : vector<1x32xf32> to vector<8x32xf32>
    %165 = arith.addf %163, %164 : vector<8x32xf32>
    %c0_75 = arith.constant 0 : index
    %c0_76 = arith.constant 0 : index
    %166 = vector.load %arg22[%c0_75, %c0_76] : memref<32x64xf32, #tpu.memory_space<vmem>>, vector<32x64xf32>
    %cst_77 = arith.constant dense<0.000000e+00> : vector<8x64xf32>
    %167 = tpu.matmul %165, %166, %cst_77 {dimension_numbers = #tpu.dot_dimension_numbers<[1], [0], [0], [1], [0, 0, 1, 1], [], []>} : vector<8x32xf32>, vector<32x64xf32>, vector<8x64xf32> -> vector<8x64xf32>
    %c0_78 = arith.constant 0 : index
    %c0_79 = arith.constant 0 : index
    %168 = vector.load %arg23[%c0_78, %c0_79] : memref<1x64xf32, #tpu.memory_space<vmem>>, vector<1x64xf32>
    %169 = vector.broadcast %168 : vector<1x64xf32> to vector<8x64xf32>
    %170 = arith.addf %167, %169 : vector<8x64xf32>
    %cst_80 = arith.constant 0.000000e+00 : f32
    %171 = vector.broadcast %cst_80 : f32 to vector<8x64xf32>
    %172 = arith.maximumf %170, %171 : vector<8x64xf32>
    %c0_81 = arith.constant 0 : index
    %c0_82 = arith.constant 0 : index
    %173 = vector.load %arg24[%c0_81, %c0_82] : memref<64x32xf32, #tpu.memory_space<vmem>>, vector<64x32xf32>
    %cst_83 = arith.constant dense<0.000000e+00> : vector<8x32xf32>
    %174 = tpu.matmul %172, %173, %cst_83 {dimension_numbers = #tpu.dot_dimension_numbers<[1], [0], [0], [1], [0, 0, 1, 1], [], []>} : vector<8x64xf32>, vector<64x32xf32>, vector<8x32xf32> -> vector<8x32xf32>
    %c0_84 = arith.constant 0 : index
    %c0_85 = arith.constant 0 : index
    %175 = vector.load %arg25[%c0_84, %c0_85] : memref<1x32xf32, #tpu.memory_space<vmem>>, vector<1x32xf32>
    %176 = vector.broadcast %175 : vector<1x32xf32> to vector<8x32xf32>
    %177 = arith.addf %174, %176 : vector<8x32xf32>
    %178 = arith.addf %165, %177 : vector<8x32xf32>
    %c0_86 = arith.constant 0 : index
    %c0_87 = arith.constant 0 : index
    %179 = vector.load %arg26[%c0_86, %c0_87] : memref<1x32xf32, #tpu.memory_space<vmem>>, vector<1x32xf32>
    %c0_88 = arith.constant 0 : index
    %c0_89 = arith.constant 0 : index
    %180 = vector.load %arg27[%c0_88, %c0_89] : memref<1x32xf32, #tpu.memory_space<vmem>>, vector<1x32xf32>
    %cst_90 = arith.constant dense<0.000000e+00> : vector<8xf32>
    %181 = vector.multi_reduction <add>, %178, %cst_90 [1] : vector<8x32xf32> to vector<8xf32>
    %182 = vector.shape_cast %181 : vector<8xf32> to vector<8x1xf32>
    %cst_91 = arith.constant 3.200000e+01 : f32
    %183 = vector.broadcast %cst_91 : f32 to vector<8x1xf32>
    %184 = arith.divf %182, %183 : vector<8x1xf32>
    %185 = vector.broadcast %184 : vector<8x1xf32> to vector<8x32xf32>
    %186 = arith.subf %178, %185 : vector<8x32xf32>
    %187 = arith.mulf %186, %186 : vector<8x32xf32>
    %cst_92 = arith.constant dense<0.000000e+00> : vector<8xf32>
    %188 = vector.multi_reduction <add>, %187, %cst_92 [1] : vector<8x32xf32> to vector<8xf32>
    %189 = vector.shape_cast %188 : vector<8xf32> to vector<8x1xf32>
    %cst_93 = arith.constant 3.200000e+01 : f32
    %190 = vector.broadcast %cst_93 : f32 to vector<8x1xf32>
    %191 = arith.divf %189, %190 : vector<8x1xf32>
    %192 = vector.broadcast %184 : vector<8x1xf32> to vector<8x32xf32>
    %193 = arith.subf %178, %192 : vector<8x32xf32>
    %cst_94 = arith.constant 9.99999974E-6 : f32
    %194 = vector.broadcast %cst_94 : f32 to vector<8x1xf32>
    %195 = arith.addf %191, %194 : vector<8x1xf32>
    %196 = math.rsqrt %195 : vector<8x1xf32>
    %197 = vector.broadcast %196 : vector<8x1xf32> to vector<8x32xf32>
    %198 = arith.mulf %193, %197 : vector<8x32xf32>
    %199 = vector.broadcast %179 : vector<1x32xf32> to vector<8x32xf32>
    %200 = arith.mulf %198, %199 : vector<8x32xf32>
    %201 = vector.broadcast %180 : vector<1x32xf32> to vector<8x32xf32>
    %202 = arith.addf %200, %201 : vector<8x32xf32>
    %c0_95 = arith.constant 0 : index
    %c0_96 = arith.constant 0 : index
    %203 = vector.load %arg28[%c0_95, %c0_96] : memref<32x512xf32, #tpu.memory_space<vmem>>, vector<32x512xf32>
    %cst_97 = arith.constant dense<0.000000e+00> : vector<8x512xf32>
    %204 = tpu.matmul %202, %203, %cst_97 {dimension_numbers = #tpu.dot_dimension_numbers<[1], [0], [0], [1], [0, 0, 1, 1], [], []>} : vector<8x32xf32>, vector<32x512xf32>, vector<8x512xf32> -> vector<8x512xf32>
    %c0_98 = arith.constant 0 : index
    %c0_99 = arith.constant 0 : index
    %205 = vector.load %arg29[%c0_98, %c0_99] : memref<1x512xf32, #tpu.memory_space<vmem>>, vector<1x512xf32>
    %206 = vector.broadcast %205 : vector<1x512xf32> to vector<8x512xf32>
    %207 = arith.addf %204, %206 : vector<8x512xf32>
    %208 = vector.extract_strided_slice %207 {offsets = [0, 0], sizes = [8, 256], strides = [1, 1]} : vector<8x512xf32> to vector<8x256xf32>
    %c0_100 = arith.constant 0 : index
    %c0_101 = arith.constant 0 : index
    %c0_102 = arith.constant 0 : index
    %209 = vector.load %arg30[%c0_100, %c0_101, %c0_102] : memref<1x8x256xf32, #tpu.memory_space<vmem>>, vector<1x8x256xf32>
    %210 = vector.shape_cast %209 : vector<1x8x256xf32> to vector<8x256xf32>
    %211 = vector.shape_cast %208 : vector<8x256xf32> to vector<1x8x256xf32>
    tpu.vector_store %arg30[%c0_100, %c0_101, %c0_102], %211 {strides = array<i32>} : memref<1x8x256xf32, #tpu.memory_space<vmem>>, vector<1x8x256xf32>,
    %212 = vector.extract_strided_slice %207 {offsets = [0, 256], sizes = [8, 256], strides = [1, 1]} : vector<8x512xf32> to vector<8x256xf32>
    %c0_103 = arith.constant 0 : index
    %c0_104 = arith.constant 0 : index
    %c0_105 = arith.constant 0 : index
    %213 = vector.load %arg31[%c0_103, %c0_104, %c0_105] : memref<1x8x256xf32, #tpu.memory_space<vmem>>, vector<1x8x256xf32>
    %214 = vector.shape_cast %213 : vector<1x8x256xf32> to vector<8x256xf32>
    %215 = vector.shape_cast %212 : vector<8x256xf32> to vector<1x8x256xf32>
    tpu.vector_store %arg31[%c0_103, %c0_104, %c0_105], %215 {strides = array<i32>} : memref<1x8x256xf32, #tpu.memory_space<vmem>>, vector<1x8x256xf32>,
    return
  }
  func.func @transform_0(%arg0: i32) -> (i32, i32, i32) {
    %c0_i32 = arith.constant 0 : i32
    %c0_i32_0 = arith.constant 0 : i32
    %c0_i32_1 = arith.constant 0 : i32
    return %arg0, %c0_i32, %c0_i32_0 : i32, i32, i32
  }
  func.func @transform_1(%arg0: i32) -> (i32, i32, i32) {
    %c0_i32 = arith.constant 0 : i32
    %c0_i32_0 = arith.constant 0 : i32
    %c0_i32_1 = arith.constant 0 : i32
    return %arg0, %c0_i32, %c0_i32_0 : i32, i32, i32
  }
  func.func @transform_2(%arg0: i32) -> (i32, i32, i32) {
    %c0_i32 = arith.constant 0 : i32
    %c0_i32_0 = arith.constant 0 : i32
    %c0_i32_1 = arith.constant 0 : i32
    return %arg0, %c0_i32, %c0_i32_0 : i32, i32, i32
  }
  func.func @transform_3(%arg0: i32) -> (i32, i32) {
    %c0_i32 = arith.constant 0 : i32
    %c0_i32_0 = arith.constant 0 : i32
    %c0_i32_1 = arith.constant 0 : i32
    return %c0_i32, %c0_i32_0 : i32, i32
  }
  func.func @transform_4(%arg0: i32) -> (i32, i32) {
    %c0_i32 = arith.constant 0 : i32
    %c0_i32_0 = arith.constant 0 : i32
    %c0_i32_1 = arith.constant 0 : i32
    return %c0_i32, %c0_i32_0 : i32, i32
  }
  func.func @transform_5(%arg0: i32) -> (i32, i32) {
    %c0_i32 = arith.constant 0 : i32
    %c0_i32_0 = arith.constant 0 : i32
    %c0_i32_1 = arith.constant 0 : i32
    return %c0_i32, %c0_i32_0 : i32, i32
  }
  func.func @transform_6(%arg0: i32) -> (i32, i32) {
    %c0_i32 = arith.constant 0 : i32
    %c0_i32_0 = arith.constant 0 : i32
    %c0_i32_1 = arith.constant 0 : i32
    return %c0_i32, %c0_i32_0 : i32, i32
  }
  func.func @transform_7(%arg0: i32) -> (i32, i32) {
    %c0_i32 = arith.constant 0 : i32
    %c0_i32_0 = arith.constant 0 : i32
    %c0_i32_1 = arith.constant 0 : i32
    return %c0_i32, %c0_i32_0 : i32, i32
  }
  func.func @transform_8(%arg0: i32) -> (i32, i32) {
    %c0_i32 = arith.constant 0 : i32
    %c0_i32_0 = arith.constant 0 : i32
    %c0_i32_1 = arith.constant 0 : i32
    return %c0_i32, %c0_i32_0 : i32, i32
  }
  func.func @transform_9(%arg0: i32) -> (i32, i32) {
    %c0_i32 = arith.constant 0 : i32
    %c0_i32_0 = arith.constant 0 : i32
    %c0_i32_1 = arith.constant 0 : i32
    return %c0_i32, %c0_i32_0 : i32, i32
  }
  func.func @transform_10(%arg0: i32) -> (i32, i32) {
    %c0_i32 = arith.constant 0 : i32
    %c0_i32_0 = arith.constant 0 : i32
    %c0_i32_1 = arith.constant 0 : i32
    return %c0_i32, %c0_i32_0 : i32, i32
  }
  func.func @transform_11(%arg0: i32) -> (i32, i32) {
    %c0_i32 = arith.constant 0 : i32
    %c0_i32_0 = arith.constant 0 : i32
    %c0_i32_1 = arith.constant 0 : i32
    return %c0_i32, %c0_i32_0 : i32, i32
  }
  func.func @transform_12(%arg0: i32) -> (i32, i32) {
    %c0_i32 = arith.constant 0 : i32
    %c0_i32_0 = arith.constant 0 : i32
    %c0_i32_1 = arith.constant 0 : i32
    return %c0_i32, %c0_i32_0 : i32, i32
  }
  func.func @transform_13(%arg0: i32) -> (i32, i32) {
    %c0_i32 = arith.constant 0 : i32
    %c0_i32_0 = arith.constant 0 : i32
    %c0_i32_1 = arith.constant 0 : i32
    return %c0_i32, %c0_i32_0 : i32, i32
  }
  func.func @transform_14(%arg0: i32) -> (i32, i32) {
    %c0_i32 = arith.constant 0 : i32
    %c0_i32_0 = arith.constant 0 : i32
    %c0_i32_1 = arith.constant 0 : i32
    return %c0_i32, %c0_i32_0 : i32, i32
  }
  func.func @transform_15(%arg0: i32) -> (i32, i32) {
    %c0_i32 = arith.constant 0 : i32
    %c0_i32_0 = arith.constant 0 : i32
    %c0_i32_1 = arith.constant 0 : i32
    return %c0_i32, %c0_i32_0 : i32, i32
  }
  func.func @transform_16(%arg0: i32) -> (i32, i32) {
    %c0_i32 = arith.constant 0 : i32
    %c0_i32_0 = arith.constant 0 : i32
    %c0_i32_1 = arith.constant 0 : i32
    return %c0_i32, %c0_i32_0 : i32, i32
  }
  func.func @transform_17(%arg0: i32) -> (i32, i32) {
    %c0_i32 = arith.constant 0 : i32
    %c0_i32_0 = arith.constant 0 : i32
    %c0_i32_1 = arith.constant 0 : i32
    return %c0_i32, %c0_i32_0 : i32, i32
  }
  func.func @transform_18(%arg0: i32) -> (i32, i32) {
    %c0_i32 = arith.constant 0 : i32
    %c0_i32_0 = arith.constant 0 : i32
    %c0_i32_1 = arith.constant 0 : i32
    return %c0_i32, %c0_i32_0 : i32, i32
  }
  func.func @transform_19(%arg0: i32) -> (i32, i32) {
    %c0_i32 = arith.constant 0 : i32
    %c0_i32_0 = arith.constant 0 : i32
    %c0_i32_1 = arith.constant 0 : i32
    return %c0_i32, %c0_i32_0 : i32, i32
  }
  func.func @transform_20(%arg0: i32) -> (i32, i32) {
    %c0_i32 = arith.constant 0 : i32
    %c0_i32_0 = arith.constant 0 : i32
    %c0_i32_1 = arith.constant 0 : i32
    return %c0_i32, %c0_i32_0 : i32, i32
  }
  func.func @transform_21(%arg0: i32) -> (i32, i32) {
    %c0_i32 = arith.constant 0 : i32
    %c0_i32_0 = arith.constant 0 : i32
    %c0_i32_1 = arith.constant 0 : i32
    return %c0_i32, %c0_i32_0 : i32, i32
  }
  func.func @transform_22(%arg0: i32) -> (i32, i32) {
    %c0_i32 = arith.constant 0 : i32
    %c0_i32_0 = arith.constant 0 : i32
    %c0_i32_1 = arith.constant 0 : i32
    return %c0_i32, %c0_i32_0 : i32, i32
  }
  func.func @transform_23(%arg0: i32) -> (i32, i32) {
    %c0_i32 = arith.constant 0 : i32
    %c0_i32_0 = arith.constant 0 : i32
    %c0_i32_1 = arith.constant 0 : i32
    return %c0_i32, %c0_i32_0 : i32, i32
  }
  func.func @transform_24(%arg0: i32) -> (i32, i32) {
    %c0_i32 = arith.constant 0 : i32
    %c0_i32_0 = arith.constant 0 : i32
    %c0_i32_1 = arith.constant 0 : i32
    return %c0_i32, %c0_i32_0 : i32, i32
  }
  func.func @transform_25(%arg0: i32) -> (i32, i32) {
    %c0_i32 = arith.constant 0 : i32
    %c0_i32_0 = arith.constant 0 : i32
    %c0_i32_1 = arith.constant 0 : i32
    return %c0_i32, %c0_i32_0 : i32, i32
  }
  func.func @transform_26(%arg0: i32) -> (i32, i32) {
    %c0_i32 = arith.constant 0 : i32
    %c0_i32_0 = arith.constant 0 : i32
    %c0_i32_1 = arith.constant 0 : i32
    return %c0_i32, %c0_i32_0 : i32, i32
  }
  func.func @transform_27(%arg0: i32) -> (i32, i32) {
    %c0_i32 = arith.constant 0 : i32
    %c0_i32_0 = arith.constant 0 : i32
    %c0_i32_1 = arith.constant 0 : i32
    return %c0_i32, %c0_i32_0 : i32, i32
  }
  func.func @transform_28(%arg0: i32) -> (i32, i32) {
    %c0_i32 = arith.constant 0 : i32
    %c0_i32_0 = arith.constant 0 : i32
    %c0_i32_1 = arith.constant 0 : i32
    return %c0_i32, %c0_i32_0 : i32, i32
  }
  func.func @transform_29(%arg0: i32) -> (i32, i32, i32) {
    %c0_i32 = arith.constant 0 : i32
    %c0_i32_0 = arith.constant 0 : i32
    %c0_i32_1 = arith.constant 0 : i32
    return %arg0, %c0_i32, %c0_i32_0 : i32, i32, i32
  }
  func.func @transform_30(%arg0: i32) -> (i32, i32, i32) {
    %c0_i32 = arith.constant 0 : i32
    %c0_i32_0 = arith.constant 0 : i32
    %c0_i32_1 = arith.constant 0 : i32
    return %arg0, %c0_i32, %c0_i32_0 : i32, i32, i32
  }
}

</mosaic_0001>

<llo_original>
// kernel: tpu_custom_call.1
$region0: #{tpu_custom_call.1}
  #allocation0 [shape = 'u32[]', space=smem, size = 0x4, offset = 0x4, fixed_abs, tag = 'smem constant byte address 0x4 - core index']
  #allocation1 [shape = 'u32[144,128]{1,0:T(1,128)}', space=vmem, size = 0x12000, scoped, tag = 'internal scratch']
  %s0 = inlined_call_operand.smem [shape: u32[31], index: -1, kind: input, shape index: {}]
  %s1 = sld [smem:[%s0]]
  %s2 = scalar_lea.smem %s0, 1
  %s3 = sld [smem:[%s2]]
  %s4 = scalar_lea.smem %s0, 2
  %s5 = sld [smem:[%s4]]
  %s6 = scalar_lea.smem %s0, 3
  %s7 = sld [smem:[%s6]]
  %s8 = scalar_lea.smem %s0, 4
  %s9 = sld [smem:[%s8]]
  %s10 = scalar_lea.smem %s0, 5
  %s11 = sld [smem:[%s10]]
  %s12 = scalar_lea.smem %s0, 6
  %s13 = sld [smem:[%s12]]
  %s14 = scalar_lea.smem %s0, 7
  %s15 = sld [smem:[%s14]]
  %s16 = scalar_lea.smem %s0, 8
  %s17 = sld [smem:[%s16]]
  %s18 = scalar_lea.smem %s0, 9
  %s19 = sld [smem:[%s18]]
  %s20 = scalar_lea.smem %s0, 10
  %s21 = sld [smem:[%s20]]
  %s22 = scalar_lea.smem %s0, 11
  %s23 = sld [smem:[%s22]]
  %s24 = scalar_lea.smem %s0, 12
  %s25 = sld [smem:[%s24]]
  %s26 = scalar_lea.smem %s0, 13
  %s27 = sld [smem:[%s26]]
  %s28 = scalar_lea.smem %s0, 14
  %s29 = sld [smem:[%s28]]
  %s30 = scalar_lea.smem %s0, 15
  %s31 = sld [smem:[%s30]]
  %s32 = scalar_lea.smem %s0, 16
  %s33 = sld [smem:[%s32]]
  %s34 = scalar_lea.smem %s0, 17
  %s35 = sld [smem:[%s34]]
  %s36 = scalar_lea.smem %s0, 18
  %s37 = sld [smem:[%s36]]
  %s38 = scalar_lea.smem %s0, 19
  %s39 = sld [smem:[%s38]]
  %s40 = scalar_lea.smem %s0, 20
  %s41 = sld [smem:[%s40]]
  %s42 = scalar_lea.smem %s0, 21
  %s43 = sld [smem:[%s42]]
  %s44 = scalar_lea.smem %s0, 22
  %s45 = sld [smem:[%s44]]
  %s46 = scalar_lea.smem %s0, 23
  %s47 = sld [smem:[%s46]]
  %s48 = scalar_lea.smem %s0, 24
  %s49 = sld [smem:[%s48]]
  %s50 = scalar_lea.smem %s0, 25
  %s51 = sld [smem:[%s50]]
  %s52 = scalar_lea.smem %s0, 26
  %s53 = sld [smem:[%s52]]
  %s54 = scalar_lea.smem %s0, 27
  %s55 = sld [smem:[%s54]]
  %s56 = scalar_lea.smem %s0, 28
  %s57 = sld [smem:[%s56]]
  %s58 = scalar_lea.smem %s0, 29
  %s59 = sld [smem:[%s58]]
  %s60 = scalar_lea.smem %s0, 30
  %s61 = sld [smem:[%s60]]
  %62 = xla_tuple %s59, %s61
  %s63 = sld [smem:[#allocation0]]
  $region157: #{tpu_custom_call.1} parent=0
    _
  %s65 = ssub.s32 1, %s63
  %s66 = scalar_select 0, %s65, %s63
  $region1: #{tpu_custom_call.1} parent=0
    #allocation2 [shape = 'u8[16384]{0}', space=vmem, size = 0x4000, scoped, tag = 'output window, operand 0']
    #allocation3 [shape = 's32[2]{0}', space=sflag, size = 0x8, scoped, tag = 'scoped memory for tpu_custom_call.1']
    #allocation4 [shape = 'u8[16384]{0}', space=vmem, size = 0x4000, scoped, tag = 'output window, operand 1']
    #allocation5 [shape = 's32[2]{0}', space=sflag, size = 0x8, scoped, tag = 'scoped memory for tpu_custom_call.1']
    %67 = vsyncpa [#allocation3], 0
    %s68 = scalar_lea.sflag [#allocation3], 1
    %69 = vsyncpa %s68, 0
    %70 = vsyncpa [#allocation5], 0
    %s71 = scalar_lea.sflag [#allocation5], 1
    %72 = vsyncpa %s71, 0
    loop: start=0, step=1, limit=4
    $region2: #{tpu_custom_call.1} parent=1 // loop_pre_header
      _
    $region3: #{tpu_custom_call.1} parent=1 // loop_header
      %s74 = sphi 0, %s78
      %p75 = scmp.ge.s32.totalorder %s74, 4
      %s84 = sphi 0, %s86
      %s87 = sphi 0, %s84
      %s88 = sphi 0, %s87
      %s104 = sphi 0, %s88
      %s110 = sphi 0, %s112
      %s113 = sphi 0, %s110
      %s114 = sphi 0, %s113
      %s130 = sphi 0, %s114
      %s136 = sphi 0, %s138
      %s139 = sphi 0, %s136
      %s140 = sphi 0, %s139
      %s156 = sphi 0, %s140
      %s160 = sphi 0, %s160
      %s162 = sphi 0, %s160
      %s163 = sphi 0, %s162
      %s177 = sphi 0, %s163
      %s181 = sphi 0, %s181
      %s183 = sphi 0, %s181
      %s184 = sphi 0, %s183
      %s198 = sphi 0, %s184
      %s202 = sphi 0, %s202
      %s204 = sphi 0, %s202
      %s205 = sphi 0, %s204
      %s219 = sphi 0, %s205
      %s223 = sphi 0, %s223
      %s225 = sphi 0, %s223
      %s226 = sphi 0, %s225
      %s240 = sphi 0, %s226
      %s244 = sphi 0, %s244
      %s246 = sphi 0, %s244
      %s247 = sphi 0, %s246
      %s261 = sphi 0, %s247
      %s265 = sphi 0, %s265
      %s267 = sphi 0, %s265
      %s268 = sphi 0, %s267
      %s282 = sphi 0, %s268
      %s286 = sphi 0, %s286
      %s288 = sphi 0, %s286
      %s289 = sphi 0, %s288
      %s303 = sphi 0, %s289
      %s307 = sphi 0, %s307
      %s309 = sphi 0, %s307
      %s310 = sphi 0, %s309
      %s324 = sphi 0, %s310
      %s328 = sphi 0, %s328
      %s330 = sphi 0, %s328
      %s331 = sphi 0, %s330
      %s345 = sphi 0, %s331
      %s349 = sphi 0, %s349
      %s351 = sphi 0, %s349
      %s352 = sphi 0, %s351
      %s366 = sphi 0, %s352
      %s370 = sphi 0, %s370
      %s372 = sphi 0, %s370
      %s373 = sphi 0, %s372
      %s387 = sphi 0, %s373
      %s391 = sphi 0, %s391
      %s393 = sphi 0, %s391
      %s394 = sphi 0, %s393
      %s408 = sphi 0, %s394
      %s412 = sphi 0, %s412
      %s414 = sphi 0, %s412
      %s415 = sphi 0, %s414
      %s429 = sphi 0, %s415
      %s433 = sphi 0, %s433
      %s435 = sphi 0, %s433
      %s436 = sphi 0, %s435
      %s450 = sphi 0, %s436
      %s454 = sphi 0, %s454
      %s456 = sphi 0, %s454
      %s457 = sphi 0, %s456
      %s471 = sphi 0, %s457
      %s475 = sphi 0, %s475
      %s477 = sphi 0, %s475
      %s478 = sphi 0, %s477
      %s492 = sphi 0, %s478
      %s496 = sphi 0, %s496
      %s498 = sphi 0, %s496
      %s499 = sphi 0, %s498
      %s513 = sphi 0, %s499
      %s517 = sphi 0, %s517
      %s519 = sphi 0, %s517
      %s520 = sphi 0, %s519
      %s534 = sphi 0, %s520
      %s538 = sphi 0, %s538
      %s540 = sphi 0, %s538
      %s541 = sphi 0, %s540
      %s555 = sphi 0, %s541
      %s559 = sphi 0, %s559
      %s561 = sphi 0, %s559
      %s562 = sphi 0, %s561
      %s576 = sphi 0, %s562
      %s580 = sphi 0, %s580
      %s582 = sphi 0, %s580
      %s583 = sphi 0, %s582
      %s597 = sphi 0, %s583
      %s601 = sphi 0, %s601
      %s603 = sphi 0, %s601
      %s604 = sphi 0, %s603
      %s618 = sphi 0, %s604
      %s622 = sphi 0, %s622
      %s624 = sphi 0, %s622
      %s625 = sphi 0, %s624
      %s639 = sphi 0, %s625
      %s643 = sphi 0, %s643
      %s645 = sphi 0, %s643
      %s646 = sphi 0, %s645
      %s660 = sphi 0, %s646
      %s664 = sphi 0, %s664
      %s666 = sphi 0, %s664
      %s667 = sphi 0, %s666
      %s681 = sphi 0, %s667
      %s685 = sphi 0, %s685
      %s687 = sphi 0, %s685
      %s688 = sphi 0, %s687
      %s702 = sphi 0, %s688
      %s708 = sphi 0, %s710
      %s711 = sphi 0, %s708
      %s712 = sphi 0, %s711
      %s728 = sphi 0, %s712
      %s734 = sphi 0, %s736
      %s737 = sphi 0, %s734
      %s738 = sphi 0, %s737
      %s754 = sphi 0, %s738
    $region4: #{tpu_custom_call.1} parent=1 // loop_header_branch
      %77 = sbr.rel (%p75) target = $region8
    $region5: #{tpu_custom_call.1} parent=1 // loop_body
      %s79 = ssub.s32 %s74, 1
      %s80 = ssub.s32 %s74, 2
      %s81 = sadd.s32 %s74, 1
      %s82 = ssub.s32 %s74, %s81
      %p83 = scmp.eq.s32.totalorder %s82, 0
      %s85 = sadd.s32 %s84, 1
      %s86 = scalar_select %p83, %s84, %s85
      %p89 = pneg %p83
      %p90 = scmp.eq.s32.totalorder %s74, 1
      %p91 = por %p89, %p90
      %p92 = scmp.ne.s32.totalorder %s84, %s87
      %p93 = scmp.eq.s32.totalorder %s74, 0
      %p94 = por %p92, %p93
      %p95 = scmp.ne.s32.totalorder %s84, %s87
      %p96 = scmp.eq.s32.totalorder %s79, 1
      %p97 = por %p95, %p96
      %p98 = scmp.ne.s32.totalorder %s87, %s88
      %p99 = scmp.eq.s32.totalorder %s79, 0
      %p100 = por %p98, %p99
      %p101 = scmp.ne.s32.totalorder %s87, %s88
      %p102 = scmp.eq.s32.totalorder %s80, 1
      %p103 = por %p101, %p102
      %p105 = scmp.ne.s32.totalorder %s88, %s104
      %p106 = scmp.eq.s32.totalorder %s80, 0
      %p107 = por %p105, %p106
      %s108 = ssub.s32 %s74, %s81
      %p109 = scmp.eq.s32.totalorder %s108, 0
      %s111 = sadd.s32 %s110, 1
      %s112 = scalar_select %p109, %s110, %s111
      %p115 = pneg %p109
      %p116 = scmp.eq.s32.totalorder %s74, 1
      %p117 = por %p115, %p116
      %p118 = scmp.ne.s32.totalorder %s110, %s113
      %p119 = scmp.eq.s32.totalorder %s74, 0
      %p120 = por %p118, %p119
      %p121 = scmp.ne.s32.totalorder %s110, %s113
      %p122 = scmp.eq.s32.totalorder %s79, 1
      %p123 = por %p121, %p122
      %p124 = scmp.ne.s32.totalorder %s113, %s114
      %p125 = scmp.eq.s32.totalorder %s79, 0
      %p126 = por %p124, %p125
      %p127 = scmp.ne.s32.totalorder %s113, %s114
      %p128 = scmp.eq.s32.totalorder %s80, 1
      %p129 = por %p127, %p128
      %p131 = scmp.ne.s32.totalorder %s114, %s130
      %p132 = scmp.eq.s32.totalorder %s80, 0
      %p133 = por %p131, %p132
      %s134 = ssub.s32 %s74, %s81
      %p135 = scmp.eq.s32.totalorder %s134, 0
      %s137 = sadd.s32 %s136, 1
      %s138 = scalar_select %p135, %s136, %s137
      %p141 = pneg %p135
      %p142 = scmp.eq.s32.totalorder %s74, 1
      %p143 = por %p141, %p142
      %p144 = scmp.ne.s32.totalorder %s136, %s139
      %p145 = scmp.eq.s32.totalorder %s74, 0
      %p146 = por %p144, %p145
      %p147 = scmp.ne.s32.totalorder %s136, %s139
      %p148 = scmp.eq.s32.totalorder %s79, 1
      %p149 = por %p147, %p148
      %p150 = scmp.ne.s32.totalorder %s139, %s140
      %p151 = scmp.eq.s32.totalorder %s79, 0
      %p152 = por %p150, %p151
      %p153 = scmp.ne.s32.totalorder %s139, %s140
      %p154 = scmp.eq.s32.totalorder %s80, 1
      %p155 = por %p153, %p154
      %p157 = scmp.ne.s32.totalorder %s140, %s156
      %p158 = scmp.eq.s32.totalorder %s80, 0
      %p159 = por %p157, %p158
      %s161 = sadd.s32 %s160, 1
      %p164 = scmp.eq.s32.totalorder %s74, 1
      %p165 = scmp.ne.s32.totalorder %s160, %s162
      %p166 = scmp.eq.s32.totalorder %s74, 0
      %p167 = por %p165, %p166
      %p168 = scmp.ne.s32.totalorder %s160, %s162
      %p169 = scmp.eq.s32.totalorder %s79, 1
      %p170 = por %p168, %p169
      %p171 = scmp.ne.s32.totalorder %s162, %s163
      %p172 = scmp.eq.s32.totalorder %s79, 0
      %p173 = por %p171, %p172
      %p174 = scmp.ne.s32.totalorder %s162, %s163
      %p175 = scmp.eq.s32.totalorder %s80, 1
      %p176 = por %p174, %p175
      %p178 = scmp.ne.s32.totalorder %s163, %s177
      %p179 = scmp.eq.s32.totalorder %s80, 0
      %p180 = por %p178, %p179
      %s182 = sadd.s32 %s181, 1
      %p185 = scmp.eq.s32.totalorder %s74, 1
      %p186 = scmp.ne.s32.totalorder %s181, %s183
      %p187 = scmp.eq.s32.totalorder %s74, 0
      %p188 = por %p186, %p187
      %p189 = scmp.ne.s32.totalorder %s181, %s183
      %p190 = scmp.eq.s32.totalorder %s79, 1
      %p191 = por %p189, %p190
      %p192 = scmp.ne.s32.totalorder %s183, %s184
      %p193 = scmp.eq.s32.totalorder %s79, 0
      %p194 = por %p192, %p193
      %p195 = scmp.ne.s32.totalorder %s183, %s184
      %p196 = scmp.eq.s32.totalorder %s80, 1
      %p197 = por %p195, %p196
      %p199 = scmp.ne.s32.totalorder %s184, %s198
      %p200 = scmp.eq.s32.totalorder %s80, 0
      %p201 = por %p199, %p200
      %s203 = sadd.s32 %s202, 1
      %p206 = scmp.eq.s32.totalorder %s74, 1
      %p207 = scmp.ne.s32.totalorder %s202, %s204
      %p208 = scmp.eq.s32.totalorder %s74, 0
      %p209 = por %p207, %p208
      %p210 = scmp.ne.s32.totalorder %s202, %s204
      %p211 = scmp.eq.s32.totalorder %s79, 1
      %p212 = por %p210, %p211
      %p213 = scmp.ne.s32.totalorder %s204, %s205
      %p214 = scmp.eq.s32.totalorder %s79, 0
      %p215 = por %p213, %p214
      %p216 = scmp.ne.s32.totalorder %s204, %s205
      %p217 = scmp.eq.s32.totalorder %s80, 1
      %p218 = por %p216, %p217
      %p220 = scmp.ne.s32.totalorder %s205, %s219
      %p221 = scmp.eq.s32.totalorder %s80, 0
      %p222 = por %p220, %p221
      %s224 = sadd.s32 %s223, 1
      %p227 = scmp.eq.s32.totalorder %s74, 1
      %p228 = scmp.ne.s32.totalorder %s223, %s225
      %p229 = scmp.eq.s32.totalorder %s74, 0
      %p230 = por %p228, %p229
      %p231 = scmp.ne.s32.totalorder %s223, %s225
      %p232 = scmp.eq.s32.totalorder %s79, 1
      %p233 = por %p231, %p232
      %p234 = scmp.ne.s32.totalorder %s225, %s226
      %p235 = scmp.eq.s32.totalorder %s79, 0
      %p236 = por %p234, %p235
      %p237 = scmp.ne.s32.totalorder %s225, %s226
      %p238 = scmp.eq.s32.totalorder %s80, 1
      %p239 = por %p237, %p238
      %p241 = scmp.ne.s32.totalorder %s226, %s240
      %p242 = scmp.eq.s32.totalorder %s80, 0
      %p243 = por %p241, %p242
      %s245 = sadd.s32 %s244, 1
      %p248 = scmp.eq.s32.totalorder %s74, 1
      %p249 = scmp.ne.s32.totalorder %s244, %s246
      %p250 = scmp.eq.s32.totalorder %s74, 0
      %p251 = por %p249, %p250
      %p252 = scmp.ne.s32.totalorder %s244, %s246
      %p253 = scmp.eq.s32.totalorder %s79, 1
      %p254 = por %p252, %p253
      %p255 = scmp.ne.s32.totalorder %s246, %s247
      %p256 = scmp.eq.s32.totalorder %s79, 0
      %p257 = por %p255, %p256
      %p258 = scmp.ne.s32.totalorder %s246, %s247
      %p259 = scmp.eq.s32.totalorder %s80, 1
      %p260 = por %p258, %p259
      %p262 = scmp.ne.s32.totalorder %s247, %s261
      %p263 = scmp.eq.s32.totalorder %s80, 0
      %p264 = por %p262, %p263
      %s266 = sadd.s32 %s265, 1
      %p269 = scmp.eq.s32.totalorder %s74, 1
      %p270 = scmp.ne.s32.totalorder %s265, %s267
      %p271 = scmp.eq.s32.totalorder %s74, 0
      %p272 = por %p270, %p271
      %p273 = scmp.ne.s32.totalorder %s265, %s267
      %p274 = scmp.eq.s32.totalorder %s79, 1
      %p275 = por %p273, %p274
      %p276 = scmp.ne.s32.totalorder %s267, %s268
      %p277 = scmp.eq.s32.totalorder %s79, 0
      %p278 = por %p276, %p277
      %p279 = scmp.ne.s32.totalorder %s267, %s268
      %p280 = scmp.eq.s32.totalorder %s80, 1
      %p281 = por %p279, %p280
      %p283 = scmp.ne.s32.totalorder %s268, %s282
      %p284 = scmp.eq.s32.totalorder %s80, 0
      %p285 = por %p283, %p284
      %s287 = sadd.s32 %s286, 1
      %p290 = scmp.eq.s32.totalorder %s74, 1
      %p291 = scmp.ne.s32.totalorder %s286, %s288
      %p292 = scmp.eq.s32.totalorder %s74, 0
      %p293 = por %p291, %p292
      %p294 = scmp.ne.s32.totalorder %s286, %s288
      %p295 = scmp.eq.s32.totalorder %s79, 1
      %p296 = por %p294, %p295
      %p297 = scmp.ne.s32.totalorder %s288, %s289
      %p298 = scmp.eq.s32.totalorder %s79, 0
      %p299 = por %p297, %p298
      %p300 = scmp.ne.s32.totalorder %s288, %s289
      %p301 = scmp.eq.s32.totalorder %s80, 1
      %p302 = por %p300, %p301
      %p304 = scmp.ne.s32.totalorder %s289, %s303
      %p305 = scmp.eq.s32.totalorder %s80, 0
      %p306 = por %p304, %p305
      %s308 = sadd.s32 %s307, 1
      %p311 = scmp.eq.s32.totalorder %s74, 1
      %p312 = scmp.ne.s32.totalorder %s307, %s309
      %p313 = scmp.eq.s32.totalorder %s74, 0
      %p314 = por %p312, %p313
      %p315 = scmp.ne.s32.totalorder %s307, %s309
      %p316 = scmp.eq.s32.totalorder %s79, 1
      %p317 = por %p315, %p316
      %p318 = scmp.ne.s32.totalorder %s309, %s310
      %p319 = scmp.eq.s32.totalorder %s79, 0
      %p320 = por %p318, %p319
      %p321 = scmp.ne.s32.totalorder %s309, %s310
      %p322 = scmp.eq.s32.totalorder %s80, 1
      %p323 = por %p321, %p322
      %p325 = scmp.ne.s32.totalorder %s310, %s324
      %p326 = scmp.eq.s32.totalorder %s80, 0
      %p327 = por %p325, %p326
      %s329 = sadd.s32 %s328, 1
      %p332 = scmp.eq.s32.totalorder %s74, 1
      %p333 = scmp.ne.s32.totalorder %s328, %s330
      %p334 = scmp.eq.s32.totalorder %s74, 0
      %p335 = por %p333, %p334
      %p336 = scmp.ne.s32.totalorder %s328, %s330
      %p337 = scmp.eq.s32.totalorder %s79, 1
      %p338 = por %p336, %p337
      %p339 = scmp.ne.s32.totalorder %s330, %s331
      %p340 = scmp.eq.s32.totalorder %s79, 0
      %p341 = por %p339, %p340
      %p342 = scmp.ne.s32.totalorder %s330, %s331
      %p343 = scmp.eq.s32.totalorder %s80, 1
      %p344 = por %p342, %p343
      %p346 = scmp.ne.s32.totalorder %s331, %s345
      %p347 = scmp.eq.s32.totalorder %s80, 0
      %p348 = por %p346, %p347
      %s350 = sadd.s32 %s349, 1
      %p353 = scmp.eq.s32.totalorder %s74, 1
      %p354 = scmp.ne.s32.totalorder %s349, %s351
      %p355 = scmp.eq.s32.totalorder %s74, 0
      %p356 = por %p354, %p355
      %p357 = scmp.ne.s32.totalorder %s349, %s351
      %p358 = scmp.eq.s32.totalorder %s79, 1
      %p359 = por %p357, %p358
      %p360 = scmp.ne.s32.totalorder %s351, %s352
      %p361 = scmp.eq.s32.totalorder %s79, 0
      %p362 = por %p360, %p361
      %p363 = scmp.ne.s32.totalorder %s351, %s352
      %p364 = scmp.eq.s32.totalorder %s80, 1
      %p365 = por %p363, %p364
      %p367 = scmp.ne.s32.totalorder %s352, %s366
      %p368 = scmp.eq.s32.totalorder %s80, 0
      %p369 = por %p367, %p368
      %s371 = sadd.s32 %s370, 1
      %p374 = scmp.eq.s32.totalorder %s74, 1
      %p375 = scmp.ne.s32.totalorder %s370, %s372
      %p376 = scmp.eq.s32.totalorder %s74, 0
      %p377 = por %p375, %p376
      %p378 = scmp.ne.s32.totalorder %s370, %s372
      %p379 = scmp.eq.s32.totalorder %s79, 1
      %p380 = por %p378, %p379
      %p381 = scmp.ne.s32.totalorder %s372, %s373
      %p382 = scmp.eq.s32.totalorder %s79, 0
      %p383 = por %p381, %p382
      %p384 = scmp.ne.s32.totalorder %s372, %s373
      %p385 = scmp.eq.s32.totalorder %s80, 1
      %p386 = por %p384, %p385
      %p388 = scmp.ne.s32.totalorder %s373, %s387
      %p389 = scmp.eq.s32.totalorder %s80, 0
      %p390 = por %p388, %p389
      %s392 = sadd.s32 %s391, 1
      %p395 = scmp.eq.s32.totalorder %s74, 1
      %p396 = scmp.ne.s32.totalorder %s391, %s393
      %p397 = scmp.eq.s32.totalorder %s74, 0
      %p398 = por %p396, %p397
      %p399 = scmp.ne.s32.totalorder %s391, %s393
      %p400 = scmp.eq.s32.totalorder %s79, 1
      %p401 = por %p399, %p400
      %p402 = scmp.ne.s32.totalorder %s393, %s394
      %p403 = scmp.eq.s32.totalorder %s79, 0
      %p404 = por %p402, %p403
      %p405 = scmp.ne.s32.totalorder %s393, %s394
      %p406 = scmp.eq.s32.totalorder %s80, 1
      %p407 = por %p405, %p406
      %p409 = scmp.ne.s32.totalorder %s394, %s408
      %p410 = scmp.eq.s32.totalorder %s80, 0
      %p411 = por %p409, %p410
      %s413 = sadd.s32 %s412, 1
      %p416 = scmp.eq.s32.totalorder %s74, 1
      %p417 = scmp.ne.s32.totalorder %s412, %s414
      %p418 = scmp.eq.s32.totalorder %s74, 0
      %p419 = por %p417, %p418
      %p420 = scmp.ne.s32.totalorder %s412, %s414
      %p421 = scmp.eq.s32.totalorder %s79, 1
      %p422 = por %p420, %p421
      %p423 = scmp.ne.s32.totalorder %s414, %s415
      %p424 = scmp.eq.s32.totalorder %s79, 0
      %p425 = por %p423, %p424
      %p426 = scmp.ne.s32.totalorder %s414, %s415
      %p427 = scmp.eq.s32.totalorder %s80, 1
      %p428 = por %p426, %p427
      %p430 = scmp.ne.s32.totalorder %s415, %s429
      %p431 = scmp.eq.s32.totalorder %s80, 0
      %p432 = por %p430, %p431
      %s434 = sadd.s32 %s433, 1
      %p437 = scmp.eq.s32.totalorder %s74, 1
      %p438 = scmp.ne.s32.totalorder %s433, %s435
      %p439 = scmp.eq.s32.totalorder %s74, 0
      %p440 = por %p438, %p439
      %p441 = scmp.ne.s32.totalorder %s433, %s435
      %p442 = scmp.eq.s32.totalorder %s79, 1
      %p443 = por %p441, %p442
      %p444 = scmp.ne.s32.totalorder %s435, %s436
      %p445 = scmp.eq.s32.totalorder %s79, 0
      %p446 = por %p444, %p445
      %p447 = scmp.ne.s32.totalorder %s435, %s436
      %p448 = scmp.eq.s32.totalorder %s80, 1
      %p449 = por %p447, %p448
      %p451 = scmp.ne.s32.totalorder %s436, %s450
      %p452 = scmp.eq.s32.totalorder %s80, 0
      %p453 = por %p451, %p452
      %s455 = sadd.s32 %s454, 1
      %p458 = scmp.eq.s32.totalorder %s74, 1
      %p459 = scmp.ne.s32.totalorder %s454, %s456
      %p460 = scmp.eq.s32.totalorder %s74, 0
      %p461 = por %p459, %p460
      %p462 = scmp.ne.s32.totalorder %s454, %s456
      %p463 = scmp.eq.s32.totalorder %s79, 1
      %p464 = por %p462, %p463
      %p465 = scmp.ne.s32.totalorder %s456, %s457
      %p466 = scmp.eq.s32.totalorder %s79, 0
      %p467 = por %p465, %p466
      %p468 = scmp.ne.s32.totalorder %s456, %s457
      %p469 = scmp.eq.s32.totalorder %s80, 1
      %p470 = por %p468, %p469
      %p472 = scmp.ne.s32.totalorder %s457, %s471
      %p473 = scmp.eq.s32.totalorder %s80, 0
      %p474 = por %p472, %p473
      %s476 = sadd.s32 %s475, 1
      %p479 = scmp.eq.s32.totalorder %s74, 1
      %p480 = scmp.ne.s32.totalorder %s475, %s477
      %p481 = scmp.eq.s32.totalorder %s74, 0
      %p482 = por %p480, %p481
      %p483 = scmp.ne.s32.totalorder %s475, %s477
      %p484 = scmp.eq.s32.totalorder %s79, 1
      %p485 = por %p483, %p484
      %p486 = scmp.ne.s32.totalorder %s477, %s478
      %p487 = scmp.eq.s32.totalorder %s79, 0
      %p488 = por %p486, %p487
      %p489 = scmp.ne.s32.totalorder %s477, %s478
      %p490 = scmp.eq.s32.totalorder %s80, 1
      %p491 = por %p489, %p490
      %p493 = scmp.ne.s32.totalorder %s478, %s492
      %p494 = scmp.eq.s32.totalorder %s80, 0
      %p495 = por %p493, %p494
      %s497 = sadd.s32 %s496, 1
      %p500 = scmp.eq.s32.totalorder %s74, 1
      %p501 = scmp.ne.s32.totalorder %s496, %s498
      %p502 = scmp.eq.s32.totalorder %s74, 0
      %p503 = por %p501, %p502
      %p504 = scmp.ne.s32.totalorder %s496, %s498
      %p505 = scmp.eq.s32.totalorder %s79, 1
      %p506 = por %p504, %p505
      %p507 = scmp.ne.s32.totalorder %s498, %s499
      %p508 = scmp.eq.s32.totalorder %s79, 0
      %p509 = por %p507, %p508
      %p510 = scmp.ne.s32.totalorder %s498, %s499
      %p511 = scmp.eq.s32.totalorder %s80, 1
      %p512 = por %p510, %p511
      %p514 = scmp.ne.s32.totalorder %s499, %s513
      %p515 = scmp.eq.s32.totalorder %s80, 0
      %p516 = por %p514, %p515
      %s518 = sadd.s32 %s517, 1
      %p521 = scmp.eq.s32.totalorder %s74, 1
      %p522 = scmp.ne.s32.totalorder %s517, %s519
      %p523 = scmp.eq.s32.totalorder %s74, 0
      %p524 = por %p522, %p523
      %p525 = scmp.ne.s32.totalorder %s517, %s519
      %p526 = scmp.eq.s32.totalorder %s79, 1
      %p527 = por %p525, %p526
      %p528 = scmp.ne.s32.totalorder %s519, %s520
      %p529 = scmp.eq.s32.totalorder %s79, 0
      %p530 = por %p528, %p529
      %p531 = scmp.ne.s32.totalorder %s519, %s520
      %p532 = scmp.eq.s32.totalorder %s80, 1
      %p533 = por %p531, %p532
      %p535 = scmp.ne.s32.totalorder %s520, %s534
      %p536 = scmp.eq.s32.totalorder %s80, 0
      %p537 = por %p535, %p536
      %s539 = sadd.s32 %s538, 1
      %p542 = scmp.eq.s32.totalorder %s74, 1
      %p543 = scmp.ne.s32.totalorder %s538, %s540
      %p544 = scmp.eq.s32.totalorder %s74, 0
      %p545 = por %p543, %p544
      %p546 = scmp.ne.s32.totalorder %s538, %s540
      %p547 = scmp.eq.s32.totalorder %s79, 1
      %p548 = por %p546, %p547
      %p549 = scmp.ne.s32.totalorder %s540, %s541
      %p550 = scmp.eq.s32.totalorder %s79, 0
      %p551 = por %p549, %p550
      %p552 = scmp.ne.s32.totalorder %s540, %s541
      %p553 = scmp.eq.s32.totalorder %s80, 1
      %p554 = por %p552, %p553
      %p556 = scmp.ne.s32.totalorder %s541, %s555
      %p557 = scmp.eq.s32.totalorder %s80, 0
      %p558 = por %p556, %p557
      %s560 = sadd.s32 %s559, 1
      %p563 = scmp.eq.s32.totalorder %s74, 1
      %p564 = scmp.ne.s32.totalorder %s559, %s561
      %p565 = scmp.eq.s32.totalorder %s74, 0
      %p566 = por %p564, %p565
      %p567 = scmp.ne.s32.totalorder %s559, %s561
      %p568 = scmp.eq.s32.totalorder %s79, 1
      %p569 = por %p567, %p568
      %p570 = scmp.ne.s32.totalorder %s561, %s562
      %p571 = scmp.eq.s32.totalorder %s79, 0
      %p572 = por %p570, %p571
      %p573 = scmp.ne.s32.totalorder %s561, %s562
      %p574 = scmp.eq.s32.totalorder %s80, 1
      %p575 = por %p573, %p574
      %p577 = scmp.ne.s32.totalorder %s562, %s576
      %p578 = scmp.eq.s32.totalorder %s80, 0
      %p579 = por %p577, %p578
      %s581 = sadd.s32 %s580, 1
      %p584 = scmp.eq.s32.totalorder %s74, 1
      %p585 = scmp.ne.s32.totalorder %s580, %s582
      %p586 = scmp.eq.s32.totalorder %s74, 0
      %p587 = por %p585, %p586
      %p588 = scmp.ne.s32.totalorder %s580, %s582
      %p589 = scmp.eq.s32.totalorder %s79, 1
      %p590 = por %p588, %p589
      %p591 = scmp.ne.s32.totalorder %s582, %s583
      %p592 = scmp.eq.s32.totalorder %s79, 0
      %p593 = por %p591, %p592
      %p594 = scmp.ne.s32.totalorder %s582, %s583
      %p595 = scmp.eq.s32.totalorder %s80, 1
      %p596 = por %p594, %p595
      %p598 = scmp.ne.s32.totalorder %s583, %s597
      %p599 = scmp.eq.s32.totalorder %s80, 0
      %p600 = por %p598, %p599
      %s602 = sadd.s32 %s601, 1
      %p605 = scmp.eq.s32.totalorder %s74, 1
      %p606 = scmp.ne.s32.totalorder %s601, %s603
      %p607 = scmp.eq.s32.totalorder %s74, 0
      %p608 = por %p606, %p607
      %p609 = scmp.ne.s32.totalorder %s601, %s603
      %p610 = scmp.eq.s32.totalorder %s79, 1
      %p611 = por %p609, %p610
      %p612 = scmp.ne.s32.totalorder %s603, %s604
      %p613 = scmp.eq.s32.totalorder %s79, 0
      %p614 = por %p612, %p613
      %p615 = scmp.ne.s32.totalorder %s603, %s604
      %p616 = scmp.eq.s32.totalorder %s80, 1
      %p617 = por %p615, %p616
      %p619 = scmp.ne.s32.totalorder %s604, %s618
      %p620 = scmp.eq.s32.totalorder %s80, 0
      %p621 = por %p619, %p620
      %s623 = sadd.s32 %s622, 1
      %p626 = scmp.eq.s32.totalorder %s74, 1
      %p627 = scmp.ne.s32.totalorder %s622, %s624
      %p628 = scmp.eq.s32.totalorder %s74, 0
      %p629 = por %p627, %p628
      %p630 = scmp.ne.s32.totalorder %s622, %s624
      %p631 = scmp.eq.s32.totalorder %s79, 1
      %p632 = por %p630, %p631
      %p633 = scmp.ne.s32.totalorder %s624, %s625
      %p634 = scmp.eq.s32.totalorder %s79, 0
      %p635 = por %p633, %p634
      %p636 = scmp.ne.s32.totalorder %s624, %s625
      %p637 = scmp.eq.s32.totalorder %s80, 1
      %p638 = por %p636, %p637
      %p640 = scmp.ne.s32.totalorder %s625, %s639
      %p641 = scmp.eq.s32.totalorder %s80, 0
      %p642 = por %p640, %p641
      %s644 = sadd.s32 %s643, 1
      %p647 = scmp.eq.s32.totalorder %s74, 1
      %p648 = scmp.ne.s32.totalorder %s643, %s645
      %p649 = scmp.eq.s32.totalorder %s74, 0
      %p650 = por %p648, %p649
      %p651 = scmp.ne.s32.totalorder %s643, %s645
      %p652 = scmp.eq.s32.totalorder %s79, 1
      %p653 = por %p651, %p652
      %p654 = scmp.ne.s32.totalorder %s645, %s646
      %p655 = scmp.eq.s32.totalorder %s79, 0
      %p656 = por %p654, %p655
      %p657 = scmp.ne.s32.totalorder %s645, %s646
      %p658 = scmp.eq.s32.totalorder %s80, 1
      %p659 = por %p657, %p658
      %p661 = scmp.ne.s32.totalorder %s646, %s660
      %p662 = scmp.eq.s32.totalorder %s80, 0
      %p663 = por %p661, %p662
      %s665 = sadd.s32 %s664, 1
      %p668 = scmp.eq.s32.totalorder %s74, 1
      %p669 = scmp.ne.s32.totalorder %s664, %s666
      %p670 = scmp.eq.s32.totalorder %s74, 0
      %p671 = por %p669, %p670
      %p672 = scmp.ne.s32.totalorder %s664, %s666
      %p673 = scmp.eq.s32.totalorder %s79, 1
      %p674 = por %p672, %p673
      %p675 = scmp.ne.s32.totalorder %s666, %s667
      %p676 = scmp.eq.s32.totalorder %s79, 0
      %p677 = por %p675, %p676
      %p678 = scmp.ne.s32.totalorder %s666, %s667
      %p679 = scmp.eq.s32.totalorder %s80, 1
      %p680 = por %p678, %p679
      %p682 = scmp.ne.s32.totalorder %s667, %s681
      %p683 = scmp.eq.s32.totalorder %s80, 0
      %p684 = por %p682, %p683
      %s686 = sadd.s32 %s685, 1
      %p689 = scmp.eq.s32.totalorder %s74, 1
      %p690 = scmp.ne.s32.totalorder %s685, %s687
      %p691 = scmp.eq.s32.totalorder %s74, 0
      %p692 = por %p690, %p691
      %p693 = scmp.ne.s32.totalorder %s685, %s687
      %p694 = scmp.eq.s32.totalorder %s79, 1
      %p695 = por %p693, %p694
      %p696 = scmp.ne.s32.totalorder %s687, %s688
      %p697 = scmp.eq.s32.totalorder %s79, 0
      %p698 = por %p696, %p697
      %p699 = scmp.ne.s32.totalorder %s687, %s688
      %p700 = scmp.eq.s32.totalorder %s80, 1
      %p701 = por %p699, %p700
      %p703 = scmp.ne.s32.totalorder %s688, %s702
      %p704 = scmp.eq.s32.totalorder %s80, 0
      %p705 = por %p703, %p704
      %s706 = ssub.s32 %s74, %s81
      %p707 = scmp.eq.s32.totalorder %s706, 0
      %s709 = sadd.s32 %s708, 1
      %s710 = scalar_select %p707, %s708, %s709
      %p713 = pneg %p707
      %p714 = scmp.eq.s32.totalorder %s74, 1
      %p715 = por %p713, %p714
      %p716 = scmp.ne.s32.totalorder %s708, %s711
      %p717 = scmp.eq.s32.totalorder %s74, 0
      %p718 = por %p716, %p717
      %p719 = scmp.ne.s32.totalorder %s708, %s711
      %p720 = scmp.eq.s32.totalorder %s79, 1
      %p721 = por %p719, %p720
      %p722 = scmp.ne.s32.totalorder %s711, %s712
      %p723 = scmp.eq.s32.totalorder %s79, 0
      %p724 = por %p722, %p723
      %p725 = scmp.ne.s32.totalorder %s711, %s712
      %p726 = scmp.eq.s32.totalorder %s80, 1
      %p727 = por %p725, %p726
      %p729 = scmp.ne.s32.totalorder %s712, %s728
      %p730 = scmp.eq.s32.totalorder %s80, 0
      %p731 = por %p729, %p730
      %s732 = ssub.s32 %s74, %s81
      %p733 = scmp.eq.s32.totalorder %s732, 0
      %s735 = sadd.s32 %s734, 1
      %s736 = scalar_select %p733, %s734, %s735
      %p739 = pneg %p733
      %p740 = scmp.eq.s32.totalorder %s74, 1
      %p741 = por %p739, %p740
      %p742 = scmp.ne.s32.totalorder %s734, %s737
      %p743 = scmp.eq.s32.totalorder %s74, 0
      %p744 = por %p742, %p743
      %p745 = scmp.ne.s32.totalorder %s734, %s737
      %p746 = scmp.eq.s32.totalorder %s79, 1
      %p747 = por %p745, %p746
      %p748 = scmp.ne.s32.totalorder %s737, %s738
      %p749 = scmp.eq.s32.totalorder %s79, 0
      %p750 = por %p748, %p749
      %p751 = scmp.ne.s32.totalorder %s737, %s738
      %p752 = scmp.eq.s32.totalorder %s80, 1
      %p753 = por %p751, %p752
      %p755 = scmp.ne.s32.totalorder %s738, %s754
      %p756 = scmp.eq.s32.totalorder %s80, 0
      %p757 = por %p755, %p756
      %p758 = scmp.le.s32.totalorder 1, %s74
      %p759 = scmp.lt.s32.totalorder %s74, 3
      %p760 = pnand %p758, %p759
      %p761 = pneg %p760
      // Predicated region
      $region9: #{tpu_custom_call.1} parent=5 // pred_check
        _
      $region10: #{tpu_custom_call.1} parent=5 // pred_check_branch
        %763 = sbr.rel (%p760) target = $region12
      $region11: #{tpu_custom_call.1} parent=5 // pred_region
        %s764 = ssub.s32 %s74, 1
        // Predicated region
        $region13: #{tpu_custom_call.1} parent=11 // pred_check
          %p765 = pneg %p173
        $region14: #{tpu_custom_call.1} parent=11 // pred_check_branch
          %767 = sbr.rel (%p765) target = $region16
        $region15: #{tpu_custom_call.1} parent=11 // pred_region
          _
        $region16: #{tpu_custom_call.1} parent=11 // pred_fallthru
          _
        // Predicated region
        $region17: #{tpu_custom_call.1} parent=11 // pred_check
          %p768 = pneg %p194
        $region18: #{tpu_custom_call.1} parent=11 // pred_check_branch
          %770 = sbr.rel (%p768) target = $region20
        $region19: #{tpu_custom_call.1} parent=11 // pred_region
          _
        $region20: #{tpu_custom_call.1} parent=11 // pred_fallthru
          _
        // Predicated region
        $region21: #{tpu_custom_call.1} parent=11 // pred_check
          %p771 = pneg %p215
        $region22: #{tpu_custom_call.1} parent=11 // pred_check_branch
          %773 = sbr.rel (%p771) target = $region24
        $region23: #{tpu_custom_call.1} parent=11 // pred_region
          _
        $region24: #{tpu_custom_call.1} parent=11 // pred_fallthru
          _
        // Predicated region
        $region25: #{tpu_custom_call.1} parent=11 // pred_check
          %p774 = pneg %p236
        $region26: #{tpu_custom_call.1} parent=11 // pred_check_branch
          %776 = sbr.rel (%p774) target = $region28
        $region27: #{tpu_custom_call.1} parent=11 // pred_region
          _
        $region28: #{tpu_custom_call.1} parent=11 // pred_fallthru
          _
        // Predicated region
        $region29: #{tpu_custom_call.1} parent=11 // pred_check
          %p777 = pneg %p257
        $region30: #{tpu_custom_call.1} parent=11 // pred_check_branch
          %779 = sbr.rel (%p777) target = $region32
        $region31: #{tpu_custom_call.1} parent=11 // pred_region
          _
        $region32: #{tpu_custom_call.1} parent=11 // pred_fallthru
          _
        // Predicated region
        $region33: #{tpu_custom_call.1} parent=11 // pred_check
          %p780 = pneg %p278
        $region34: #{tpu_custom_call.1} parent=11 // pred_check_branch
          %782 = sbr.rel (%p780) target = $region36
        $region35: #{tpu_custom_call.1} parent=11 // pred_region
          _
        $region36: #{tpu_custom_call.1} parent=11 // pred_fallthru
          _
        // Predicated region
        $region37: #{tpu_custom_call.1} parent=11 // pred_check
          %p783 = pneg %p299
        $region38: #{tpu_custom_call.1} parent=11 // pred_check_branch
          %785 = sbr.rel (%p783) target = $region40
        $region39: #{tpu_custom_call.1} parent=11 // pred_region
          _
        $region40: #{tpu_custom_call.1} parent=11 // pred_fallthru
          _
        // Predicated region
        $region41: #{tpu_custom_call.1} parent=11 // pred_check
          %p786 = pneg %p320
        $region42: #{tpu_custom_call.1} parent=11 // pred_check_branch
          %788 = sbr.rel (%p786) target = $region44
        $region43: #{tpu_custom_call.1} parent=11 // pred_region
          _
        $region44: #{tpu_custom_call.1} parent=11 // pred_fallthru
          _
        // Predicated region
        $region45: #{tpu_custom_call.1} parent=11 // pred_check
          %p789 = pneg %p341
        $region46: #{tpu_custom_call.1} parent=11 // pred_check_branch
          %791 = sbr.rel (%p789) target = $region48
        $region47: #{tpu_custom_call.1} parent=11 // pred_region
          _
        $region48: #{tpu_custom_call.1} parent=11 // pred_fallthru
          _
        // Predicated region
        $region49: #{tpu_custom_call.1} parent=11 // pred_check
          %p792 = pneg %p362
        $region50: #{tpu_custom_call.1} parent=11 // pred_check_branch
          %794 = sbr.rel (%p792) target = $region52
        $region51: #{tpu_custom_call.1} parent=11 // pred_region
          _
        $region52: #{tpu_custom_call.1} parent=11 // pred_fallthru
          _
        // Predicated region
        $region53: #{tpu_custom_call.1} parent=11 // pred_check
          %p795 = pneg %p383
        $region54: #{tpu_custom_call.1} parent=11 // pred_check_branch
          %797 = sbr.rel (%p795) target = $region56
        $region55: #{tpu_custom_call.1} parent=11 // pred_region
          _
        $region56: #{tpu_custom_call.1} parent=11 // pred_fallthru
          _
        // Predicated region
        $region57: #{tpu_custom_call.1} parent=11 // pred_check
          %p798 = pneg %p404
        $region58: #{tpu_custom_call.1} parent=11 // pred_check_branch
          %800 = sbr.rel (%p798) target = $region60
        $region59: #{tpu_custom_call.1} parent=11 // pred_region
          _
        $region60: #{tpu_custom_call.1} parent=11 // pred_fallthru
          _
        // Predicated region
        $region61: #{tpu_custom_call.1} parent=11 // pred_check
          %p801 = pneg %p425
        $region62: #{tpu_custom_call.1} parent=11 // pred_check_branch
          %803 = sbr.rel (%p801) target = $region64
        $region63: #{tpu_custom_call.1} parent=11 // pred_region
          _
        $region64: #{tpu_custom_call.1} parent=11 // pred_fallthru
          _
        // Predicated region
        $region65: #{tpu_custom_call.1} parent=11 // pred_check
          %p804 = pneg %p446
        $region66: #{tpu_custom_call.1} parent=11 // pred_check_branch
          %806 = sbr.rel (%p804) target = $region68
        $region67: #{tpu_custom_call.1} parent=11 // pred_region
          _
        $region68: #{tpu_custom_call.1} parent=11 // pred_fallthru
          _
        // Predicated region
        $region69: #{tpu_custom_call.1} parent=11 // pred_check
          %p807 = pneg %p467
        $region70: #{tpu_custom_call.1} parent=11 // pred_check_branch
          %809 = sbr.rel (%p807) target = $region72
        $region71: #{tpu_custom_call.1} parent=11 // pred_region
          _
        $region72: #{tpu_custom_call.1} parent=11 // pred_fallthru
          _
        // Predicated region
        $region73: #{tpu_custom_call.1} parent=11 // pred_check
          %p810 = pneg %p488
        $region74: #{tpu_custom_call.1} parent=11 // pred_check_branch
          %812 = sbr.rel (%p810) target = $region76
        $region75: #{tpu_custom_call.1} parent=11 // pred_region
          _
        $region76: #{tpu_custom_call.1} parent=11 // pred_fallthru
          _
        // Predicated region
        $region77: #{tpu_custom_call.1} parent=11 // pred_check
          %p813 = pneg %p509
        $region78: #{tpu_custom_call.1} parent=11 // pred_check_branch
          %815 = sbr.rel (%p813) target = $region80
        $region79: #{tpu_custom_call.1} parent=11 // pred_region
          _
        $region80: #{tpu_custom_call.1} parent=11 // pred_fallthru
          _
        // Predicated region
        $region81: #{tpu_custom_call.1} parent=11 // pred_check
          %p816 = pneg %p530
        $region82: #{tpu_custom_call.1} parent=11 // pred_check_branch
          %818 = sbr.rel (%p816) target = $region84
        $region83: #{tpu_custom_call.1} parent=11 // pred_region
          _
        $region84: #{tpu_custom_call.1} parent=11 // pred_fallthru
          _
        // Predicated region
        $region85: #{tpu_custom_call.1} parent=11 // pred_check
          %p819 = pneg %p551
        $region86: #{tpu_custom_call.1} parent=11 // pred_check_branch
          %821 = sbr.rel (%p819) target = $region88
        $region87: #{tpu_custom_call.1} parent=11 // pred_region
          _
        $region88: #{tpu_custom_call.1} parent=11 // pred_fallthru
          _
        // Predicated region
        $region89: #{tpu_custom_call.1} parent=11 // pred_check
          %p822 = pneg %p572
        $region90: #{tpu_custom_call.1} parent=11 // pred_check_branch
          %824 = sbr.rel (%p822) target = $region92
        $region91: #{tpu_custom_call.1} parent=11 // pred_region
          _
        $region92: #{tpu_custom_call.1} parent=11 // pred_fallthru
          _
        // Predicated region
        $region93: #{tpu_custom_call.1} parent=11 // pred_check
          %p825 = pneg %p593
        $region94: #{tpu_custom_call.1} parent=11 // pred_check_branch
          %827 = sbr.rel (%p825) target = $region96
        $region95: #{tpu_custom_call.1} parent=11 // pred_region
          _
        $region96: #{tpu_custom_call.1} parent=11 // pred_fallthru
          _
        // Predicated region
        $region97: #{tpu_custom_call.1} parent=11 // pred_check
          %p828 = pneg %p614
        $region98: #{tpu_custom_call.1} parent=11 // pred_check_branch
          %830 = sbr.rel (%p828) target = $region100
        $region99: #{tpu_custom_call.1} parent=11 // pred_region
          _
        $region100: #{tpu_custom_call.1} parent=11 // pred_fallthru
          _
        // Predicated region
        $region101: #{tpu_custom_call.1} parent=11 // pred_check
          %p831 = pneg %p635
        $region102: #{tpu_custom_call.1} parent=11 // pred_check_branch
          %833 = sbr.rel (%p831) target = $region104
        $region103: #{tpu_custom_call.1} parent=11 // pred_region
          _
        $region104: #{tpu_custom_call.1} parent=11 // pred_fallthru
          _
        // Predicated region
        $region105: #{tpu_custom_call.1} parent=11 // pred_check
          %p834 = pneg %p656
        $region106: #{tpu_custom_call.1} parent=11 // pred_check_branch
          %836 = sbr.rel (%p834) target = $region108
        $region107: #{tpu_custom_call.1} parent=11 // pred_region
          _
        $region108: #{tpu_custom_call.1} parent=11 // pred_fallthru
          _
        // Predicated region
        $region109: #{tpu_custom_call.1} parent=11 // pred_check
          %p837 = pneg %p677
        $region110: #{tpu_custom_call.1} parent=11 // pred_check_branch
          %839 = sbr.rel (%p837) target = $region112
        $region111: #{tpu_custom_call.1} parent=11 // pred_region
          _
        $region112: #{tpu_custom_call.1} parent=11 // pred_fallthru
          _
        // Predicated region
        $region113: #{tpu_custom_call.1} parent=11 // pred_check
          %p840 = pneg %p698
        $region114: #{tpu_custom_call.1} parent=11 // pred_check_branch
          %842 = sbr.rel (%p840) target = $region116
        $region115: #{tpu_custom_call.1} parent=11 // pred_region
          _
        $region116: #{tpu_custom_call.1} parent=11 // pred_fallthru
          _
      $region12: #{tpu_custom_call.1} parent=5 // pred_fallthru
        _
      %p843 = scmp.lt.s32.totalorder %s74, 2
      // Predicated region
      $region117: #{tpu_custom_call.1} parent=5 // pred_check
        %p844 = pneg %p843
      $region118: #{tpu_custom_call.1} parent=5 // pred_check_branch
        %846 = sbr.rel (%p844) target = $region120
      $region119: #{tpu_custom_call.1} parent=5 // pred_region
        // Predicated region
        $region121: #{tpu_custom_call.1} parent=119 // pred_check
          %p847 = pneg %p94
        $region122: #{tpu_custom_call.1} parent=119 // pred_check_branch
          %849 = sbr.rel (%p847) target = $region124
        $region123: #{tpu_custom_call.1} parent=119 // pred_region
          %p850 = scmp.lt.s32.totalorder %s74, 1
          %s851 = scalar_select %p850, %s74, 1
          %s852 = smul.addr %s851, 8
          %s853 = scalar_lea.vmem %s1, %s852
        $region124: #{tpu_custom_call.1} parent=119 // pred_fallthru
          _
        // Predicated region
        $region125: #{tpu_custom_call.1} parent=119 // pred_check
          %p854 = pneg %p120
        $region126: #{tpu_custom_call.1} parent=119 // pred_check_branch
          %856 = sbr.rel (%p854) target = $region128
        $region127: #{tpu_custom_call.1} parent=119 // pred_region
          %p857 = scmp.lt.s32.totalorder %s74, 1
          %s858 = scalar_select %p857, %s74, 1
          %s859 = scalar_lea.vmem %s3, %s858
        $region128: #{tpu_custom_call.1} parent=119 // pred_fallthru
          _
        // Predicated region
        $region129: #{tpu_custom_call.1} parent=119 // pred_check
          %p860 = pneg %p146
        $region130: #{tpu_custom_call.1} parent=119 // pred_check_branch
          %862 = sbr.rel (%p860) target = $region132
        $region131: #{tpu_custom_call.1} parent=119 // pred_region
          %p863 = scmp.lt.s32.totalorder %s74, 1
          %s864 = scalar_select %p863, %s74, 1
          %s865 = scalar_lea.vmem %s5, %s864
        $region132: #{tpu_custom_call.1} parent=119 // pred_fallthru
          _
      $region120: #{tpu_custom_call.1} parent=5 // pred_fallthru
        _
      %p866 = scmp.le.s32.totalorder 1, %s74
      %p867 = scmp.lt.s32.totalorder %s74, 3
      %p868 = pnand %p866, %p867
      %p869 = pneg %p868
      // Predicated region
      $region133: #{tpu_custom_call.1} parent=5 // pred_check
        _
      $region134: #{tpu_custom_call.1} parent=5 // pred_check_branch
        %871 = sbr.rel (%p868) target = $region136
      $region135: #{tpu_custom_call.1} parent=5 // pred_region
        %s872 = ssub.s32 %s74, 1
        %p873 = scmp.lt.s32.totalorder %s79, 1
        %s874 = scalar_select %p873, %s79, 1
        %s875 = smul.addr %s874, 8
        %s876 = scalar_lea.vmem %s1, %s875
        %p877 = pneg %p100
        %p878 = pneg %p97
        %p879 = scmp.lt.s32.totalorder %s79, 1
        %s880 = scalar_select %p879, %s79, 1
        %s881 = scalar_lea.vmem %s3, %s880
        %p882 = pneg %p126
        %p883 = pneg %p123
        %p884 = scmp.lt.s32.totalorder %s79, 1
        %s885 = scalar_select %p884, %s79, 1
        %s886 = scalar_lea.vmem %s5, %s885
        %p887 = pneg %p152
        %p888 = pneg %p149
        %p889 = pneg %p173
        %p890 = pneg %p170
        %p891 = pneg %p194
        %p892 = pneg %p191
        %p893 = pneg %p215
        %p894 = pneg %p212
        %p895 = pneg %p236
        %p896 = pneg %p233
        %p897 = pneg %p257
        %p898 = pneg %p254
        %p899 = pneg %p278
        %p900 = pneg %p275
        %p901 = pneg %p299
        %p902 = pneg %p296
        %p903 = pneg %p320
        %p904 = pneg %p317
        %p905 = pneg %p341
        %p906 = pneg %p338
        %p907 = pneg %p362
        %p908 = pneg %p359
        %p909 = pneg %p383
        %p910 = pneg %p380
        %p911 = pneg %p404
        %p912 = pneg %p401
        %p913 = pneg %p425
        %p914 = pneg %p422
        %p915 = pneg %p446
        %p916 = pneg %p443
        %p917 = pneg %p467
        %p918 = pneg %p464
        %p919 = pneg %p488
        %p920 = pneg %p485
        %p921 = pneg %p509
        %p922 = pneg %p506
        %p923 = pneg %p530
        %p924 = pneg %p527
        %p925 = pneg %p551
        %p926 = pneg %p548
        %p927 = pneg %p572
        %p928 = pneg %p569
        %p929 = pneg %p593
        %p930 = pneg %p590
        %p931 = pneg %p614
        %p932 = pneg %p611
        %p933 = pneg %p635
        %p934 = pneg %p632
        %p935 = pneg %p656
        %p936 = pneg %p653
        %p937 = pneg %p677
        %p938 = pneg %p674
        %p939 = pneg %p698
        %p940 = pneg %p695
        %p941 = pneg %p724
        %p942 = pneg %p721
        %s943 = sand.u32 %s711, 1
        %s944 = scalar_lea.sflag [#allocation3], %s943
        %s945 = sand.u32 %s711, 1
        %s946 = smul.addr %s945, 16
        %s947 = scalar_lea.vmem [#allocation2], %s946
        %p948 = pneg %p750
        %p949 = pneg %p747
        %s950 = sand.u32 %s737, 1
        %s951 = scalar_lea.sflag [#allocation5], %s950
        %s952 = sand.u32 %s737, 1
        %s953 = smul.addr %s952, 16
        %s954 = scalar_lea.vmem [#allocation4], %s953
        %p955 = scmp.lt.s32.totalorder %s79, 1
        %s956 = scalar_select %p955, %s79, 1
        %s957 = smul.addr %s956, 8
        %s958 = scalar_lea.vmem %s1, %s957
        %p959 = scmp.lt.s32.totalorder %s79, 1
        %s960 = scalar_select %p959, %s79, 1
        %s961 = scalar_lea.vmem %s3, %s960
        %p962 = scmp.lt.s32.totalorder %s79, 1
        %s963 = scalar_select %p962, %s79, 1
        %s964 = scalar_lea.vmem %s5, %s963
        %v965 = vld [vmem:[%s958] sm:$0xff]
        %v966 = vld [vmem:[%s961] sm:$0x1]
        %v968 = vlaneseq
        %v969 = vshrl.u32 %v968, 7
        %v970 = vsub.s32 0, %v969
        %v971 = vrot.slane %v966, %v970
        %v973 = vadd.f32 %v965, %v971
        %v974 = vld [vmem:[%s964] sm:$0x1]
        %v975 = vld [vmem:[%s7] sm:$0xff]
        %v976 = vld [vmem:[%s7 + $0x8] sm:$0xff]
        %v977 = vld [vmem:[%s7 + $0x10] sm:$0xff]
        %v978 = vld [vmem:[%s7 + $0x18] sm:$0xff]
        %v979 = vld [vmem:[%s7 + $0x20] sm:$0xff]
        %v980 = vld [vmem:[%s7 + $0x28] sm:$0xff]
        %v981 = vld [vmem:[%s7 + $0x30] sm:$0xff]
        %v982 = vld [vmem:[%s7 + $0x38] sm:$0xff]
        %v983 = vld [vmem:[%s7 + $0x40] sm:$0xff]
        %v984 = vld [vmem:[%s7 + $0x48] sm:$0xff]
        %v985 = vld [vmem:[%s7 + $0x50] sm:$0xff]
        %v986 = vld [vmem:[%s7 + $0x58] sm:$0xff]
        %v987 = vld [vmem:[%s9] sm:$0xff]
        %v988 = vld [vmem:[%s9 + $0x8] sm:$0xff]
        %v989 = vld [vmem:[%s9 + $0x10] sm:$0xff]
        %v990 = vld [vmem:[%s9 + $0x18] sm:$0xff]
        %v991 = vld [vmem:[%s9 + $0x20] sm:$0xff]
        %v992 = vld [vmem:[%s9 + $0x28] sm:$0xff]
        %v993 = vld [vmem:[%s9 + $0x30] sm:$0xff]
        %v994 = vld [vmem:[%s9 + $0x38] sm:$0xff]
        %v995 = vld [vmem:[%s9 + $0x40] sm:$0xff]
        %v996 = vld [vmem:[%s9 + $0x48] sm:$0xff]
        %v997 = vld [vmem:[%s9 + $0x50] sm:$0xff]
        %v998 = vld [vmem:[%s9 + $0x58] sm:$0xff]
        %1000 = vset.pattern.permute.xlu0 0
        %1001 = vperm.xlu0 %1000, %v987
        %v1002 = vpop.permute.xlu0 %1001
        %1005 = vset.pattern.permute.xlu0 0
        %1006 = vperm.xlu0 %1005, %v988
        %v1007 = vpop.permute.xlu0 %1006
        %1010 = vset.pattern.permute.xlu0 0
        %1011 = vperm.xlu0 %1010, %v989
        %v1012 = vpop.permute.xlu0 %1011
        %1015 = vset.pattern.permute.xlu0 0
        %1016 = vperm.xlu0 %1015, %v990
        %v1017 = vpop.permute.xlu0 %1016
        %1020 = vset.pattern.permute.xlu0 0
        %1021 = vperm.xlu0 %1020, %v991
        %v1022 = vpop.permute.xlu0 %1021
        %1025 = vset.pattern.permute.xlu0 0
        %1026 = vperm.xlu0 %1025, %v992
        %v1027 = vpop.permute.xlu0 %1026
        %1030 = vset.pattern.permute.xlu0 0
        %1031 = vperm.xlu0 %1030, %v993
        %v1032 = vpop.permute.xlu0 %1031
        %1035 = vset.pattern.permute.xlu0 0
        %1036 = vperm.xlu0 %1035, %v994
        %v1037 = vpop.permute.xlu0 %1036
        %1040 = vset.pattern.permute.xlu0 0
        %1041 = vperm.xlu0 %1040, %v995
        %v1042 = vpop.permute.xlu0 %1041
        %1045 = vset.pattern.permute.xlu0 0
        %1046 = vperm.xlu0 %1045, %v996
        %v1047 = vpop.permute.xlu0 %1046
        %1050 = vset.pattern.permute.xlu0 0
        %1051 = vperm.xlu0 %1050, %v997
        %v1052 = vpop.permute.xlu0 %1051
        %1055 = vset.pattern.permute.xlu0 0
        %1056 = vperm.xlu0 %1055, %v998
        %v1057 = vpop.permute.xlu0 %1056
        %vm1059 = vcmask 261120
        %v1061 = vsel %vm1059, %v975, 0
        %v1064 = vsel %vm1059, %v976, 0
        %v1067 = vsel %vm1059, %v977, 0
        %v1070 = vsel %vm1059, %v978, 0
        %v1073 = vsel %vm1059, %v979, 0
        %v1076 = vsel %vm1059, %v980, 0
        %v1079 = vsel %vm1059, %v981, 0
        %v1082 = vsel %vm1059, %v982, 0
        %v1085 = vsel %vm1059, %v983, 0
        %v1088 = vsel %vm1059, %v984, 0
        %v1091 = vsel %vm1059, %v985, 0
        %v1094 = vsel %vm1059, %v986, 0
        %v1097 = vsel %vm1059, %v973, 0
        %1099 = vmatprep.subr.mxu0 0.0
        %1100 = vmatpush1.xpose.msra.mxu0 0.0
        %1101 = vmatprep.subr.mxu0 0.0
        %1102 = vmatpush1.xpose.msra.mxu0 0.0
        %1103 = vmatprep.subr.mxu0 0.0
        %1104 = vmatpush1.xpose.msra.mxu0 0.0
        %1105 = vmatprep.subr.mxu0 0.0
        %1106 = vmatpush1.xpose.msra.mxu0 0.0
        %1107 = vmatprep.subr.mxu0 0.0
        %1108 = vmatpush1.xpose.msra.mxu0 0.0
        %1109 = vmatprep.subr.mxu0 0.0
        %1110 = vmatpush1.xpose.msra.mxu0 0.0
        %1111 = vmatprep.subr.mxu0 0.0
        %1112 = vmatpush1.xpose.msra.mxu0 0.0
        %1113 = vmatprep.subr.mxu0 0.0
        %1114 = vmatpush1.xpose.msra.mxu0 0.0
        %1115 = vmatprep.subr.mxu0 0.0
        %1116 = vmatpush1.xpose.msra.mxu0 0.0
        %1117 = vmatprep.subr.mxu0 0.0
        %1118 = vmatpush1.xpose.msra.mxu0 0.0
        %1119 = vmatprep.subr.mxu0 0.0
        %1120 = vmatpush1.xpose.msra.mxu0 0.0
        %1121 = vmatprep.subr.mxu0 0.0
        %1122 = vmatpush1.xpose.msra.mxu0 0.0
        %1123 = vmatprep.subr.mxu0 0.0
        %1124 = vmatpush1.xpose.msra.mxu0 0.0
        %1125 = vmatprep.subr.mxu0 0.0
        %1126 = vmatpush1.xpose.msra.mxu0 0.0
        %1127 = vmatprep.subr.mxu0 0.0
        %1128 = vmatpush1.xpose.msra.mxu0 0.0
        %1129 = vmatprep.subr.mxu0 0.0
        %1130 = vmatpush1.xpose.msra.mxu0 %v1097
        %1131 = vmatprep.subr.mxu0 0.0
        %1132 = vmatpush2.xpose.msra.mxu0 0.0
        %1133 = vmatprep.subr.mxu0 0.0
        %1134 = vmatpush2.xpose.msra.mxu0 0.0
        %1135 = vmatprep.subr.mxu0 0.0
        %1136 = vmatpush2.xpose.msra.mxu0 0.0
        %1137 = vmatprep.subr.mxu0 0.0
        %1138 = vmatpush2.xpose.msra.mxu0 0.0
        %1139 = vmatprep.subr.mxu0 0.0
        %1140 = vmatpush2.xpose.msra.mxu0 0.0
        %1141 = vmatprep.subr.mxu0 0.0
        %1142 = vmatpush2.xpose.msra.mxu0 0.0
        %1143 = vmatprep.subr.mxu0 0.0
        %1144 = vmatpush2.xpose.msra.mxu0 0.0
        %1145 = vmatprep.subr.mxu0 0.0
        %1146 = vmatpush2.xpose.msra.mxu0 0.0
        %1147 = vmatprep.subr.mxu0 0.0
        %1148 = vmatpush2.xpose.msra.mxu0 0.0
        %1149 = vmatprep.subr.mxu0 0.0
        %1150 = vmatpush2.xpose.msra.mxu0 0.0
        %1151 = vmatprep.subr.mxu0 0.0
        %1152 = vmatpush2.xpose.msra.mxu0 0.0
        %1153 = vmatprep.subr.mxu0 0.0
        %1154 = vmatpush2.xpose.msra.mxu0 0.0
        %1155 = vmatprep.subr.mxu0 0.0
        %1156 = vmatpush2.xpose.msra.mxu0 0.0
        %1157 = vmatprep.subr.mxu0 0.0
        %1158 = vmatpush2.xpose.msra.mxu0 0.0
        %1159 = vmatprep.subr.mxu0 0.0
        %1160 = vmatpush2.xpose.msra.mxu0 0.0
        %1161 = vmatprep.subr.mxu0 0.0
        %1162 = vmatpush2.xpose.msra.mxu0 0.0
        %1163 = vmatprep.mubr.f32.mxu0 0.0
        %1164 = vmatmul.mubr.f32.gmra.mxu0 %v1061
        %v1165 = vpop.f32.mrf.mxu0
        %v1166 = vadd.f32 %v1002, %v1165
        %v1167 = vpop.f32.mrf.mxu0
        %1168 = vmatprep.mubr.f32.mxu0 0.0
        %1169 = vmatmul.mubr.f32.gmra.mxu0 %v1064
        %v1170 = vpop.f32.mrf.mxu0
        %v1171 = vadd.f32 %v1007, %v1170
        %v1172 = vpop.f32.mrf.mxu0
        %1173 = vmatprep.mubr.f32.mxu0 0.0
        %1174 = vmatmul.mubr.f32.gmra.mxu0 %v1067
        %v1175 = vpop.f32.mrf.mxu0
        %v1176 = vadd.f32 %v1012, %v1175
        %v1177 = vpop.f32.mrf.mxu0
        %1178 = vmatprep.mubr.f32.mxu0 0.0
        %1179 = vmatmul.mubr.f32.gmra.mxu0 %v1070
        %v1180 = vpop.f32.mrf.mxu0
        %v1181 = vadd.f32 %v1017, %v1180
        %v1182 = vpop.f32.mrf.mxu0
        %1183 = vmatprep.mubr.f32.mxu0 0.0
        %1184 = vmatmul.mubr.f32.gmra.mxu0 %v1073
        %v1185 = vpop.f32.mrf.mxu0
        %v1186 = vadd.f32 %v1022, %v1185
        %v1187 = vpop.f32.mrf.mxu0
        %1188 = vmatprep.mubr.f32.mxu0 0.0
        %1189 = vmatmul.mubr.f32.gmra.mxu0 %v1076
        %v1190 = vpop.f32.mrf.mxu0
        %v1191 = vadd.f32 %v1027, %v1190
        %v1192 = vpop.f32.mrf.mxu0
        %1193 = vmatprep.mubr.f32.mxu0 0.0
        %1194 = vmatmul.mubr.f32.gmra.mxu0 %v1079
        %v1195 = vpop.f32.mrf.mxu0
        %v1196 = vadd.f32 %v1032, %v1195
        %v1197 = vpop.f32.mrf.mxu0
        %1198 = vmatprep.mubr.f32.mxu0 0.0
        %1199 = vmatmul.mubr.f32.gmra.mxu0 %v1082
        %v1200 = vpop.f32.mrf.mxu0
        %v1201 = vadd.f32 %v1037, %v1200
        %v1202 = vpop.f32.mrf.mxu0
        %1203 = vmatprep.mubr.f32.mxu0 0.0
        %1204 = vmatmul.mubr.f32.gmra.mxu0 %v1085
        %v1205 = vpop.f32.mrf.mxu0
        %v1206 = vadd.f32 %v1042, %v1205
        %v1207 = vpop.f32.mrf.mxu0
        %1208 = vmatprep.mubr.f32.mxu0 0.0
        %1209 = vmatmul.mubr.f32.gmra.mxu0 %v1088
        %v1210 = vpop.f32.mrf.mxu0
        %v1211 = vadd.f32 %v1047, %v1210
        %v1212 = vpop.f32.mrf.mxu0
        %1213 = vmatprep.mubr.f32.mxu0 0.0
        %1214 = vmatmul.mubr.f32.gmra.mxu0 %v1091
        %v1215 = vpop.f32.mrf.mxu0
        %v1216 = vadd.f32 %v1052, %v1215
        %v1217 = vpop.f32.mrf.mxu0
        %1218 = vmatprep.mubr.f32.mxu0 0.0
        %1219 = vmatmul.mubr.f32.gmra.mxu0 %v1094
        %v1220 = vpop.f32.mrf.mxu0
        %v1221 = vadd.f32 %v1057, %v1220
        %v1222 = vpop.f32.mrf.mxu0
        %1223 = vdwg.mxu0
        %1224 = vxpose.xlu0.b32.start [1/16] %v1166, 128
        %1225 = vxpose.xlu0.b32.cont [2/16] 0.0, 128
        %1226 = vxpose.xlu0.b32.cont [3/16] 0.0, 128
        %1227 = vxpose.xlu0.b32.cont [4/16] 0.0, 128
        %1228 = vxpose.xlu0.b32.cont [5/16] 0.0, 128
        %1229 = vxpose.xlu0.b32.cont [6/16] 0.0, 128
        %1230 = vxpose.xlu0.b32.cont [7/16] 0.0, 128
        %1231 = vxpose.xlu0.b32.cont [8/16] 0.0, 128
        %1232 = vxpose.xlu0.b32.cont [9/16] 0.0, 128
        %1233 = vxpose.xlu0.b32.cont [10/16] 0.0, 128
        %1234 = vxpose.xlu0.b32.cont [11/16] 0.0, 128
        %1235 = vxpose.xlu0.b32.cont [12/16] 0.0, 128
        %1236 = vxpose.xlu0.b32.cont [13/16] 0.0, 128
        %1237 = vxpose.xlu0.b32.cont [14/16] 0.0, 128
        %1238 = vxpose.xlu0.b32.cont [15/16] 0.0, 128
        %1239 = vxpose.xlu0.b32.end [16/16] 0.0, 128
        %v1240 = vpop.trf.xlu0
        %v1241 = vpop.trf.xlu0
        %v1242 = vpop.trf.xlu0
        %v1243 = vpop.trf.xlu0
        %v1244 = vpop.trf.xlu0
        %v1245 = vpop.trf.xlu0
        %v1246 = vpop.trf.xlu0
        %v1247 = vpop.trf.xlu0
        %v1248 = vpop.trf.xlu0
        %v1249 = vpop.trf.xlu0
        %v1250 = vpop.trf.xlu0
        %v1251 = vpop.trf.xlu0
        %v1252 = vpop.trf.xlu0
        %v1253 = vpop.trf.xlu0
        %v1254 = vpop.trf.xlu0
        %v1255 = vpop.trf.xlu0
        %1256 = vxpose.xlu0.b32.start [1/16] %v1171, 128
        %1257 = vxpose.xlu0.b32.cont [2/16] 0.0, 128
        %1258 = vxpose.xlu0.b32.cont [3/16] 0.0, 128
        %1259 = vxpose.xlu0.b32.cont [4/16] 0.0, 128
        %1260 = vxpose.xlu0.b32.cont [5/16] 0.0, 128
        %1261 = vxpose.xlu0.b32.cont [6/16] 0.0, 128
        %1262 = vxpose.xlu0.b32.cont [7/16] 0.0, 128
        %1263 = vxpose.xlu0.b32.cont [8/16] 0.0, 128
        %1264 = vxpose.xlu0.b32.cont [9/16] 0.0, 128
        %1265 = vxpose.xlu0.b32.cont [10/16] 0.0, 128
        %1266 = vxpose.xlu0.b32.cont [11/16] 0.0, 128
        %1267 = vxpose.xlu0.b32.cont [12/16] 0.0, 128
        %1268 = vxpose.xlu0.b32.cont [13/16] 0.0, 128
        %1269 = vxpose.xlu0.b32.cont [14/16] 0.0, 128
        %1270 = vxpose.xlu0.b32.cont [15/16] 0.0, 128
        %1271 = vxpose.xlu0.b32.end [16/16] 0.0, 128
        %v1272 = vpop.trf.xlu0
        %v1273 = vpop.trf.xlu0
        %v1274 = vpop.trf.xlu0
        %v1275 = vpop.trf.xlu0
        %v1276 = vpop.trf.xlu0
        %v1277 = vpop.trf.xlu0
        %v1278 = vpop.trf.xlu0
        %v1279 = vpop.trf.xlu0
        %v1280 = vpop.trf.xlu0
        %v1281 = vpop.trf.xlu0
        %v1282 = vpop.trf.xlu0
        %v1283 = vpop.trf.xlu0
        %v1284 = vpop.trf.xlu0
        %v1285 = vpop.trf.xlu0
        %v1286 = vpop.trf.xlu0
        %v1287 = vpop.trf.xlu0
        %1288 = vxpose.xlu0.b32.start [1/16] %v1176, 128
        %1289 = vxpose.xlu0.b32.cont [2/16] 0.0, 128
        %1290 = vxpose.xlu0.b32.cont [3/16] 0.0, 128
        %1291 = vxpose.xlu0.b32.cont [4/16] 0.0, 128
        %1292 = vxpose.xlu0.b32.cont [5/16] 0.0, 128
        %1293 = vxpose.xlu0.b32.cont [6/16] 0.0, 128
        %1294 = vxpose.xlu0.b32.cont [7/16] 0.0, 128
        %1295 = vxpose.xlu0.b32.cont [8/16] 0.0, 128
        %1296 = vxpose.xlu0.b32.cont [9/16] 0.0, 128
        %1297 = vxpose.xlu0.b32.cont [10/16] 0.0, 128
        %1298 = vxpose.xlu0.b32.cont [11/16] 0.0, 128
        %1299 = vxpose.xlu0.b32.cont [12/16] 0.0, 128
        %1300 = vxpose.xlu0.b32.cont [13/16] 0.0, 128
        %1301 = vxpose.xlu0.b32.cont [14/16] 0.0, 128
        %1302 = vxpose.xlu0.b32.cont [15/16] 0.0, 128
        %1303 = vxpose.xlu0.b32.end [16/16] 0.0, 128
        %v1304 = vpop.trf.xlu0
        %v1305 = vpop.trf.xlu0
        %v1306 = vpop.trf.xlu0
        %v1307 = vpop.trf.xlu0
        %v1308 = vpop.trf.xlu0
        %v1309 = vpop.trf.xlu0
        %v1310 = vpop.trf.xlu0
        %v1311 = vpop.trf.xlu0
        %v1312 = vpop.trf.xlu0
        %v1313 = vpop.trf.xlu0
        %v1314 = vpop.trf.xlu0
        %v1315 = vpop.trf.xlu0
        %v1316 = vpop.trf.xlu0
        %v1317 = vpop.trf.xlu0
        %v1318 = vpop.trf.xlu0
        %v1319 = vpop.trf.xlu0
        %1320 = vxpose.xlu0.b32.start [1/16] %v1181, 128
        %1321 = vxpose.xlu0.b32.cont [2/16] 0.0, 128
        %1322 = vxpose.xlu0.b32.cont [3/16] 0.0, 128
        %1323 = vxpose.xlu0.b32.cont [4/16] 0.0, 128
        %1324 = vxpose.xlu0.b32.cont [5/16] 0.0, 128
        %1325 = vxpose.xlu0.b32.cont [6/16] 0.0, 128
        %1326 = vxpose.xlu0.b32.cont [7/16] 0.0, 128
        %1327 = vxpose.xlu0.b32.cont [8/16] 0.0, 128
        %1328 = vxpose.xlu0.b32.cont [9/16] 0.0, 128
        %1329 = vxpose.xlu0.b32.cont [10/16] 0.0, 128
        %1330 = vxpose.xlu0.b32.cont [11/16] 0.0, 128
        %1331 = vxpose.xlu0.b32.cont [12/16] 0.0, 128
        %1332 = vxpose.xlu0.b32.cont [13/16] 0.0, 128
        %1333 = vxpose.xlu0.b32.cont [14/16] 0.0, 128
        %1334 = vxpose.xlu0.b32.cont [15/16] 0.0, 128
        %1335 = vxpose.xlu0.b32.end [16/16] 0.0, 128
        %v1336 = vpop.trf.xlu0
        %v1337 = vpop.trf.xlu0
        %v1338 = vpop.trf.xlu0
        %v1339 = vpop.trf.xlu0
        %v1340 = vpop.trf.xlu0
        %v1341 = vpop.trf.xlu0
        %v1342 = vpop.trf.xlu0
        %v1343 = vpop.trf.xlu0
        %v1344 = vpop.trf.xlu0
        %v1345 = vpop.trf.xlu0
        %v1346 = vpop.trf.xlu0
        %v1347 = vpop.trf.xlu0
        %v1348 = vpop.trf.xlu0
        %v1349 = vpop.trf.xlu0
        %v1350 = vpop.trf.xlu0
        %v1351 = vpop.trf.xlu0
        %v1352 = vmul.f32 %v1240, 0.35355338
        %v1353 = vmul.f32 %v1272, 0.35355338
        %v1354 = vmul.f32 %v1304, 0.35355338
        %v1355 = vmul.f32 %v1336, 0.35355338
        %v1357 = vlaneseq
        %v1358 = vshrl.u32 %v1357, 7
        %v1359 = vsub.s32 0, %v1358
        %v1360 = vrot.slane %v974, %v1359
        %vm1362 = vcmask 64512
        %v1364 = vsel %vm1362, %v1352, 0
        %1366 = vmatprep.subr.mxu0 0.0
        %1367 = vmatpush1.msra.mxu0 0.0
        %1368 = vmatprep.subr.mxu0 0.0
        %1369 = vmatpush1.msra.mxu0 0.0
        %1370 = vmatprep.subr.mxu0 0.0
        %1371 = vmatpush1.msra.mxu0 0.0
        %1372 = vmatprep.subr.mxu0 0.0
        %1373 = vmatpush1.msra.mxu0 0.0
        %1374 = vmatprep.subr.mxu0 0.0
        %1375 = vmatpush1.msra.mxu0 0.0
        %1376 = vmatprep.subr.mxu0 0.0
        %1377 = vmatpush1.msra.mxu0 0.0
        %1378 = vmatprep.subr.mxu0 0.0
        %1379 = vmatpush1.msra.mxu0 0.0
        %1380 = vmatprep.subr.mxu0 0.0
        %1381 = vmatpush1.msra.mxu0 0.0
        %1382 = vmatprep.subr.mxu0 0.0
        %1383 = vmatpush1.msra.mxu0 0.0
        %1384 = vmatprep.subr.mxu0 0.0
        %1385 = vmatpush1.msra.mxu0 0.0
        %1386 = vmatprep.subr.mxu0 0.0
        %1387 = vmatpush1.msra.mxu0 0.0
        %1388 = vmatprep.subr.mxu0 0.0
        %1389 = vmatpush1.msra.mxu0 0.0
        %1390 = vmatprep.subr.mxu0 0.0
        %1391 = vmatpush1.msra.mxu0 0.0
        %1392 = vmatprep.subr.mxu0 0.0
        %1393 = vmatpush1.msra.mxu0 0.0
        %1394 = vmatprep.subr.mxu0 0.0
        %1395 = vmatpush1.msra.mxu0 0.0
        %1396 = vmatprep.subr.mxu0 0.0
        %1397 = vmatpush1.msra.mxu0 %v1186
        %1398 = vmatprep.subr.mxu0 0.0
        %1399 = vmatpush2.msra.mxu0 0.0
        %1400 = vmatprep.subr.mxu0 0.0
        %1401 = vmatpush2.msra.mxu0 0.0
        %1402 = vmatprep.subr.mxu0 0.0
        %1403 = vmatpush2.msra.mxu0 0.0
        %1404 = vmatprep.subr.mxu0 0.0
        %1405 = vmatpush2.msra.mxu0 0.0
        %1406 = vmatprep.subr.mxu0 0.0
        %1407 = vmatpush2.msra.mxu0 0.0
        %1408 = vmatprep.subr.mxu0 0.0
        %1409 = vmatpush2.msra.mxu0 0.0
        %1410 = vmatprep.subr.mxu0 0.0
        %1411 = vmatpush2.msra.mxu0 0.0
        %1412 = vmatprep.subr.mxu0 0.0
        %1413 = vmatpush2.msra.mxu0 0.0
        %1414 = vmatprep.subr.mxu0 0.0
        %1415 = vmatpush2.msra.mxu0 0.0
        %1416 = vmatprep.subr.mxu0 0.0
        %1417 = vmatpush2.msra.mxu0 0.0
        %1418 = vmatprep.subr.mxu0 0.0
        %1419 = vmatpush2.msra.mxu0 0.0
        %1420 = vmatprep.subr.mxu0 0.0
        %1421 = vmatpush2.msra.mxu0 0.0
        %1422 = vmatprep.subr.mxu0 0.0
        %1423 = vmatpush2.msra.mxu0 0.0
        %1424 = vmatprep.subr.mxu0 0.0
        %1425 = vmatpush2.msra.mxu0 0.0
        %1426 = vmatprep.subr.mxu0 0.0
        %1427 = vmatpush2.msra.mxu0 0.0
        %1428 = vmatprep.subr.mxu0 0.0
        %1429 = vmatpush2.msra.mxu0 0.0
        %1430 = vmatprep.mubr.f32.mxu0 0.0
        %1431 = vmatmul.mubr.f32.gmra.mxu0 %v1364
        %v1432 = vpop.f32.mrf.mxu0
        %v1433 = vadd.f32 %v1360, %v1432
        %v1434 = vpop.f32.mrf.mxu0
        %1435 = vdwg.mxu0
        %v1437 = vsel %vm1362, %v1353, 0
        %1439 = vmatprep.subr.mxu0 0.0
        %1440 = vmatpush1.msra.mxu0 0.0
        %1441 = vmatprep.subr.mxu0 0.0
        %1442 = vmatpush1.msra.mxu0 0.0
        %1443 = vmatprep.subr.mxu0 0.0
        %1444 = vmatpush1.msra.mxu0 0.0
        %1445 = vmatprep.subr.mxu0 0.0
        %1446 = vmatpush1.msra.mxu0 0.0
        %1447 = vmatprep.subr.mxu0 0.0
        %1448 = vmatpush1.msra.mxu0 0.0
        %1449 = vmatprep.subr.mxu0 0.0
        %1450 = vmatpush1.msra.mxu0 0.0
        %1451 = vmatprep.subr.mxu0 0.0
        %1452 = vmatpush1.msra.mxu0 0.0
        %1453 = vmatprep.subr.mxu0 0.0
        %1454 = vmatpush1.msra.mxu0 0.0
        %1455 = vmatprep.subr.mxu0 0.0
        %1456 = vmatpush1.msra.mxu0 0.0
        %1457 = vmatprep.subr.mxu0 0.0
        %1458 = vmatpush1.msra.mxu0 0.0
        %1459 = vmatprep.subr.mxu0 0.0
        %1460 = vmatpush1.msra.mxu0 0.0
        %1461 = vmatprep.subr.mxu0 0.0
        %1462 = vmatpush1.msra.mxu0 0.0
        %1463 = vmatprep.subr.mxu0 0.0
        %1464 = vmatpush1.msra.mxu0 0.0
        %1465 = vmatprep.subr.mxu0 0.0
        %1466 = vmatpush1.msra.mxu0 0.0
        %1467 = vmatprep.subr.mxu0 0.0
        %1468 = vmatpush1.msra.mxu0 0.0
        %1469 = vmatprep.subr.mxu0 0.0
        %1470 = vmatpush1.msra.mxu0 %v1191
        %1471 = vmatprep.subr.mxu0 0.0
        %1472 = vmatpush2.msra.mxu0 0.0
        %1473 = vmatprep.subr.mxu0 0.0
        %1474 = vmatpush2.msra.mxu0 0.0
        %1475 = vmatprep.subr.mxu0 0.0
        %1476 = vmatpush2.msra.mxu0 0.0
        %1477 = vmatprep.subr.mxu0 0.0
        %1478 = vmatpush2.msra.mxu0 0.0
        %1479 = vmatprep.subr.mxu0 0.0
        %1480 = vmatpush2.msra.mxu0 0.0
        %1481 = vmatprep.subr.mxu0 0.0
        %1482 = vmatpush2.msra.mxu0 0.0
        %1483 = vmatprep.subr.mxu0 0.0
        %1484 = vmatpush2.msra.mxu0 0.0
        %1485 = vmatprep.subr.mxu0 0.0
        %1486 = vmatpush2.msra.mxu0 0.0
        %1487 = vmatprep.subr.mxu0 0.0
        %1488 = vmatpush2.msra.mxu0 0.0
        %1489 = vmatprep.subr.mxu0 0.0
        %1490 = vmatpush2.msra.mxu0 0.0
        %1491 = vmatprep.subr.mxu0 0.0
        %1492 = vmatpush2.msra.mxu0 0.0
        %1493 = vmatprep.subr.mxu0 0.0
        %1494 = vmatpush2.msra.mxu0 0.0
        %1495 = vmatprep.subr.mxu0 0.0
        %1496 = vmatpush2.msra.mxu0 0.0
        %1497 = vmatprep.subr.mxu0 0.0
        %1498 = vmatpush2.msra.mxu0 0.0
        %1499 = vmatprep.subr.mxu0 0.0
        %1500 = vmatpush2.msra.mxu0 0.0
        %1501 = vmatprep.subr.mxu0 0.0
        %1502 = vmatpush2.msra.mxu0 0.0
        %1503 = vmatprep.mubr.f32.mxu0 0.0
        %1504 = vmatmul.mubr.f32.gmra.mxu0 %v1437
        %v1505 = vpop.f32.mrf.mxu0
        %v1506 = vadd.f32 %v1360, %v1505
        %v1507 = vpop.f32.mrf.mxu0
        %1508 = vdwg.mxu0
        %v1510 = vsel %vm1362, %v1354, 0
        %1512 = vmatprep.subr.mxu0 0.0
        %1513 = vmatpush1.msra.mxu0 0.0
        %1514 = vmatprep.subr.mxu0 0.0
        %1515 = vmatpush1.msra.mxu0 0.0
        %1516 = vmatprep.subr.mxu0 0.0
        %1517 = vmatpush1.msra.mxu0 0.0
        %1518 = vmatprep.subr.mxu0 0.0
        %1519 = vmatpush1.msra.mxu0 0.0
        %1520 = vmatprep.subr.mxu0 0.0
        %1521 = vmatpush1.msra.mxu0 0.0
        %1522 = vmatprep.subr.mxu0 0.0
        %1523 = vmatpush1.msra.mxu0 0.0
        %1524 = vmatprep.subr.mxu0 0.0
        %1525 = vmatpush1.msra.mxu0 0.0
        %1526 = vmatprep.subr.mxu0 0.0
        %1527 = vmatpush1.msra.mxu0 0.0
        %1528 = vmatprep.subr.mxu0 0.0
        %1529 = vmatpush1.msra.mxu0 0.0
        %1530 = vmatprep.subr.mxu0 0.0
        %1531 = vmatpush1.msra.mxu0 0.0
        %1532 = vmatprep.subr.mxu0 0.0
        %1533 = vmatpush1.msra.mxu0 0.0
        %1534 = vmatprep.subr.mxu0 0.0
        %1535 = vmatpush1.msra.mxu0 0.0
        %1536 = vmatprep.subr.mxu0 0.0
        %1537 = vmatpush1.msra.mxu0 0.0
        %1538 = vmatprep.subr.mxu0 0.0
        %1539 = vmatpush1.msra.mxu0 0.0
        %1540 = vmatprep.subr.mxu0 0.0
        %1541 = vmatpush1.msra.mxu0 0.0
        %1542 = vmatprep.subr.mxu0 0.0
        %1543 = vmatpush1.msra.mxu0 %v1196
        %1544 = vmatprep.subr.mxu0 0.0
        %1545 = vmatpush2.msra.mxu0 0.0
        %1546 = vmatprep.subr.mxu0 0.0
        %1547 = vmatpush2.msra.mxu0 0.0
        %1548 = vmatprep.subr.mxu0 0.0
        %1549 = vmatpush2.msra.mxu0 0.0
        %1550 = vmatprep.subr.mxu0 0.0
        %1551 = vmatpush2.msra.mxu0 0.0
        %1552 = vmatprep.subr.mxu0 0.0
        %1553 = vmatpush2.msra.mxu0 0.0
        %1554 = vmatprep.subr.mxu0 0.0
        %1555 = vmatpush2.msra.mxu0 0.0
        %1556 = vmatprep.subr.mxu0 0.0
        %1557 = vmatpush2.msra.mxu0 0.0
        %1558 = vmatprep.subr.mxu0 0.0
        %1559 = vmatpush2.msra.mxu0 0.0
        %1560 = vmatprep.subr.mxu0 0.0
        %1561 = vmatpush2.msra.mxu0 0.0
        %1562 = vmatprep.subr.mxu0 0.0
        %1563 = vmatpush2.msra.mxu0 0.0
        %1564 = vmatprep.subr.mxu0 0.0
        %1565 = vmatpush2.msra.mxu0 0.0
        %1566 = vmatprep.subr.mxu0 0.0
        %1567 = vmatpush2.msra.mxu0 0.0
        %1568 = vmatprep.subr.mxu0 0.0
        %1569 = vmatpush2.msra.mxu0 0.0
        %1570 = vmatprep.subr.mxu0 0.0
        %1571 = vmatpush2.msra.mxu0 0.0
        %1572 = vmatprep.subr.mxu0 0.0
        %1573 = vmatpush2.msra.mxu0 0.0
        %1574 = vmatprep.subr.mxu0 0.0
        %1575 = vmatpush2.msra.mxu0 0.0
        %1576 = vmatprep.mubr.f32.mxu0 0.0
        %1577 = vmatmul.mubr.f32.gmra.mxu0 %v1510
        %v1578 = vpop.f32.mrf.mxu0
        %v1579 = vadd.f32 %v1360, %v1578
        %v1580 = vpop.f32.mrf.mxu0
        %1581 = vdwg.mxu0
        %v1583 = vsel %vm1362, %v1355, 0
        %1585 = vmatprep.subr.mxu0 0.0
        %1586 = vmatpush1.msra.mxu0 0.0
        %1587 = vmatprep.subr.mxu0 0.0
        %1588 = vmatpush1.msra.mxu0 0.0
        %1589 = vmatprep.subr.mxu0 0.0
        %1590 = vmatpush1.msra.mxu0 0.0
        %1591 = vmatprep.subr.mxu0 0.0
        %1592 = vmatpush1.msra.mxu0 0.0
        %1593 = vmatprep.subr.mxu0 0.0
        %1594 = vmatpush1.msra.mxu0 0.0
        %1595 = vmatprep.subr.mxu0 0.0
        %1596 = vmatpush1.msra.mxu0 0.0
        %1597 = vmatprep.subr.mxu0 0.0
        %1598 = vmatpush1.msra.mxu0 0.0
        %1599 = vmatprep.subr.mxu0 0.0
        %1600 = vmatpush1.msra.mxu0 0.0
        %1601 = vmatprep.subr.mxu0 0.0
        %1602 = vmatpush1.msra.mxu0 0.0
        %1603 = vmatprep.subr.mxu0 0.0
        %1604 = vmatpush1.msra.mxu0 0.0
        %1605 = vmatprep.subr.mxu0 0.0
        %1606 = vmatpush1.msra.mxu0 0.0
        %1607 = vmatprep.subr.mxu0 0.0
        %1608 = vmatpush1.msra.mxu0 0.0
        %1609 = vmatprep.subr.mxu0 0.0
        %1610 = vmatpush1.msra.mxu0 0.0
        %1611 = vmatprep.subr.mxu0 0.0
        %1612 = vmatpush1.msra.mxu0 0.0
        %1613 = vmatprep.subr.mxu0 0.0
        %1614 = vmatpush1.msra.mxu0 0.0
        %1615 = vmatprep.subr.mxu0 0.0
        %1616 = vmatpush1.msra.mxu0 %v1201
        %1617 = vmatprep.subr.mxu0 0.0
        %1618 = vmatpush2.msra.mxu0 0.0
        %1619 = vmatprep.subr.mxu0 0.0
        %1620 = vmatpush2.msra.mxu0 0.0
        %1621 = vmatprep.subr.mxu0 0.0
        %1622 = vmatpush2.msra.mxu0 0.0
        %1623 = vmatprep.subr.mxu0 0.0
        %1624 = vmatpush2.msra.mxu0 0.0
        %1625 = vmatprep.subr.mxu0 0.0
        %1626 = vmatpush2.msra.mxu0 0.0
        %1627 = vmatprep.subr.mxu0 0.0
        %1628 = vmatpush2.msra.mxu0 0.0
        %1629 = vmatprep.subr.mxu0 0.0
        %1630 = vmatpush2.msra.mxu0 0.0
        %1631 = vmatprep.subr.mxu0 0.0
        %1632 = vmatpush2.msra.mxu0 0.0
        %1633 = vmatprep.subr.mxu0 0.0
        %1634 = vmatpush2.msra.mxu0 0.0
        %1635 = vmatprep.subr.mxu0 0.0
        %1636 = vmatpush2.msra.mxu0 0.0
        %1637 = vmatprep.subr.mxu0 0.0
        %1638 = vmatpush2.msra.mxu0 0.0
        %1639 = vmatprep.subr.mxu0 0.0
        %1640 = vmatpush2.msra.mxu0 0.0
        %1641 = vmatprep.subr.mxu0 0.0
        %1642 = vmatpush2.msra.mxu0 0.0
        %1643 = vmatprep.subr.mxu0 0.0
        %1644 = vmatpush2.msra.mxu0 0.0
        %1645 = vmatprep.subr.mxu0 0.0
        %1646 = vmatpush2.msra.mxu0 0.0
        %1647 = vmatprep.subr.mxu0 0.0
        %1648 = vmatpush2.msra.mxu0 0.0
        %1649 = vmatprep.mubr.f32.mxu0 0.0
        %1650 = vmatmul.mubr.f32.gmra.mxu0 %v1583
        %v1651 = vpop.f32.mrf.mxu0
        %v1652 = vadd.f32 %v1360, %v1651
        %v1653 = vpop.f32.mrf.mxu0
        %1654 = vdwg.mxu0
        %v1655 = vsel %vm1362, %v1433, -inf
        %1656 = vmax.xlane.f32.xlu0 %v1655
        %v1657 = vpop.xlane.xlu0 %1656
        %v1658 = vsel %vm1362, %v1506, -inf
        %1659 = vmax.xlane.f32.xlu0 %v1658
        %v1660 = vpop.xlane.xlu0 %1659
        %v1661 = vsel %vm1362, %v1579, -inf
        %1662 = vmax.xlane.f32.xlu0 %v1661
        %v1663 = vpop.xlane.xlu0 %1662
        %v1664 = vsel %vm1362, %v1652, -inf
        %1665 = vmax.xlane.f32.xlu0 %v1664
        %v1666 = vpop.xlane.xlu0 %1665
        %v1667 = vsub.f32 %v1433, %v1657
        %v1668 = vsub.f32 %v1506, %v1660
        %v1669 = vsub.f32 %v1579, %v1663
        %v1670 = vsub.f32 %v1652, %v1666
        %v1671 = vmul.f32 %v1667, 1.442695
        %v1672 = vpow.pop %v1671
        %v1673 = vmul.f32 %v1668, 1.442695
        %v1674 = vpow.pop %v1673
        %v1675 = vmul.f32 %v1669, 1.442695
        %v1676 = vpow.pop %v1675
        %v1677 = vmul.f32 %v1670, 1.442695
        %v1678 = vpow.pop %v1677
        %v1679 = vsel %vm1362, %v1672, 0.0
        %1680 = vadd.xlane.f32.xlu0 %v1679
        %v1681 = vpop.xlane.xlu0 %1680
        %v1682 = vsel %vm1362, %v1674, 0.0
        %1683 = vadd.xlane.f32.xlu0 %v1682
        %v1684 = vpop.xlane.xlu0 %1683
        %v1685 = vsel %vm1362, %v1676, 0.0
        %1686 = vadd.xlane.f32.xlu0 %v1685
        %v1687 = vpop.xlane.xlu0 %1686
        %v1688 = vsel %vm1362, %v1678, 0.0
        %1689 = vadd.xlane.f32.xlu0 %v1688
        %v1690 = vpop.xlane.xlu0 %1689
        %v1691 = vrcp.pop %v1681
        %v1692 = vrcp.pop %v1684
        %v1693 = vrcp.pop %v1687
        %v1694 = vrcp.pop %v1690
        %v1695 = vmul.f32 %v1672, %v1691
        %v1696 = vmul.f32 %v1674, %v1692
        %v1697 = vmul.f32 %v1676, %v1693
        %v1698 = vmul.f32 %v1678, %v1694
        %v1700 = vsel %vm1362, %v1206, 0
        %v1703 = vsel %vm1362, %v1695, 0
        %1705 = vmatprep.subr.mxu0 0.0
        %1706 = vmatpush1.xpose.msra.mxu0 0.0
        %1707 = vmatprep.subr.mxu0 0.0
        %1708 = vmatpush1.xpose.msra.mxu0 0.0
        %1709 = vmatprep.subr.mxu0 0.0
        %1710 = vmatpush1.xpose.msra.mxu0 0.0
        %1711 = vmatprep.subr.mxu0 0.0
        %1712 = vmatpush1.xpose.msra.mxu0 0.0
        %1713 = vmatprep.subr.mxu0 0.0
        %1714 = vmatpush1.xpose.msra.mxu0 0.0
        %1715 = vmatprep.subr.mxu0 0.0
        %1716 = vmatpush1.xpose.msra.mxu0 0.0
        %1717 = vmatprep.subr.mxu0 0.0
        %1718 = vmatpush1.xpose.msra.mxu0 0.0
        %1719 = vmatprep.subr.mxu0 0.0
        %1720 = vmatpush1.xpose.msra.mxu0 0.0
        %1721 = vmatprep.subr.mxu0 0.0
        %1722 = vmatpush1.xpose.msra.mxu0 0.0
        %1723 = vmatprep.subr.mxu0 0.0
        %1724 = vmatpush1.xpose.msra.mxu0 0.0
        %1725 = vmatprep.subr.mxu0 0.0
        %1726 = vmatpush1.xpose.msra.mxu0 0.0
        %1727 = vmatprep.subr.mxu0 0.0
        %1728 = vmatpush1.xpose.msra.mxu0 0.0
        %1729 = vmatprep.subr.mxu0 0.0
        %1730 = vmatpush1.xpose.msra.mxu0 0.0
        %1731 = vmatprep.subr.mxu0 0.0
        %1732 = vmatpush1.xpose.msra.mxu0 0.0
        %1733 = vmatprep.subr.mxu0 0.0
        %1734 = vmatpush1.xpose.msra.mxu0 0.0
        %1735 = vmatprep.subr.mxu0 0.0
        %1736 = vmatpush1.xpose.msra.mxu0 %v1703
        %1737 = vmatprep.subr.mxu0 0.0
        %1738 = vmatpush2.xpose.msra.mxu0 0.0
        %1739 = vmatprep.subr.mxu0 0.0
        %1740 = vmatpush2.xpose.msra.mxu0 0.0
        %1741 = vmatprep.subr.mxu0 0.0
        %1742 = vmatpush2.xpose.msra.mxu0 0.0
        %1743 = vmatprep.subr.mxu0 0.0
        %1744 = vmatpush2.xpose.msra.mxu0 0.0
        %1745 = vmatprep.subr.mxu0 0.0
        %1746 = vmatpush2.xpose.msra.mxu0 0.0
        %1747 = vmatprep.subr.mxu0 0.0
        %1748 = vmatpush2.xpose.msra.mxu0 0.0
        %1749 = vmatprep.subr.mxu0 0.0
        %1750 = vmatpush2.xpose.msra.mxu0 0.0
        %1751 = vmatprep.subr.mxu0 0.0
        %1752 = vmatpush2.xpose.msra.mxu0 0.0
        %1753 = vmatprep.subr.mxu0 0.0
        %1754 = vmatpush2.xpose.msra.mxu0 0.0
        %1755 = vmatprep.subr.mxu0 0.0
        %1756 = vmatpush2.xpose.msra.mxu0 0.0
        %1757 = vmatprep.subr.mxu0 0.0
        %1758 = vmatpush2.xpose.msra.mxu0 0.0
        %1759 = vmatprep.subr.mxu0 0.0
        %1760 = vmatpush2.xpose.msra.mxu0 0.0
        %1761 = vmatprep.subr.mxu0 0.0
        %1762 = vmatpush2.xpose.msra.mxu0 0.0
        %1763 = vmatprep.subr.mxu0 0.0
        %1764 = vmatpush2.xpose.msra.mxu0 0.0
        %1765 = vmatprep.subr.mxu0 0.0
        %1766 = vmatpush2.xpose.msra.mxu0 0.0
        %1767 = vmatprep.subr.mxu0 0.0
        %1768 = vmatpush2.xpose.msra.mxu0 0.0
        %1769 = vmatprep.mubr.f32.mxu0 0.0
        %1770 = vmatmul.mubr.f32.gmra.mxu0 %v1700
        %v1771 = vpop.f32.mrf.mxu0
        %v1772 = vadd.f32 0.0, %v1771
        %v1773 = vpop.f32.mrf.mxu0
        %1774 = vdwg.mxu0
        %v1776 = vsel %vm1362, %v1211, 0
        %v1779 = vsel %vm1362, %v1696, 0
        %1781 = vmatprep.subr.mxu0 0.0
        %1782 = vmatpush1.xpose.msra.mxu0 0.0
        %1783 = vmatprep.subr.mxu0 0.0
        %1784 = vmatpush1.xpose.msra.mxu0 0.0
        %1785 = vmatprep.subr.mxu0 0.0
        %1786 = vmatpush1.xpose.msra.mxu0 0.0
        %1787 = vmatprep.subr.mxu0 0.0
        %1788 = vmatpush1.xpose.msra.mxu0 0.0
        %1789 = vmatprep.subr.mxu0 0.0
        %1790 = vmatpush1.xpose.msra.mxu0 0.0
        %1791 = vmatprep.subr.mxu0 0.0
        %1792 = vmatpush1.xpose.msra.mxu0 0.0
        %1793 = vmatprep.subr.mxu0 0.0
        %1794 = vmatpush1.xpose.msra.mxu0 0.0
        %1795 = vmatprep.subr.mxu0 0.0
        %1796 = vmatpush1.xpose.msra.mxu0 0.0
        %1797 = vmatprep.subr.mxu0 0.0
        %1798 = vmatpush1.xpose.msra.mxu0 0.0
        %1799 = vmatprep.subr.mxu0 0.0
        %1800 = vmatpush1.xpose.msra.mxu0 0.0
        %1801 = vmatprep.subr.mxu0 0.0
        %1802 = vmatpush1.xpose.msra.mxu0 0.0
        %1803 = vmatprep.subr.mxu0 0.0
        %1804 = vmatpush1.xpose.msra.mxu0 0.0
        %1805 = vmatprep.subr.mxu0 0.0
        %1806 = vmatpush1.xpose.msra.mxu0 0.0
        %1807 = vmatprep.subr.mxu0 0.0
        %1808 = vmatpush1.xpose.msra.mxu0 0.0
        %1809 = vmatprep.subr.mxu0 0.0
        %1810 = vmatpush1.xpose.msra.mxu0 0.0
        %1811 = vmatprep.subr.mxu0 0.0
        %1812 = vmatpush1.xpose.msra.mxu0 %v1779
        %1813 = vmatprep.subr.mxu0 0.0
        %1814 = vmatpush2.xpose.msra.mxu0 0.0
        %1815 = vmatprep.subr.mxu0 0.0
        %1816 = vmatpush2.xpose.msra.mxu0 0.0
        %1817 = vmatprep.subr.mxu0 0.0
        %1818 = vmatpush2.xpose.msra.mxu0 0.0
        %1819 = vmatprep.subr.mxu0 0.0
        %1820 = vmatpush2.xpose.msra.mxu0 0.0
        %1821 = vmatprep.subr.mxu0 0.0
        %1822 = vmatpush2.xpose.msra.mxu0 0.0
        %1823 = vmatprep.subr.mxu0 0.0
        %1824 = vmatpush2.xpose.msra.mxu0 0.0
        %1825 = vmatprep.subr.mxu0 0.0
        %1826 = vmatpush2.xpose.msra.mxu0 0.0
        %1827 = vmatprep.subr.mxu0 0.0
        %1828 = vmatpush2.xpose.msra.mxu0 0.0
        %1829 = vmatprep.subr.mxu0 0.0
        %1830 = vmatpush2.xpose.msra.mxu0 0.0
        %1831 = vmatprep.subr.mxu0 0.0
        %1832 = vmatpush2.xpose.msra.mxu0 0.0
        %1833 = vmatprep.subr.mxu0 0.0
        %1834 = vmatpush2.xpose.msra.mxu0 0.0
        %1835 = vmatprep.subr.mxu0 0.0
        %1836 = vmatpush2.xpose.msra.mxu0 0.0
        %1837 = vmatprep.subr.mxu0 0.0
        %1838 = vmatpush2.xpose.msra.mxu0 0.0
        %1839 = vmatprep.subr.mxu0 0.0
        %1840 = vmatpush2.xpose.msra.mxu0 0.0
        %1841 = vmatprep.subr.mxu0 0.0
        %1842 = vmatpush2.xpose.msra.mxu0 0.0
        %1843 = vmatprep.subr.mxu0 0.0
        %1844 = vmatpush2.xpose.msra.mxu0 0.0
        %1845 = vmatprep.mubr.f32.mxu0 0.0
        %1846 = vmatmul.mubr.f32.gmra.mxu0 %v1776
        %v1847 = vpop.f32.mrf.mxu0
        %v1848 = vadd.f32 0.0, %v1847
        %v1849 = vpop.f32.mrf.mxu0
        %1850 = vdwg.mxu0
        %v1852 = vsel %vm1362, %v1216, 0
        %v1855 = vsel %vm1362, %v1697, 0
        %1857 = vmatprep.subr.mxu0 0.0
        %1858 = vmatpush1.xpose.msra.mxu0 0.0
        %1859 = vmatprep.subr.mxu0 0.0
        %1860 = vmatpush1.xpose.msra.mxu0 0.0
        %1861 = vmatprep.subr.mxu0 0.0
        %1862 = vmatpush1.xpose.msra.mxu0 0.0
        %1863 = vmatprep.subr.mxu0 0.0
        %1864 = vmatpush1.xpose.msra.mxu0 0.0
        %1865 = vmatprep.subr.mxu0 0.0
        %1866 = vmatpush1.xpose.msra.mxu0 0.0
        %1867 = vmatprep.subr.mxu0 0.0
        %1868 = vmatpush1.xpose.msra.mxu0 0.0
        %1869 = vmatprep.subr.mxu0 0.0
        %1870 = vmatpush1.xpose.msra.mxu0 0.0
        %1871 = vmatprep.subr.mxu0 0.0
        %1872 = vmatpush1.xpose.msra.mxu0 0.0
        %1873 = vmatprep.subr.mxu0 0.0
        %1874 = vmatpush1.xpose.msra.mxu0 0.0
        %1875 = vmatprep.subr.mxu0 0.0
        %1876 = vmatpush1.xpose.msra.mxu0 0.0
        %1877 = vmatprep.subr.mxu0 0.0
        %1878 = vmatpush1.xpose.msra.mxu0 0.0
        %1879 = vmatprep.subr.mxu0 0.0
        %1880 = vmatpush1.xpose.msra.mxu0 0.0
        %1881 = vmatprep.subr.mxu0 0.0
        %1882 = vmatpush1.xpose.msra.mxu0 0.0
        %1883 = vmatprep.subr.mxu0 0.0
        %1884 = vmatpush1.xpose.msra.mxu0 0.0
        %1885 = vmatprep.subr.mxu0 0.0
        %1886 = vmatpush1.xpose.msra.mxu0 0.0
        %1887 = vmatprep.subr.mxu0 0.0
        %1888 = vmatpush1.xpose.msra.mxu0 %v1855
        %1889 = vmatprep.subr.mxu0 0.0
        %1890 = vmatpush2.xpose.msra.mxu0 0.0
        %1891 = vmatprep.subr.mxu0 0.0
        %1892 = vmatpush2.xpose.msra.mxu0 0.0
        %1893 = vmatprep.subr.mxu0 0.0
        %1894 = vmatpush2.xpose.msra.mxu0 0.0
        %1895 = vmatprep.subr.mxu0 0.0
        %1896 = vmatpush2.xpose.msra.mxu0 0.0
        %1897 = vmatprep.subr.mxu0 0.0
        %1898 = vmatpush2.xpose.msra.mxu0 0.0
        %1899 = vmatprep.subr.mxu0 0.0
        %1900 = vmatpush2.xpose.msra.mxu0 0.0
        %1901 = vmatprep.subr.mxu0 0.0
        %1902 = vmatpush2.xpose.msra.mxu0 0.0
        %1903 = vmatprep.subr.mxu0 0.0
        %1904 = vmatpush2.xpose.msra.mxu0 0.0
        %1905 = vmatprep.subr.mxu0 0.0
        %1906 = vmatpush2.xpose.msra.mxu0 0.0
        %1907 = vmatprep.subr.mxu0 0.0
        %1908 = vmatpush2.xpose.msra.mxu0 0.0
        %1909 = vmatprep.subr.mxu0 0.0
        %1910 = vmatpush2.xpose.msra.mxu0 0.0
        %1911 = vmatprep.subr.mxu0 0.0
        %1912 = vmatpush2.xpose.msra.mxu0 0.0
        %1913 = vmatprep.subr.mxu0 0.0
        %1914 = vmatpush2.xpose.msra.mxu0 0.0
        %1915 = vmatprep.subr.mxu0 0.0
        %1916 = vmatpush2.xpose.msra.mxu0 0.0
        %1917 = vmatprep.subr.mxu0 0.0
        %1918 = vmatpush2.xpose.msra.mxu0 0.0
        %1919 = vmatprep.subr.mxu0 0.0
        %1920 = vmatpush2.xpose.msra.mxu0 0.0
        %1921 = vmatprep.mubr.f32.mxu0 0.0
        %1922 = vmatmul.mubr.f32.gmra.mxu0 %v1852
        %v1923 = vpop.f32.mrf.mxu0
        %v1924 = vadd.f32 0.0, %v1923
        %v1925 = vpop.f32.mrf.mxu0
        %1926 = vdwg.mxu0
        %v1928 = vsel %vm1362, %v1221, 0
        %v1931 = vsel %vm1362, %v1698, 0
        %1933 = vmatprep.subr.mxu0 0.0
        %1934 = vmatpush1.xpose.msra.mxu0 0.0
        %1935 = vmatprep.subr.mxu0 0.0
        %1936 = vmatpush1.xpose.msra.mxu0 0.0
        %1937 = vmatprep.subr.mxu0 0.0
        %1938 = vmatpush1.xpose.msra.mxu0 0.0
        %1939 = vmatprep.subr.mxu0 0.0
        %1940 = vmatpush1.xpose.msra.mxu0 0.0
        %1941 = vmatprep.subr.mxu0 0.0
        %1942 = vmatpush1.xpose.msra.mxu0 0.0
        %1943 = vmatprep.subr.mxu0 0.0
        %1944 = vmatpush1.xpose.msra.mxu0 0.0
        %1945 = vmatprep.subr.mxu0 0.0
        %1946 = vmatpush1.xpose.msra.mxu0 0.0
        %1947 = vmatprep.subr.mxu0 0.0
        %1948 = vmatpush1.xpose.msra.mxu0 0.0
        %1949 = vmatprep.subr.mxu0 0.0
        %1950 = vmatpush1.xpose.msra.mxu0 0.0
        %1951 = vmatprep.subr.mxu0 0.0
        %1952 = vmatpush1.xpose.msra.mxu0 0.0
        %1953 = vmatprep.subr.mxu0 0.0
        %1954 = vmatpush1.xpose.msra.mxu0 0.0
        %1955 = vmatprep.subr.mxu0 0.0
        %1956 = vmatpush1.xpose.msra.mxu0 0.0
        %1957 = vmatprep.subr.mxu0 0.0
        %1958 = vmatpush1.xpose.msra.mxu0 0.0
        %1959 = vmatprep.subr.mxu0 0.0
        %1960 = vmatpush1.xpose.msra.mxu0 0.0
        %1961 = vmatprep.subr.mxu0 0.0
        %1962 = vmatpush1.xpose.msra.mxu0 0.0
        %1963 = vmatprep.subr.mxu0 0.0
        %1964 = vmatpush1.xpose.msra.mxu0 %v1931
        %1965 = vmatprep.subr.mxu0 0.0
        %1966 = vmatpush2.xpose.msra.mxu0 0.0
        %1967 = vmatprep.subr.mxu0 0.0
        %1968 = vmatpush2.xpose.msra.mxu0 0.0
        %1969 = vmatprep.subr.mxu0 0.0
        %1970 = vmatpush2.xpose.msra.mxu0 0.0
        %1971 = vmatprep.subr.mxu0 0.0
        %1972 = vmatpush2.xpose.msra.mxu0 0.0
        %1973 = vmatprep.subr.mxu0 0.0
        %1974 = vmatpush2.xpose.msra.mxu0 0.0
        %1975 = vmatprep.subr.mxu0 0.0
        %1976 = vmatpush2.xpose.msra.mxu0 0.0
        %1977 = vmatprep.subr.mxu0 0.0
        %1978 = vmatpush2.xpose.msra.mxu0 0.0
        %1979 = vmatprep.subr.mxu0 0.0
        %1980 = vmatpush2.xpose.msra.mxu0 0.0
        %1981 = vmatprep.subr.mxu0 0.0
        %1982 = vmatpush2.xpose.msra.mxu0 0.0
        %1983 = vmatprep.subr.mxu0 0.0
        %1984 = vmatpush2.xpose.msra.mxu0 0.0
        %1985 = vmatprep.subr.mxu0 0.0
        %1986 = vmatpush2.xpose.msra.mxu0 0.0
        %1987 = vmatprep.subr.mxu0 0.0
        %1988 = vmatpush2.xpose.msra.mxu0 0.0
        %1989 = vmatprep.subr.mxu0 0.0
        %1990 = vmatpush2.xpose.msra.mxu0 0.0
        %1991 = vmatprep.subr.mxu0 0.0
        %1992 = vmatpush2.xpose.msra.mxu0 0.0
        %1993 = vmatprep.subr.mxu0 0.0
        %1994 = vmatpush2.xpose.msra.mxu0 0.0
        %1995 = vmatprep.subr.mxu0 0.0
        %1996 = vmatpush2.xpose.msra.mxu0 0.0
        %1997 = vmatprep.mubr.f32.mxu0 0.0
        %1998 = vmatmul.mubr.f32.gmra.mxu0 %v1928
        %v1999 = vpop.f32.mrf.mxu0
        %v2000 = vadd.f32 0.0, %v1999
        %v2001 = vpop.f32.mrf.mxu0
        %2002 = vdwg.mxu0
        %2003 = vxpose.xlu0.b32.start [1/16] %v1772, 128
        %2004 = vxpose.xlu0.b32.cont [2/16] %v1848, 128
        %2005 = vxpose.xlu0.b32.cont [3/16] %v1924, 128
        %2006 = vxpose.xlu0.b32.cont [4/16] %v2000, 128
        %2007 = vxpose.xlu0.b32.cont [5/16] 0.0, 128
        %2008 = vxpose.xlu0.b32.cont [6/16] 0.0, 128
        %2009 = vxpose.xlu0.b32.cont [7/16] 0.0, 128
        %2010 = vxpose.xlu0.b32.cont [8/16] 0.0, 128
        %2011 = vxpose.xlu0.b32.cont [9/16] 0.0, 128
        %2012 = vxpose.xlu0.b32.cont [10/16] 0.0, 128
        %2013 = vxpose.xlu0.b32.cont [11/16] 0.0, 128
        %2014 = vxpose.xlu0.b32.cont [12/16] 0.0, 128
        %2015 = vxpose.xlu0.b32.cont [13/16] 0.0, 128
        %2016 = vxpose.xlu0.b32.cont [14/16] 0.0, 128
        %2017 = vxpose.xlu0.b32.cont [15/16] 0.0, 128
        %2018 = vxpose.xlu0.b32.end [16/16] 0.0, 128
        %v2019 = vpop.trf.xlu0
        %v2020 = vpop.trf.xlu0
        %v2021 = vpop.trf.xlu0
        %v2022 = vpop.trf.xlu0
        %v2023 = vpop.trf.xlu0
        %v2024 = vpop.trf.xlu0
        %v2025 = vpop.trf.xlu0
        %v2026 = vpop.trf.xlu0
        %v2027 = vpop.trf.xlu0
        %v2028 = vpop.trf.xlu0
        %v2029 = vpop.trf.xlu0
        %v2030 = vpop.trf.xlu0
        %v2031 = vpop.trf.xlu0
        %v2032 = vpop.trf.xlu0
        %v2033 = vpop.trf.xlu0
        %v2034 = vpop.trf.xlu0
        %v2035 = vld [vmem:[%s11] sm:$0xff]
        %v2036 = vld [vmem:[%s11 + $0x8] sm:$0xff]
        %v2037 = vld [vmem:[%s11 + $0x10] sm:$0xff]
        %v2038 = vld [vmem:[%s11 + $0x18] sm:$0xff]
        %v2039 = vld [vmem:[%s13] sm:$0x1]
        %v2041 = vlaneseq
        %v2042 = vshrl.u32 %v2041, 7
        %v2043 = vsub.s32 0, %v2042
        %v2044 = vrot.slane %v2039, %v2043
        %v2047 = vsel %vm1059, %v2019, 0
        %2049 = vmatprep.subr.mxu0 0.0
        %2050 = vmatpush1.msra.mxu0 0.0
        %2051 = vmatprep.subr.mxu0 0.0
        %2052 = vmatpush1.msra.mxu0 0.0
        %2053 = vmatprep.subr.mxu0 0.0
        %2054 = vmatpush1.msra.mxu0 0.0
        %2055 = vmatprep.subr.mxu0 0.0
        %2056 = vmatpush1.msra.mxu0 0.0
        %2057 = vmatprep.subr.mxu0 0.0
        %2058 = vmatpush1.msra.mxu0 0.0
        %2059 = vmatprep.subr.mxu0 0.0
        %2060 = vmatpush1.msra.mxu0 0.0
        %2061 = vmatprep.subr.mxu0 0.0
        %2062 = vmatpush1.msra.mxu0 0.0
        %2063 = vmatprep.subr.mxu0 0.0
        %2064 = vmatpush1.msra.mxu0 0.0
        %2065 = vmatprep.subr.mxu0 0.0
        %2066 = vmatpush1.msra.mxu0 0.0
        %2067 = vmatprep.subr.mxu0 0.0
        %2068 = vmatpush1.msra.mxu0 0.0
        %2069 = vmatprep.subr.mxu0 0.0
        %2070 = vmatpush1.msra.mxu0 0.0
        %2071 = vmatprep.subr.mxu0 0.0
        %2072 = vmatpush1.msra.mxu0 0.0
        %2073 = vmatprep.subr.mxu0 0.0
        %2074 = vmatpush1.msra.mxu0 %v2038
        %2075 = vmatprep.subr.mxu0 0.0
        %2076 = vmatpush1.msra.mxu0 %v2037
        %2077 = vmatprep.subr.mxu0 0.0
        %2078 = vmatpush1.msra.mxu0 %v2036
        %2079 = vmatprep.subr.mxu0 0.0
        %2080 = vmatpush1.msra.mxu0 %v2035
        %2081 = vmatprep.subr.mxu0 0.0
        %2082 = vmatpush2.msra.mxu0 0.0
        %2083 = vmatprep.subr.mxu0 0.0
        %2084 = vmatpush2.msra.mxu0 0.0
        %2085 = vmatprep.subr.mxu0 0.0
        %2086 = vmatpush2.msra.mxu0 0.0
        %2087 = vmatprep.subr.mxu0 0.0
        %2088 = vmatpush2.msra.mxu0 0.0
        %2089 = vmatprep.subr.mxu0 0.0
        %2090 = vmatpush2.msra.mxu0 0.0
        %2091 = vmatprep.subr.mxu0 0.0
        %2092 = vmatpush2.msra.mxu0 0.0
        %2093 = vmatprep.subr.mxu0 0.0
        %2094 = vmatpush2.msra.mxu0 0.0
        %2095 = vmatprep.subr.mxu0 0.0
        %2096 = vmatpush2.msra.mxu0 0.0
        %2097 = vmatprep.subr.mxu0 0.0
        %2098 = vmatpush2.msra.mxu0 0.0
        %2099 = vmatprep.subr.mxu0 0.0
        %2100 = vmatpush2.msra.mxu0 0.0
        %2101 = vmatprep.subr.mxu0 0.0
        %2102 = vmatpush2.msra.mxu0 0.0
        %2103 = vmatprep.subr.mxu0 0.0
        %2104 = vmatpush2.msra.mxu0 0.0
        %2105 = vmatprep.subr.mxu0 0.0
        %2106 = vmatpush2.msra.mxu0 0.0
        %2107 = vmatprep.subr.mxu0 0.0
        %2108 = vmatpush2.msra.mxu0 0.0
        %2109 = vmatprep.subr.mxu0 0.0
        %2110 = vmatpush2.msra.mxu0 0.0
        %2111 = vmatprep.subr.mxu0 0.0
        %2112 = vmatpush2.msra.mxu0 0.0
        %2113 = vmatprep.mubr.f32.mxu0 0.0
        %2114 = vmatmul.mubr.f32.gmra.mxu0 %v2047
        %v2115 = vpop.f32.mrf.mxu0
        %v2116 = vadd.f32 %v2044, %v2115
        %v2117 = vpop.f32.mrf.mxu0
        %2118 = vdwg.mxu0
        %v2119 = vadd.f32 %v973, %v2116
        %v2120 = vld [vmem:[%s15] sm:$0x1]
        %v2121 = vld [vmem:[%s17] sm:$0x1]
        %v2122 = vsel %vm1059, %v2119, 0.0
        %2123 = vadd.xlane.f32.xlu0 %v2122
        %v2124 = vpop.xlane.xlu0 %2123
        %v2125 = vrcp.pop 32.0
        %v2126 = vmul.f32 %v2124, %v2125
        %v2127 = vsub.f32 %v2119, %v2126
        %v2128 = vmul.f32 %v2127, %v2127
        %v2129 = vsel %vm1059, %v2128, 0.0
        %2130 = vadd.xlane.f32.xlu0 %v2129
        %v2131 = vpop.xlane.xlu0 %2130
        %v2132 = vmul.f32 %v2131, %v2125
        %v2133 = vadd.f32 %v2132, 1e-05
        %v2134 = vrsqrt.pop %v2133
        %v2135 = vmul.f32 %v2127, %v2134
        %v2137 = vlaneseq
        %v2138 = vshrl.u32 %v2137, 7
        %v2139 = vsub.s32 0, %v2138
        %v2140 = vrot.slane %v2120, %v2139
        %v2142 = vmul.f32 %v2135, %v2140
        %v2144 = vlaneseq
        %v2145 = vshrl.u32 %v2144, 7
        %v2146 = vsub.s32 0, %v2145
        %v2147 = vrot.slane %v2121, %v2146
        %v2149 = vadd.f32 %v2142, %v2147
        %v2150 = vld [vmem:[%s19] sm:$0xff]
        %v2151 = vld [vmem:[%s19 + $0x8] sm:$0xff]
        %v2152 = vld [vmem:[%s19 + $0x10] sm:$0xff]
        %v2153 = vld [vmem:[%s19 + $0x18] sm:$0xff]
        %v2154 = vld [vmem:[%s21] sm:$0x1]
        %v2156 = vlaneseq
        %v2157 = vshrl.u32 %v2156, 7
        %v2158 = vsub.s32 0, %v2157
        %v2159 = vrot.slane %v2154, %v2158
        %v2162 = vsel %vm1059, %v2149, 0
        %2164 = vmatprep.subr.mxu0 0.0
        %2165 = vmatpush1.msra.mxu0 0.0
        %2166 = vmatprep.subr.mxu0 0.0
        %2167 = vmatpush1.msra.mxu0 0.0
        %2168 = vmatprep.subr.mxu0 0.0
        %2169 = vmatpush1.msra.mxu0 0.0
        %2170 = vmatprep.subr.mxu0 0.0
        %2171 = vmatpush1.msra.mxu0 0.0
        %2172 = vmatprep.subr.mxu0 0.0
        %2173 = vmatpush1.msra.mxu0 0.0
        %2174 = vmatprep.subr.mxu0 0.0
        %2175 = vmatpush1.msra.mxu0 0.0
        %2176 = vmatprep.subr.mxu0 0.0
        %2177 = vmatpush1.msra.mxu0 0.0
        %2178 = vmatprep.subr.mxu0 0.0
        %2179 = vmatpush1.msra.mxu0 0.0
        %2180 = vmatprep.subr.mxu0 0.0
        %2181 = vmatpush1.msra.mxu0 0.0
        %2182 = vmatprep.subr.mxu0 0.0
        %2183 = vmatpush1.msra.mxu0 0.0
        %2184 = vmatprep.subr.mxu0 0.0
        %2185 = vmatpush1.msra.mxu0 0.0
        %2186 = vmatprep.subr.mxu0 0.0
        %2187 = vmatpush1.msra.mxu0 0.0
        %2188 = vmatprep.subr.mxu0 0.0
        %2189 = vmatpush1.msra.mxu0 %v2153
        %2190 = vmatprep.subr.mxu0 0.0
        %2191 = vmatpush1.msra.mxu0 %v2152
        %2192 = vmatprep.subr.mxu0 0.0
        %2193 = vmatpush1.msra.mxu0 %v2151
        %2194 = vmatprep.subr.mxu0 0.0
        %2195 = vmatpush1.msra.mxu0 %v2150
        %2196 = vmatprep.subr.mxu0 0.0
        %2197 = vmatpush2.msra.mxu0 0.0
        %2198 = vmatprep.subr.mxu0 0.0
        %2199 = vmatpush2.msra.mxu0 0.0
        %2200 = vmatprep.subr.mxu0 0.0
        %2201 = vmatpush2.msra.mxu0 0.0
        %2202 = vmatprep.subr.mxu0 0.0
        %2203 = vmatpush2.msra.mxu0 0.0
        %2204 = vmatprep.subr.mxu0 0.0
        %2205 = vmatpush2.msra.mxu0 0.0
        %2206 = vmatprep.subr.mxu0 0.0
        %2207 = vmatpush2.msra.mxu0 0.0
        %2208 = vmatprep.subr.mxu0 0.0
        %2209 = vmatpush2.msra.mxu0 0.0
        %2210 = vmatprep.subr.mxu0 0.0
        %2211 = vmatpush2.msra.mxu0 0.0
        %2212 = vmatprep.subr.mxu0 0.0
        %2213 = vmatpush2.msra.mxu0 0.0
        %2214 = vmatprep.subr.mxu0 0.0
        %2215 = vmatpush2.msra.mxu0 0.0
        %2216 = vmatprep.subr.mxu0 0.0
        %2217 = vmatpush2.msra.mxu0 0.0
        %2218 = vmatprep.subr.mxu0 0.0
        %2219 = vmatpush2.msra.mxu0 0.0
        %2220 = vmatprep.subr.mxu0 0.0
        %2221 = vmatpush2.msra.mxu0 0.0
        %2222 = vmatprep.subr.mxu0 0.0
        %2223 = vmatpush2.msra.mxu0 0.0
        %2224 = vmatprep.subr.mxu0 0.0
        %2225 = vmatpush2.msra.mxu0 0.0
        %2226 = vmatprep.subr.mxu0 0.0
        %2227 = vmatpush2.msra.mxu0 0.0
        %2228 = vmatprep.mubr.f32.mxu0 0.0
        %2229 = vmatmul.mubr.f32.gmra.mxu0 %v2162
        %v2230 = vpop.f32.mrf.mxu0
        %v2231 = vadd.f32 %v2159, %v2230
        %v2232 = vpop.f32.mrf.mxu0
        %2233 = vdwg.mxu0
        %v2234 = vmax.f32 %v2231, 0.0
        %v2235 = vld [vmem:[%s23] sm:$0xff]
        %v2236 = vld [vmem:[%s23 + $0x8] sm:$0xff]
        %v2237 = vld [vmem:[%s23 + $0x10] sm:$0xff]
        %v2238 = vld [vmem:[%s23 + $0x18] sm:$0xff]
        %v2239 = vld [vmem:[%s23 + $0x20] sm:$0xff]
        %v2240 = vld [vmem:[%s23 + $0x28] sm:$0xff]
        %v2241 = vld [vmem:[%s23 + $0x30] sm:$0xff]
        %v2242 = vld [vmem:[%s23 + $0x38] sm:$0xff]
        %v2243 = vld [vmem:[%s25] sm:$0x1]
        %v2245 = vlaneseq
        %v2246 = vshrl.u32 %v2245, 7
        %v2247 = vsub.s32 0, %v2246
        %v2248 = vrot.slane %v2243, %v2247
        %vm2250 = vcmask 523264
        %v2252 = vsel %vm2250, %v2234, 0
        %2254 = vmatprep.subr.mxu0 0.0
        %2255 = vmatpush1.msra.mxu0 0.0
        %2256 = vmatprep.subr.mxu0 0.0
        %2257 = vmatpush1.msra.mxu0 0.0
        %2258 = vmatprep.subr.mxu0 0.0
        %2259 = vmatpush1.msra.mxu0 0.0
        %2260 = vmatprep.subr.mxu0 0.0
        %2261 = vmatpush1.msra.mxu0 0.0
        %2262 = vmatprep.subr.mxu0 0.0
        %2263 = vmatpush1.msra.mxu0 0.0
        %2264 = vmatprep.subr.mxu0 0.0
        %2265 = vmatpush1.msra.mxu0 0.0
        %2266 = vmatprep.subr.mxu0 0.0
        %2267 = vmatpush1.msra.mxu0 0.0
        %2268 = vmatprep.subr.mxu0 0.0
        %2269 = vmatpush1.msra.mxu0 0.0
        %2270 = vmatprep.subr.mxu0 0.0
        %2271 = vmatpush1.msra.mxu0 %v2242
        %2272 = vmatprep.subr.mxu0 0.0
        %2273 = vmatpush1.msra.mxu0 %v2241
        %2274 = vmatprep.subr.mxu0 0.0
        %2275 = vmatpush1.msra.mxu0 %v2240
        %2276 = vmatprep.subr.mxu0 0.0
        %2277 = vmatpush1.msra.mxu0 %v2239
        %2278 = vmatprep.subr.mxu0 0.0
        %2279 = vmatpush1.msra.mxu0 %v2238
        %2280 = vmatprep.subr.mxu0 0.0
        %2281 = vmatpush1.msra.mxu0 %v2237
        %2282 = vmatprep.subr.mxu0 0.0
        %2283 = vmatpush1.msra.mxu0 %v2236
        %2284 = vmatprep.subr.mxu0 0.0
        %2285 = vmatpush1.msra.mxu0 %v2235
        %2286 = vmatprep.subr.mxu0 0.0
        %2287 = vmatpush2.msra.mxu0 0.0
        %2288 = vmatprep.subr.mxu0 0.0
        %2289 = vmatpush2.msra.mxu0 0.0
        %2290 = vmatprep.subr.mxu0 0.0
        %2291 = vmatpush2.msra.mxu0 0.0
        %2292 = vmatprep.subr.mxu0 0.0
        %2293 = vmatpush2.msra.mxu0 0.0
        %2294 = vmatprep.subr.mxu0 0.0
        %2295 = vmatpush2.msra.mxu0 0.0
        %2296 = vmatprep.subr.mxu0 0.0
        %2297 = vmatpush2.msra.mxu0 0.0
        %2298 = vmatprep.subr.mxu0 0.0
        %2299 = vmatpush2.msra.mxu0 0.0
        %2300 = vmatprep.subr.mxu0 0.0
        %2301 = vmatpush2.msra.mxu0 0.0
        %2302 = vmatprep.subr.mxu0 0.0
        %2303 = vmatpush2.msra.mxu0 0.0
        %2304 = vmatprep.subr.mxu0 0.0
        %2305 = vmatpush2.msra.mxu0 0.0
        %2306 = vmatprep.subr.mxu0 0.0
        %2307 = vmatpush2.msra.mxu0 0.0
        %2308 = vmatprep.subr.mxu0 0.0
        %2309 = vmatpush2.msra.mxu0 0.0
        %2310 = vmatprep.subr.mxu0 0.0
        %2311 = vmatpush2.msra.mxu0 0.0
        %2312 = vmatprep.subr.mxu0 0.0
        %2313 = vmatpush2.msra.mxu0 0.0
        %2314 = vmatprep.subr.mxu0 0.0
        %2315 = vmatpush2.msra.mxu0 0.0
        %2316 = vmatprep.subr.mxu0 0.0
        %2317 = vmatpush2.msra.mxu0 0.0
        %2318 = vmatprep.mubr.f32.mxu0 0.0
        %2319 = vmatmul.mubr.f32.gmra.mxu0 %v2252
        %v2320 = vpop.f32.mrf.mxu0
        %v2321 = vadd.f32 %v2248, %v2320
        %v2322 = vpop.f32.mrf.mxu0
        %2323 = vdwg.mxu0
        %v2324 = vadd.f32 %v2149, %v2321
        %v2325 = vld [vmem:[%s27] sm:$0x1]
        %v2326 = vld [vmem:[%s29] sm:$0x1]
        %v2327 = vsel %vm1059, %v2324, 0.0
        %2328 = vadd.xlane.f32.xlu0 %v2327
        %v2329 = vpop.xlane.xlu0 %2328
        %v2330 = vmul.f32 %v2329, %v2125
        %v2331 = vsub.f32 %v2324, %v2330
        %v2332 = vmul.f32 %v2331, %v2331
        %v2333 = vsel %vm1059, %v2332, 0.0
        %2334 = vadd.xlane.f32.xlu0 %v2333
        %v2335 = vpop.xlane.xlu0 %2334
        %v2336 = vmul.f32 %v2335, %v2125
        %v2337 = vadd.f32 %v2336, 1e-05
        %v2338 = vrsqrt.pop %v2337
        %v2339 = vmul.f32 %v2331, %v2338
        %v2341 = vlaneseq
        %v2342 = vshrl.u32 %v2341, 7
        %v2343 = vsub.s32 0, %v2342
        %v2344 = vrot.slane %v2325, %v2343
        %v2346 = vmul.f32 %v2339, %v2344
        %v2348 = vlaneseq
        %v2349 = vshrl.u32 %v2348, 7
        %v2350 = vsub.s32 0, %v2349
        %v2351 = vrot.slane %v2326, %v2350
        %v2353 = vadd.f32 %v2346, %v2351
        %v2354 = vld [vmem:[%s31] sm:$0xff]
        %v2355 = vld [vmem:[%s31 + $0x8] sm:$0xff]
        %v2356 = vld [vmem:[%s31 + $0x10] sm:$0xff]
        %v2357 = vld [vmem:[%s31 + $0x18] sm:$0xff]
        %v2358 = vld [vmem:[%s31 + $0x20] sm:$0xff]
        %v2359 = vld [vmem:[%s31 + $0x28] sm:$0xff]
        %v2360 = vld [vmem:[%s31 + $0x30] sm:$0xff]
        %v2361 = vld [vmem:[%s31 + $0x38] sm:$0xff]
        %v2362 = vld [vmem:[%s31 + $0x40] sm:$0xff]
        %v2363 = vld [vmem:[%s31 + $0x48] sm:$0xff]
        %v2364 = vld [vmem:[%s31 + $0x50] sm:$0xff]
        %v2365 = vld [vmem:[%s31 + $0x58] sm:$0xff]
        %v2366 = vld [vmem:[%s33] sm:$0xff]
        %v2367 = vld [vmem:[%s33 + $0x8] sm:$0xff]
        %v2368 = vld [vmem:[%s33 + $0x10] sm:$0xff]
        %v2369 = vld [vmem:[%s33 + $0x18] sm:$0xff]
        %v2370 = vld [vmem:[%s33 + $0x20] sm:$0xff]
        %v2371 = vld [vmem:[%s33 + $0x28] sm:$0xff]
        %v2372 = vld [vmem:[%s33 + $0x30] sm:$0xff]
        %v2373 = vld [vmem:[%s33 + $0x38] sm:$0xff]
        %v2374 = vld [vmem:[%s33 + $0x40] sm:$0xff]
        %v2375 = vld [vmem:[%s33 + $0x48] sm:$0xff]
        %v2376 = vld [vmem:[%s33 + $0x50] sm:$0xff]
        %v2377 = vld [vmem:[%s33 + $0x58] sm:$0xff]
        %2379 = vset.pattern.permute.xlu0 0
        %2380 = vperm.xlu0 %2379, %v2366
        %v2381 = vpop.permute.xlu0 %2380
        %2384 = vset.pattern.permute.xlu0 0
        %2385 = vperm.xlu0 %2384, %v2367
        %v2386 = vpop.permute.xlu0 %2385
        %2389 = vset.pattern.permute.xlu0 0
        %2390 = vperm.xlu0 %2389, %v2368
        %v2391 = vpop.permute.xlu0 %2390
        %2394 = vset.pattern.permute.xlu0 0
        %2395 = vperm.xlu0 %2394, %v2369
        %v2396 = vpop.permute.xlu0 %2395
        %2399 = vset.pattern.permute.xlu0 0
        %2400 = vperm.xlu0 %2399, %v2370
        %v2401 = vpop.permute.xlu0 %2400
        %2404 = vset.pattern.permute.xlu0 0
        %2405 = vperm.xlu0 %2404, %v2371
        %v2406 = vpop.permute.xlu0 %2405
        %2409 = vset.pattern.permute.xlu0 0
        %2410 = vperm.xlu0 %2409, %v2372
        %v2411 = vpop.permute.xlu0 %2410
        %2414 = vset.pattern.permute.xlu0 0
        %2415 = vperm.xlu0 %2414, %v2373
        %v2416 = vpop.permute.xlu0 %2415
        %2419 = vset.pattern.permute.xlu0 0
        %2420 = vperm.xlu0 %2419, %v2374
        %v2421 = vpop.permute.xlu0 %2420
        %2424 = vset.pattern.permute.xlu0 0
        %2425 = vperm.xlu0 %2424, %v2375
        %v2426 = vpop.permute.xlu0 %2425
        %2429 = vset.pattern.permute.xlu0 0
        %2430 = vperm.xlu0 %2429, %v2376
        %v2431 = vpop.permute.xlu0 %2430
        %2434 = vset.pattern.permute.xlu0 0
        %2435 = vperm.xlu0 %2434, %v2377
        %v2436 = vpop.permute.xlu0 %2435
        %v2439 = vsel %vm1059, %v2354, 0
        %v2442 = vsel %vm1059, %v2355, 0
        %v2445 = vsel %vm1059, %v2356, 0
        %v2448 = vsel %vm1059, %v2357, 0
        %v2451 = vsel %vm1059, %v2358, 0
        %v2454 = vsel %vm1059, %v2359, 0
        %v2457 = vsel %vm1059, %v2360, 0
        %v2460 = vsel %vm1059, %v2361, 0
        %v2463 = vsel %vm1059, %v2362, 0
        %v2466 = vsel %vm1059, %v2363, 0
        %v2469 = vsel %vm1059, %v2364, 0
        %v2472 = vsel %vm1059, %v2365, 0
        %v2475 = vsel %vm1059, %v2353, 0
        %2477 = vmatprep.subr.mxu0 0.0
        %2478 = vmatpush1.xpose.msra.mxu0 0.0
        %2479 = vmatprep.subr.mxu0 0.0
        %2480 = vmatpush1.xpose.msra.mxu0 0.0
        %2481 = vmatprep.subr.mxu0 0.0
        %2482 = vmatpush1.xpose.msra.mxu0 0.0
        %2483 = vmatprep.subr.mxu0 0.0
        %2484 = vmatpush1.xpose.msra.mxu0 0.0
        %2485 = vmatprep.subr.mxu0 0.0
        %2486 = vmatpush1.xpose.msra.mxu0 0.0
        %2487 = vmatprep.subr.mxu0 0.0
        %2488 = vmatpush1.xpose.msra.mxu0 0.0
        %2489 = vmatprep.subr.mxu0 0.0
        %2490 = vmatpush1.xpose.msra.mxu0 0.0
        %2491 = vmatprep.subr.mxu0 0.0
        %2492 = vmatpush1.xpose.msra.mxu0 0.0
        %2493 = vmatprep.subr.mxu0 0.0
        %2494 = vmatpush1.xpose.msra.mxu0 0.0
        %2495 = vmatprep.subr.mxu0 0.0
        %2496 = vmatpush1.xpose.msra.mxu0 0.0
        %2497 = vmatprep.subr.mxu0 0.0
        %2498 = vmatpush1.xpose.msra.mxu0 0.0
        %2499 = vmatprep.subr.mxu0 0.0
        %2500 = vmatpush1.xpose.msra.mxu0 0.0
        %2501 = vmatprep.subr.mxu0 0.0
        %2502 = vmatpush1.xpose.msra.mxu0 0.0
        %2503 = vmatprep.subr.mxu0 0.0
        %2504 = vmatpush1.xpose.msra.mxu0 0.0
        %2505 = vmatprep.subr.mxu0 0.0
        %2506 = vmatpush1.xpose.msra.mxu0 0.0
        %2507 = vmatprep.subr.mxu0 0.0
        %2508 = vmatpush1.xpose.msra.mxu0 %v2475
        %2509 = vmatprep.subr.mxu0 0.0
        %2510 = vmatpush2.xpose.msra.mxu0 0.0
        %2511 = vmatprep.subr.mxu0 0.0
        %2512 = vmatpush2.xpose.msra.mxu0 0.0
        %2513 = vmatprep.subr.mxu0 0.0
        %2514 = vmatpush2.xpose.msra.mxu0 0.0
        %2515 = vmatprep.subr.mxu0 0.0
        %2516 = vmatpush2.xpose.msra.mxu0 0.0
        %2517 = vmatprep.subr.mxu0 0.0
        %2518 = vmatpush2.xpose.msra.mxu0 0.0
        %2519 = vmatprep.subr.mxu0 0.0
        %2520 = vmatpush2.xpose.msra.mxu0 0.0
        %2521 = vmatprep.subr.mxu0 0.0
        %2522 = vmatpush2.xpose.msra.mxu0 0.0
        %2523 = vmatprep.subr.mxu0 0.0
        %2524 = vmatpush2.xpose.msra.mxu0 0.0
        %2525 = vmatprep.subr.mxu0 0.0
        %2526 = vmatpush2.xpose.msra.mxu0 0.0
        %2527 = vmatprep.subr.mxu0 0.0
        %2528 = vmatpush2.xpose.msra.mxu0 0.0
        %2529 = vmatprep.subr.mxu0 0.0
        %2530 = vmatpush2.xpose.msra.mxu0 0.0
        %2531 = vmatprep.subr.mxu0 0.0
        %2532 = vmatpush2.xpose.msra.mxu0 0.0
        %2533 = vmatprep.subr.mxu0 0.0
        %2534 = vmatpush2.xpose.msra.mxu0 0.0
        %2535 = vmatprep.subr.mxu0 0.0
        %2536 = vmatpush2.xpose.msra.mxu0 0.0
        %2537 = vmatprep.subr.mxu0 0.0
        %2538 = vmatpush2.xpose.msra.mxu0 0.0
        %2539 = vmatprep.subr.mxu0 0.0
        %2540 = vmatpush2.xpose.msra.mxu0 0.0
        %2541 = vmatprep.mubr.f32.mxu0 0.0
        %2542 = vmatmul.mubr.f32.gmra.mxu0 %v2439
        %v2543 = vpop.f32.mrf.mxu0
        %v2544 = vadd.f32 %v2381, %v2543
        %v2545 = vpop.f32.mrf.mxu0
        %2546 = vmatprep.mubr.f32.mxu0 0.0
        %2547 = vmatmul.mubr.f32.gmra.mxu0 %v2442
        %v2548 = vpop.f32.mrf.mxu0
        %v2549 = vadd.f32 %v2386, %v2548
        %v2550 = vpop.f32.mrf.mxu0
        %2551 = vmatprep.mubr.f32.mxu0 0.0
        %2552 = vmatmul.mubr.f32.gmra.mxu0 %v2445
        %v2553 = vpop.f32.mrf.mxu0
        %v2554 = vadd.f32 %v2391, %v2553
        %v2555 = vpop.f32.mrf.mxu0
        %2556 = vmatprep.mubr.f32.mxu0 0.0
        %2557 = vmatmul.mubr.f32.gmra.mxu0 %v2448
        %v2558 = vpop.f32.mrf.mxu0
        %v2559 = vadd.f32 %v2396, %v2558
        %v2560 = vpop.f32.mrf.mxu0
        %2561 = vmatprep.mubr.f32.mxu0 0.0
        %2562 = vmatmul.mubr.f32.gmra.mxu0 %v2451
        %v2563 = vpop.f32.mrf.mxu0
        %v2564 = vadd.f32 %v2401, %v2563
        %v2565 = vpop.f32.mrf.mxu0
        %2566 = vmatprep.mubr.f32.mxu0 0.0
        %2567 = vmatmul.mubr.f32.gmra.mxu0 %v2454
        %v2568 = vpop.f32.mrf.mxu0
        %v2569 = vadd.f32 %v2406, %v2568
        %v2570 = vpop.f32.mrf.mxu0
        %2571 = vmatprep.mubr.f32.mxu0 0.0
        %2572 = vmatmul.mubr.f32.gmra.mxu0 %v2457
        %v2573 = vpop.f32.mrf.mxu0
        %v2574 = vadd.f32 %v2411, %v2573
        %v2575 = vpop.f32.mrf.mxu0
        %2576 = vmatprep.mubr.f32.mxu0 0.0
        %2577 = vmatmul.mubr.f32.gmra.mxu0 %v2460
        %v2578 = vpop.f32.mrf.mxu0
        %v2579 = vadd.f32 %v2416, %v2578
        %v2580 = vpop.f32.mrf.mxu0
        %2581 = vmatprep.mubr.f32.mxu0 0.0
        %2582 = vmatmul.mubr.f32.gmra.mxu0 %v2463
        %v2583 = vpop.f32.mrf.mxu0
        %v2584 = vadd.f32 %v2421, %v2583
        %v2585 = vpop.f32.mrf.mxu0
        %2586 = vmatprep.mubr.f32.mxu0 0.0
        %2587 = vmatmul.mubr.f32.gmra.mxu0 %v2466
        %v2588 = vpop.f32.mrf.mxu0
        %v2589 = vadd.f32 %v2426, %v2588
        %v2590 = vpop.f32.mrf.mxu0
        %2591 = vmatprep.mubr.f32.mxu0 0.0
        %2592 = vmatmul.mubr.f32.gmra.mxu0 %v2469
        %v2593 = vpop.f32.mrf.mxu0
        %v2594 = vadd.f32 %v2431, %v2593
        %v2595 = vpop.f32.mrf.mxu0
        %2596 = vmatprep.mubr.f32.mxu0 0.0
        %2597 = vmatmul.mubr.f32.gmra.mxu0 %v2472
        %v2598 = vpop.f32.mrf.mxu0
        %v2599 = vadd.f32 %v2436, %v2598
        %v2600 = vpop.f32.mrf.mxu0
        %2601 = vdwg.mxu0
        %2602 = vxpose.xlu0.b32.start [1/16] %v2544, 128
        %2603 = vxpose.xlu0.b32.cont [2/16] 0.0, 128
        %2604 = vxpose.xlu0.b32.cont [3/16] 0.0, 128
        %2605 = vxpose.xlu0.b32.cont [4/16] 0.0, 128
        %2606 = vxpose.xlu0.b32.cont [5/16] 0.0, 128
        %2607 = vxpose.xlu0.b32.cont [6/16] 0.0, 128
        %2608 = vxpose.xlu0.b32.cont [7/16] 0.0, 128
        %2609 = vxpose.xlu0.b32.cont [8/16] 0.0, 128
        %2610 = vxpose.xlu0.b32.cont [9/16] 0.0, 128
        %2611 = vxpose.xlu0.b32.cont [10/16] 0.0, 128
        %2612 = vxpose.xlu0.b32.cont [11/16] 0.0, 128
        %2613 = vxpose.xlu0.b32.cont [12/16] 0.0, 128
        %2614 = vxpose.xlu0.b32.cont [13/16] 0.0, 128
        %2615 = vxpose.xlu0.b32.cont [14/16] 0.0, 128
        %2616 = vxpose.xlu0.b32.cont [15/16] 0.0, 128
        %2617 = vxpose.xlu0.b32.end [16/16] 0.0, 128
        %v2618 = vpop.trf.xlu0
        %v2619 = vpop.trf.xlu0
        %v2620 = vpop.trf.xlu0
        %v2621 = vpop.trf.xlu0
        %v2622 = vpop.trf.xlu0
        %v2623 = vpop.trf.xlu0
        %v2624 = vpop.trf.xlu0
        %v2625 = vpop.trf.xlu0
        %v2626 = vpop.trf.xlu0
        %v2627 = vpop.trf.xlu0
        %v2628 = vpop.trf.xlu0
        %v2629 = vpop.trf.xlu0
        %v2630 = vpop.trf.xlu0
        %v2631 = vpop.trf.xlu0
        %v2632 = vpop.trf.xlu0
        %v2633 = vpop.trf.xlu0
        %2634 = vxpose.xlu0.b32.start [1/16] %v2549, 128
        %2635 = vxpose.xlu0.b32.cont [2/16] 0.0, 128
        %2636 = vxpose.xlu0.b32.cont [3/16] 0.0, 128
        %2637 = vxpose.xlu0.b32.cont [4/16] 0.0, 128
        %2638 = vxpose.xlu0.b32.cont [5/16] 0.0, 128
        %2639 = vxpose.xlu0.b32.cont [6/16] 0.0, 128
        %2640 = vxpose.xlu0.b32.cont [7/16] 0.0, 128
        %2641 = vxpose.xlu0.b32.cont [8/16] 0.0, 128
        %2642 = vxpose.xlu0.b32.cont [9/16] 0.0, 128
        %2643 = vxpose.xlu0.b32.cont [10/16] 0.0, 128
        %2644 = vxpose.xlu0.b32.cont [11/16] 0.0, 128
        %2645 = vxpose.xlu0.b32.cont [12/16] 0.0, 128
        %2646 = vxpose.xlu0.b32.cont [13/16] 0.0, 128
        %2647 = vxpose.xlu0.b32.cont [14/16] 0.0, 128
        %2648 = vxpose.xlu0.b32.cont [15/16] 0.0, 128
        %2649 = vxpose.xlu0.b32.end [16/16] 0.0, 128
        %v2650 = vpop.trf.xlu0
        %v2651 = vpop.trf.xlu0
        %v2652 = vpop.trf.xlu0
        %v2653 = vpop.trf.xlu0
        %v2654 = vpop.trf.xlu0
        %v2655 = vpop.trf.xlu0
        %v2656 = vpop.trf.xlu0
        %v2657 = vpop.trf.xlu0
        %v2658 = vpop.trf.xlu0
        %v2659 = vpop.trf.xlu0
        %v2660 = vpop.trf.xlu0
        %v2661 = vpop.trf.xlu0
        %v2662 = vpop.trf.xlu0
        %v2663 = vpop.trf.xlu0
        %v2664 = vpop.trf.xlu0
        %v2665 = vpop.trf.xlu0
        %2666 = vxpose.xlu0.b32.start [1/16] %v2554, 128
        %2667 = vxpose.xlu0.b32.cont [2/16] 0.0, 128
        %2668 = vxpose.xlu0.b32.cont [3/16] 0.0, 128
        %2669 = vxpose.xlu0.b32.cont [4/16] 0.0, 128
        %2670 = vxpose.xlu0.b32.cont [5/16] 0.0, 128
        %2671 = vxpose.xlu0.b32.cont [6/16] 0.0, 128
        %2672 = vxpose.xlu0.b32.cont [7/16] 0.0, 128
        %2673 = vxpose.xlu0.b32.cont [8/16] 0.0, 128
        %2674 = vxpose.xlu0.b32.cont [9/16] 0.0, 128
        %2675 = vxpose.xlu0.b32.cont [10/16] 0.0, 128
        %2676 = vxpose.xlu0.b32.cont [11/16] 0.0, 128
        %2677 = vxpose.xlu0.b32.cont [12/16] 0.0, 128
        %2678 = vxpose.xlu0.b32.cont [13/16] 0.0, 128
        %2679 = vxpose.xlu0.b32.cont [14/16] 0.0, 128
        %2680 = vxpose.xlu0.b32.cont [15/16] 0.0, 128
        %2681 = vxpose.xlu0.b32.end [16/16] 0.0, 128
        %v2682 = vpop.trf.xlu0
        %v2683 = vpop.trf.xlu0
        %v2684 = vpop.trf.xlu0
        %v2685 = vpop.trf.xlu0
        %v2686 = vpop.trf.xlu0
        %v2687 = vpop.trf.xlu0
        %v2688 = vpop.trf.xlu0
        %v2689 = vpop.trf.xlu0
        %v2690 = vpop.trf.xlu0
        %v2691 = vpop.trf.xlu0
        %v2692 = vpop.trf.xlu0
        %v2693 = vpop.trf.xlu0
        %v2694 = vpop.trf.xlu0
        %v2695 = vpop.trf.xlu0
        %v2696 = vpop.trf.xlu0
        %v2697 = vpop.trf.xlu0
        %2698 = vxpose.xlu0.b32.start [1/16] %v2559, 128
        %2699 = vxpose.xlu0.b32.cont [2/16] 0.0, 128
        %2700 = vxpose.xlu0.b32.cont [3/16] 0.0, 128
        %2701 = vxpose.xlu0.b32.cont [4/16] 0.0, 128
        %2702 = vxpose.xlu0.b32.cont [5/16] 0.0, 128
        %2703 = vxpose.xlu0.b32.cont [6/16] 0.0, 128
        %2704 = vxpose.xlu0.b32.cont [7/16] 0.0, 128
        %2705 = vxpose.xlu0.b32.cont [8/16] 0.0, 128
        %2706 = vxpose.xlu0.b32.cont [9/16] 0.0, 128
        %2707 = vxpose.xlu0.b32.cont [10/16] 0.0, 128
        %2708 = vxpose.xlu0.b32.cont [11/16] 0.0, 128
        %2709 = vxpose.xlu0.b32.cont [12/16] 0.0, 128
        %2710 = vxpose.xlu0.b32.cont [13/16] 0.0, 128
        %2711 = vxpose.xlu0.b32.cont [14/16] 0.0, 128
        %2712 = vxpose.xlu0.b32.cont [15/16] 0.0, 128
        %2713 = vxpose.xlu0.b32.end [16/16] 0.0, 128
        %v2714 = vpop.trf.xlu0
        %v2715 = vpop.trf.xlu0
        %v2716 = vpop.trf.xlu0
        %v2717 = vpop.trf.xlu0
        %v2718 = vpop.trf.xlu0
        %v2719 = vpop.trf.xlu0
        %v2720 = vpop.trf.xlu0
        %v2721 = vpop.trf.xlu0
        %v2722 = vpop.trf.xlu0
        %v2723 = vpop.trf.xlu0
        %v2724 = vpop.trf.xlu0
        %v2725 = vpop.trf.xlu0
        %v2726 = vpop.trf.xlu0
        %v2727 = vpop.trf.xlu0
        %v2728 = vpop.trf.xlu0
        %v2729 = vpop.trf.xlu0
        %v2730 = vmul.f32 %v2618, 0.35355338
        %v2731 = vmul.f32 %v2650, 0.35355338
        %v2732 = vmul.f32 %v2682, 0.35355338
        %v2733 = vmul.f32 %v2714, 0.35355338
        %v2735 = vsel %vm1362, %v2730, 0
        %2737 = vmatprep.subr.mxu0 0.0
        %2738 = vmatpush1.msra.mxu0 0.0
        %2739 = vmatprep.subr.mxu0 0.0
        %2740 = vmatpush1.msra.mxu0 0.0
        %2741 = vmatprep.subr.mxu0 0.0
        %2742 = vmatpush1.msra.mxu0 0.0
        %2743 = vmatprep.subr.mxu0 0.0
        %2744 = vmatpush1.msra.mxu0 0.0
        %2745 = vmatprep.subr.mxu0 0.0
        %2746 = vmatpush1.msra.mxu0 0.0
        %2747 = vmatprep.subr.mxu0 0.0
        %2748 = vmatpush1.msra.mxu0 0.0
        %2749 = vmatprep.subr.mxu0 0.0
        %2750 = vmatpush1.msra.mxu0 0.0
        %2751 = vmatprep.subr.mxu0 0.0
        %2752 = vmatpush1.msra.mxu0 0.0
        %2753 = vmatprep.subr.mxu0 0.0
        %2754 = vmatpush1.msra.mxu0 0.0
        %2755 = vmatprep.subr.mxu0 0.0
        %2756 = vmatpush1.msra.mxu0 0.0
        %2757 = vmatprep.subr.mxu0 0.0
        %2758 = vmatpush1.msra.mxu0 0.0
        %2759 = vmatprep.subr.mxu0 0.0
        %2760 = vmatpush1.msra.mxu0 0.0
        %2761 = vmatprep.subr.mxu0 0.0
        %2762 = vmatpush1.msra.mxu0 0.0
        %2763 = vmatprep.subr.mxu0 0.0
        %2764 = vmatpush1.msra.mxu0 0.0
        %2765 = vmatprep.subr.mxu0 0.0
        %2766 = vmatpush1.msra.mxu0 0.0
        %2767 = vmatprep.subr.mxu0 0.0
        %2768 = vmatpush1.msra.mxu0 %v2564
        %2769 = vmatprep.subr.mxu0 0.0
        %2770 = vmatpush2.msra.mxu0 0.0
        %2771 = vmatprep.subr.mxu0 0.0
        %2772 = vmatpush2.msra.mxu0 0.0
        %2773 = vmatprep.subr.mxu0 0.0
        %2774 = vmatpush2.msra.mxu0 0.0
        %2775 = vmatprep.subr.mxu0 0.0
        %2776 = vmatpush2.msra.mxu0 0.0
        %2777 = vmatprep.subr.mxu0 0.0
        %2778 = vmatpush2.msra.mxu0 0.0
        %2779 = vmatprep.subr.mxu0 0.0
        %2780 = vmatpush2.msra.mxu0 0.0
        %2781 = vmatprep.subr.mxu0 0.0
        %2782 = vmatpush2.msra.mxu0 0.0
        %2783 = vmatprep.subr.mxu0 0.0
        %2784 = vmatpush2.msra.mxu0 0.0
        %2785 = vmatprep.subr.mxu0 0.0
        %2786 = vmatpush2.msra.mxu0 0.0
        %2787 = vmatprep.subr.mxu0 0.0
        %2788 = vmatpush2.msra.mxu0 0.0
        %2789 = vmatprep.subr.mxu0 0.0
        %2790 = vmatpush2.msra.mxu0 0.0
        %2791 = vmatprep.subr.mxu0 0.0
        %2792 = vmatpush2.msra.mxu0 0.0
        %2793 = vmatprep.subr.mxu0 0.0
        %2794 = vmatpush2.msra.mxu0 0.0
        %2795 = vmatprep.subr.mxu0 0.0
        %2796 = vmatpush2.msra.mxu0 0.0
        %2797 = vmatprep.subr.mxu0 0.0
        %2798 = vmatpush2.msra.mxu0 0.0
        %2799 = vmatprep.subr.mxu0 0.0
        %2800 = vmatpush2.msra.mxu0 0.0
        %2801 = vmatprep.mubr.f32.mxu0 0.0
        %2802 = vmatmul.mubr.f32.gmra.mxu0 %v2735
        %v2803 = vpop.f32.mrf.mxu0
        %v2804 = vadd.f32 %v1360, %v2803
        %v2805 = vpop.f32.mrf.mxu0
        %2806 = vdwg.mxu0
        %v2808 = vsel %vm1362, %v2731, 0
        %2810 = vmatprep.subr.mxu0 0.0
        %2811 = vmatpush1.msra.mxu0 0.0
        %2812 = vmatprep.subr.mxu0 0.0
        %2813 = vmatpush1.msra.mxu0 0.0
        %2814 = vmatprep.subr.mxu0 0.0
        %2815 = vmatpush1.msra.mxu0 0.0
        %2816 = vmatprep.subr.mxu0 0.0
        %2817 = vmatpush1.msra.mxu0 0.0
        %2818 = vmatprep.subr.mxu0 0.0
        %2819 = vmatpush1.msra.mxu0 0.0
        %2820 = vmatprep.subr.mxu0 0.0
        %2821 = vmatpush1.msra.mxu0 0.0
        %2822 = vmatprep.subr.mxu0 0.0
        %2823 = vmatpush1.msra.mxu0 0.0
        %2824 = vmatprep.subr.mxu0 0.0
        %2825 = vmatpush1.msra.mxu0 0.0
        %2826 = vmatprep.subr.mxu0 0.0
        %2827 = vmatpush1.msra.mxu0 0.0
        %2828 = vmatprep.subr.mxu0 0.0
        %2829 = vmatpush1.msra.mxu0 0.0
        %2830 = vmatprep.subr.mxu0 0.0
        %2831 = vmatpush1.msra.mxu0 0.0
        %2832 = vmatprep.subr.mxu0 0.0
        %2833 = vmatpush1.msra.mxu0 0.0
        %2834 = vmatprep.subr.mxu0 0.0
        %2835 = vmatpush1.msra.mxu0 0.0
        %2836 = vmatprep.subr.mxu0 0.0
        %2837 = vmatpush1.msra.mxu0 0.0
        %2838 = vmatprep.subr.mxu0 0.0
        %2839 = vmatpush1.msra.mxu0 0.0
        %2840 = vmatprep.subr.mxu0 0.0
        %2841 = vmatpush1.msra.mxu0 %v2569
        %2842 = vmatprep.subr.mxu0 0.0
        %2843 = vmatpush2.msra.mxu0 0.0
        %2844 = vmatprep.subr.mxu0 0.0
        %2845 = vmatpush2.msra.mxu0 0.0
        %2846 = vmatprep.subr.mxu0 0.0
        %2847 = vmatpush2.msra.mxu0 0.0
        %2848 = vmatprep.subr.mxu0 0.0
        %2849 = vmatpush2.msra.mxu0 0.0
        %2850 = vmatprep.subr.mxu0 0.0
        %2851 = vmatpush2.msra.mxu0 0.0
        %2852 = vmatprep.subr.mxu0 0.0
        %2853 = vmatpush2.msra.mxu0 0.0
        %2854 = vmatprep.subr.mxu0 0.0
        %2855 = vmatpush2.msra.mxu0 0.0
        %2856 = vmatprep.subr.mxu0 0.0
        %2857 = vmatpush2.msra.mxu0 0.0
        %2858 = vmatprep.subr.mxu0 0.0
        %2859 = vmatpush2.msra.mxu0 0.0
        %2860 = vmatprep.subr.mxu0 0.0
        %2861 = vmatpush2.msra.mxu0 0.0
        %2862 = vmatprep.subr.mxu0 0.0
        %2863 = vmatpush2.msra.mxu0 0.0
        %2864 = vmatprep.subr.mxu0 0.0
        %2865 = vmatpush2.msra.mxu0 0.0
        %2866 = vmatprep.subr.mxu0 0.0
        %2867 = vmatpush2.msra.mxu0 0.0
        %2868 = vmatprep.subr.mxu0 0.0
        %2869 = vmatpush2.msra.mxu0 0.0
        %2870 = vmatprep.subr.mxu0 0.0
        %2871 = vmatpush2.msra.mxu0 0.0
        %2872 = vmatprep.subr.mxu0 0.0
        %2873 = vmatpush2.msra.mxu0 0.0
        %2874 = vmatprep.mubr.f32.mxu0 0.0
        %2875 = vmatmul.mubr.f32.gmra.mxu0 %v2808
        %v2876 = vpop.f32.mrf.mxu0
        %v2877 = vadd.f32 %v1360, %v2876
        %v2878 = vpop.f32.mrf.mxu0
        %2879 = vdwg.mxu0
        %v2881 = vsel %vm1362, %v2732, 0
        %2883 = vmatprep.subr.mxu0 0.0
        %2884 = vmatpush1.msra.mxu0 0.0
        %2885 = vmatprep.subr.mxu0 0.0
        %2886 = vmatpush1.msra.mxu0 0.0
        %2887 = vmatprep.subr.mxu0 0.0
        %2888 = vmatpush1.msra.mxu0 0.0
        %2889 = vmatprep.subr.mxu0 0.0
        %2890 = vmatpush1.msra.mxu0 0.0
        %2891 = vmatprep.subr.mxu0 0.0
        %2892 = vmatpush1.msra.mxu0 0.0
        %2893 = vmatprep.subr.mxu0 0.0
        %2894 = vmatpush1.msra.mxu0 0.0
        %2895 = vmatprep.subr.mxu0 0.0
        %2896 = vmatpush1.msra.mxu0 0.0
        %2897 = vmatprep.subr.mxu0 0.0
        %2898 = vmatpush1.msra.mxu0 0.0
        %2899 = vmatprep.subr.mxu0 0.0
        %2900 = vmatpush1.msra.mxu0 0.0
        %2901 = vmatprep.subr.mxu0 0.0
        %2902 = vmatpush1.msra.mxu0 0.0
        %2903 = vmatprep.subr.mxu0 0.0
        %2904 = vmatpush1.msra.mxu0 0.0
        %2905 = vmatprep.subr.mxu0 0.0
        %2906 = vmatpush1.msra.mxu0 0.0
        %2907 = vmatprep.subr.mxu0 0.0
        %2908 = vmatpush1.msra.mxu0 0.0
        %2909 = vmatprep.subr.mxu0 0.0
        %2910 = vmatpush1.msra.mxu0 0.0
        %2911 = vmatprep.subr.mxu0 0.0
        %2912 = vmatpush1.msra.mxu0 0.0
        %2913 = vmatprep.subr.mxu0 0.0
        %2914 = vmatpush1.msra.mxu0 %v2574
        %2915 = vmatprep.subr.mxu0 0.0
        %2916 = vmatpush2.msra.mxu0 0.0
        %2917 = vmatprep.subr.mxu0 0.0
        %2918 = vmatpush2.msra.mxu0 0.0
        %2919 = vmatprep.subr.mxu0 0.0
        %2920 = vmatpush2.msra.mxu0 0.0
        %2921 = vmatprep.subr.mxu0 0.0
        %2922 = vmatpush2.msra.mxu0 0.0
        %2923 = vmatprep.subr.mxu0 0.0
        %2924 = vmatpush2.msra.mxu0 0.0
        %2925 = vmatprep.subr.mxu0 0.0
        %2926 = vmatpush2.msra.mxu0 0.0
        %2927 = vmatprep.subr.mxu0 0.0
        %2928 = vmatpush2.msra.mxu0 0.0
        %2929 = vmatprep.subr.mxu0 0.0
        %2930 = vmatpush2.msra.mxu0 0.0
        %2931 = vmatprep.subr.mxu0 0.0
        %2932 = vmatpush2.msra.mxu0 0.0
        %2933 = vmatprep.subr.mxu0 0.0
        %2934 = vmatpush2.msra.mxu0 0.0
        %2935 = vmatprep.subr.mxu0 0.0
        %2936 = vmatpush2.msra.mxu0 0.0
        %2937 = vmatprep.subr.mxu0 0.0
        %2938 = vmatpush2.msra.mxu0 0.0
        %2939 = vmatprep.subr.mxu0 0.0
        %2940 = vmatpush2.msra.mxu0 0.0
        %2941 = vmatprep.subr.mxu0 0.0
        %2942 = vmatpush2.msra.mxu0 0.0
        %2943 = vmatprep.subr.mxu0 0.0
        %2944 = vmatpush2.msra.mxu0 0.0
        %2945 = vmatprep.subr.mxu0 0.0
        %2946 = vmatpush2.msra.mxu0 0.0
        %2947 = vmatprep.mubr.f32.mxu0 0.0
        %2948 = vmatmul.mubr.f32.gmra.mxu0 %v2881
        %v2949 = vpop.f32.mrf.mxu0
        %v2950 = vadd.f32 %v1360, %v2949
        %v2951 = vpop.f32.mrf.mxu0
        %2952 = vdwg.mxu0
        %v2954 = vsel %vm1362, %v2733, 0
        %2956 = vmatprep.subr.mxu0 0.0
        %2957 = vmatpush1.msra.mxu0 0.0
        %2958 = vmatprep.subr.mxu0 0.0
        %2959 = vmatpush1.msra.mxu0 0.0
        %2960 = vmatprep.subr.mxu0 0.0
        %2961 = vmatpush1.msra.mxu0 0.0
        %2962 = vmatprep.subr.mxu0 0.0
        %2963 = vmatpush1.msra.mxu0 0.0
        %2964 = vmatprep.subr.mxu0 0.0
        %2965 = vmatpush1.msra.mxu0 0.0
        %2966 = vmatprep.subr.mxu0 0.0
        %2967 = vmatpush1.msra.mxu0 0.0
        %2968 = vmatprep.subr.mxu0 0.0
        %2969 = vmatpush1.msra.mxu0 0.0
        %2970 = vmatprep.subr.mxu0 0.0
        %2971 = vmatpush1.msra.mxu0 0.0
        %2972 = vmatprep.subr.mxu0 0.0
        %2973 = vmatpush1.msra.mxu0 0.0
        %2974 = vmatprep.subr.mxu0 0.0
        %2975 = vmatpush1.msra.mxu0 0.0
        %2976 = vmatprep.subr.mxu0 0.0
        %2977 = vmatpush1.msra.mxu0 0.0
        %2978 = vmatprep.subr.mxu0 0.0
        %2979 = vmatpush1.msra.mxu0 0.0
        %2980 = vmatprep.subr.mxu0 0.0
        %2981 = vmatpush1.msra.mxu0 0.0
        %2982 = vmatprep.subr.mxu0 0.0
        %2983 = vmatpush1.msra.mxu0 0.0
        %2984 = vmatprep.subr.mxu0 0.0
        %2985 = vmatpush1.msra.mxu0 0.0
        %2986 = vmatprep.subr.mxu0 0.0
        %2987 = vmatpush1.msra.mxu0 %v2579
        %2988 = vmatprep.subr.mxu0 0.0
        %2989 = vmatpush2.msra.mxu0 0.0
        %2990 = vmatprep.subr.mxu0 0.0
        %2991 = vmatpush2.msra.mxu0 0.0
        %2992 = vmatprep.subr.mxu0 0.0
        %2993 = vmatpush2.msra.mxu0 0.0
        %2994 = vmatprep.subr.mxu0 0.0
        %2995 = vmatpush2.msra.mxu0 0.0
        %2996 = vmatprep.subr.mxu0 0.0
        %2997 = vmatpush2.msra.mxu0 0.0
        %2998 = vmatprep.subr.mxu0 0.0
        %2999 = vmatpush2.msra.mxu0 0.0
        %3000 = vmatprep.subr.mxu0 0.0
        %3001 = vmatpush2.msra.mxu0 0.0
        %3002 = vmatprep.subr.mxu0 0.0
        %3003 = vmatpush2.msra.mxu0 0.0
        %3004 = vmatprep.subr.mxu0 0.0
        %3005 = vmatpush2.msra.mxu0 0.0
        %3006 = vmatprep.subr.mxu0 0.0
        %3007 = vmatpush2.msra.mxu0 0.0
        %3008 = vmatprep.subr.mxu0 0.0
        %3009 = vmatpush2.msra.mxu0 0.0
        %3010 = vmatprep.subr.mxu0 0.0
        %3011 = vmatpush2.msra.mxu0 0.0
        %3012 = vmatprep.subr.mxu0 0.0
        %3013 = vmatpush2.msra.mxu0 0.0
        %3014 = vmatprep.subr.mxu0 0.0
        %3015 = vmatpush2.msra.mxu0 0.0
        %3016 = vmatprep.subr.mxu0 0.0
        %3017 = vmatpush2.msra.mxu0 0.0
        %3018 = vmatprep.subr.mxu0 0.0
        %3019 = vmatpush2.msra.mxu0 0.0
        %3020 = vmatprep.mubr.f32.mxu0 0.0
        %3021 = vmatmul.mubr.f32.gmra.mxu0 %v2954
        %v3022 = vpop.f32.mrf.mxu0
        %v3023 = vadd.f32 %v1360, %v3022
        %v3024 = vpop.f32.mrf.mxu0
        %3025 = vdwg.mxu0
        %v3026 = vsel %vm1362, %v2804, -inf
        %3027 = vmax.xlane.f32.xlu0 %v3026
        %v3028 = vpop.xlane.xlu0 %3027
        %v3029 = vsel %vm1362, %v2877, -inf
        %3030 = vmax.xlane.f32.xlu0 %v3029
        %v3031 = vpop.xlane.xlu0 %3030
        %v3032 = vsel %vm1362, %v2950, -inf
        %3033 = vmax.xlane.f32.xlu0 %v3032
        %v3034 = vpop.xlane.xlu0 %3033
        %v3035 = vsel %vm1362, %v3023, -inf
        %3036 = vmax.xlane.f32.xlu0 %v3035
        %v3037 = vpop.xlane.xlu0 %3036
        %v3038 = vsub.f32 %v2804, %v3028
        %v3039 = vsub.f32 %v2877, %v3031
        %v3040 = vsub.f32 %v2950, %v3034
        %v3041 = vsub.f32 %v3023, %v3037
        %v3042 = vmul.f32 %v3038, 1.442695
        %v3043 = vpow.pop %v3042
        %v3044 = vmul.f32 %v3039, 1.442695
        %v3045 = vpow.pop %v3044
        %v3046 = vmul.f32 %v3040, 1.442695
        %v3047 = vpow.pop %v3046
        %v3048 = vmul.f32 %v3041, 1.442695
        %v3049 = vpow.pop %v3048
        %v3050 = vsel %vm1362, %v3043, 0.0
        %3051 = vadd.xlane.f32.xlu0 %v3050
        %v3052 = vpop.xlane.xlu0 %3051
        %v3053 = vsel %vm1362, %v3045, 0.0
        %3054 = vadd.xlane.f32.xlu0 %v3053
        %v3055 = vpop.xlane.xlu0 %3054
        %v3056 = vsel %vm1362, %v3047, 0.0
        %3057 = vadd.xlane.f32.xlu0 %v3056
        %v3058 = vpop.xlane.xlu0 %3057
        %v3059 = vsel %vm1362, %v3049, 0.0
        %3060 = vadd.xlane.f32.xlu0 %v3059
        %v3061 = vpop.xlane.xlu0 %3060
        %v3062 = vrcp.pop %v3052
        %v3063 = vrcp.pop %v3055
        %v3064 = vrcp.pop %v3058
        %v3065 = vrcp.pop %v3061
        %v3066 = vmul.f32 %v3043, %v3062
        %v3067 = vmul.f32 %v3045, %v3063
        %v3068 = vmul.f32 %v3047, %v3064
        %v3069 = vmul.f32 %v3049, %v3065
        %v3071 = vsel %vm1362, %v2584, 0
        %v3074 = vsel %vm1362, %v3066, 0
        %3076 = vmatprep.subr.mxu0 0.0
        %3077 = vmatpush1.xpose.msra.mxu0 0.0
        %3078 = vmatprep.subr.mxu0 0.0
        %3079 = vmatpush1.xpose.msra.mxu0 0.0
        %3080 = vmatprep.subr.mxu0 0.0
        %3081 = vmatpush1.xpose.msra.mxu0 0.0
        %3082 = vmatprep.subr.mxu0 0.0
        %3083 = vmatpush1.xpose.msra.mxu0 0.0
        %3084 = vmatprep.subr.mxu0 0.0
        %3085 = vmatpush1.xpose.msra.mxu0 0.0
        %3086 = vmatprep.subr.mxu0 0.0
        %3087 = vmatpush1.xpose.msra.mxu0 0.0
        %3088 = vmatprep.subr.mxu0 0.0
        %3089 = vmatpush1.xpose.msra.mxu0 0.0
        %3090 = vmatprep.subr.mxu0 0.0
        %3091 = vmatpush1.xpose.msra.mxu0 0.0
        %3092 = vmatprep.subr.mxu0 0.0
        %3093 = vmatpush1.xpose.msra.mxu0 0.0
        %3094 = vmatprep.subr.mxu0 0.0
        %3095 = vmatpush1.xpose.msra.mxu0 0.0
        %3096 = vmatprep.subr.mxu0 0.0
        %3097 = vmatpush1.xpose.msra.mxu0 0.0
        %3098 = vmatprep.subr.mxu0 0.0
        %3099 = vmatpush1.xpose.msra.mxu0 0.0
        %3100 = vmatprep.subr.mxu0 0.0
        %3101 = vmatpush1.xpose.msra.mxu0 0.0
        %3102 = vmatprep.subr.mxu0 0.0
        %3103 = vmatpush1.xpose.msra.mxu0 0.0
        %3104 = vmatprep.subr.mxu0 0.0
        %3105 = vmatpush1.xpose.msra.mxu0 0.0
        %3106 = vmatprep.subr.mxu0 0.0
        %3107 = vmatpush1.xpose.msra.mxu0 %v3074
        %3108 = vmatprep.subr.mxu0 0.0
        %3109 = vmatpush2.xpose.msra.mxu0 0.0
        %3110 = vmatprep.subr.mxu0 0.0
        %3111 = vmatpush2.xpose.msra.mxu0 0.0
        %3112 = vmatprep.subr.mxu0 0.0
        %3113 = vmatpush2.xpose.msra.mxu0 0.0
        %3114 = vmatprep.subr.mxu0 0.0
        %3115 = vmatpush2.xpose.msra.mxu0 0.0
        %3116 = vmatprep.subr.mxu0 0.0
        %3117 = vmatpush2.xpose.msra.mxu0 0.0
        %3118 = vmatprep.subr.mxu0 0.0
        %3119 = vmatpush2.xpose.msra.mxu0 0.0
        %3120 = vmatprep.subr.mxu0 0.0
        %3121 = vmatpush2.xpose.msra.mxu0 0.0
        %3122 = vmatprep.subr.mxu0 0.0
        %3123 = vmatpush2.xpose.msra.mxu0 0.0
        %3124 = vmatprep.subr.mxu0 0.0
        %3125 = vmatpush2.xpose.msra.mxu0 0.0
        %3126 = vmatprep.subr.mxu0 0.0
        %3127 = vmatpush2.xpose.msra.mxu0 0.0
        %3128 = vmatprep.subr.mxu0 0.0
        %3129 = vmatpush2.xpose.msra.mxu0 0.0
        %3130 = vmatprep.subr.mxu0 0.0
        %3131 = vmatpush2.xpose.msra.mxu0 0.0
        %3132 = vmatprep.subr.mxu0 0.0
        %3133 = vmatpush2.xpose.msra.mxu0 0.0
        %3134 = vmatprep.subr.mxu0 0.0
        %3135 = vmatpush2.xpose.msra.mxu0 0.0
        %3136 = vmatprep.subr.mxu0 0.0
        %3137 = vmatpush2.xpose.msra.mxu0 0.0
        %3138 = vmatprep.subr.mxu0 0.0
        %3139 = vmatpush2.xpose.msra.mxu0 0.0
        %3140 = vmatprep.mubr.f32.mxu0 0.0
        %3141 = vmatmul.mubr.f32.gmra.mxu0 %v3071
        %v3142 = vpop.f32.mrf.mxu0
        %v3143 = vadd.f32 0.0, %v3142
        %v3144 = vpop.f32.mrf.mxu0
        %3145 = vdwg.mxu0
        %v3147 = vsel %vm1362, %v2589, 0
        %v3150 = vsel %vm1362, %v3067, 0
        %3152 = vmatprep.subr.mxu0 0.0
        %3153 = vmatpush1.xpose.msra.mxu0 0.0
        %3154 = vmatprep.subr.mxu0 0.0
        %3155 = vmatpush1.xpose.msra.mxu0 0.0
        %3156 = vmatprep.subr.mxu0 0.0
        %3157 = vmatpush1.xpose.msra.mxu0 0.0
        %3158 = vmatprep.subr.mxu0 0.0
        %3159 = vmatpush1.xpose.msra.mxu0 0.0
        %3160 = vmatprep.subr.mxu0 0.0
        %3161 = vmatpush1.xpose.msra.mxu0 0.0
        %3162 = vmatprep.subr.mxu0 0.0
        %3163 = vmatpush1.xpose.msra.mxu0 0.0
        %3164 = vmatprep.subr.mxu0 0.0
        %3165 = vmatpush1.xpose.msra.mxu0 0.0
        %3166 = vmatprep.subr.mxu0 0.0
        %3167 = vmatpush1.xpose.msra.mxu0 0.0
        %3168 = vmatprep.subr.mxu0 0.0
        %3169 = vmatpush1.xpose.msra.mxu0 0.0
        %3170 = vmatprep.subr.mxu0 0.0
        %3171 = vmatpush1.xpose.msra.mxu0 0.0
        %3172 = vmatprep.subr.mxu0 0.0
        %3173 = vmatpush1.xpose.msra.mxu0 0.0
        %3174 = vmatprep.subr.mxu0 0.0
        %3175 = vmatpush1.xpose.msra.mxu0 0.0
        %3176 = vmatprep.subr.mxu0 0.0
        %3177 = vmatpush1.xpose.msra.mxu0 0.0
        %3178 = vmatprep.subr.mxu0 0.0
        %3179 = vmatpush1.xpose.msra.mxu0 0.0
        %3180 = vmatprep.subr.mxu0 0.0
        %3181 = vmatpush1.xpose.msra.mxu0 0.0
        %3182 = vmatprep.subr.mxu0 0.0
        %3183 = vmatpush1.xpose.msra.mxu0 %v3150
        %3184 = vmatprep.subr.mxu0 0.0
        %3185 = vmatpush2.xpose.msra.mxu0 0.0
        %3186 = vmatprep.subr.mxu0 0.0
        %3187 = vmatpush2.xpose.msra.mxu0 0.0
        %3188 = vmatprep.subr.mxu0 0.0
        %3189 = vmatpush2.xpose.msra.mxu0 0.0
        %3190 = vmatprep.subr.mxu0 0.0
        %3191 = vmatpush2.xpose.msra.mxu0 0.0
        %3192 = vmatprep.subr.mxu0 0.0
        %3193 = vmatpush2.xpose.msra.mxu0 0.0
        %3194 = vmatprep.subr.mxu0 0.0
        %3195 = vmatpush2.xpose.msra.mxu0 0.0
        %3196 = vmatprep.subr.mxu0 0.0
        %3197 = vmatpush2.xpose.msra.mxu0 0.0
        %3198 = vmatprep.subr.mxu0 0.0
        %3199 = vmatpush2.xpose.msra.mxu0 0.0
        %3200 = vmatprep.subr.mxu0 0.0
        %3201 = vmatpush2.xpose.msra.mxu0 0.0
        %3202 = vmatprep.subr.mxu0 0.0
        %3203 = vmatpush2.xpose.msra.mxu0 0.0
        %3204 = vmatprep.subr.mxu0 0.0
        %3205 = vmatpush2.xpose.msra.mxu0 0.0
        %3206 = vmatprep.subr.mxu0 0.0
        %3207 = vmatpush2.xpose.msra.mxu0 0.0
        %3208 = vmatprep.subr.mxu0 0.0
        %3209 = vmatpush2.xpose.msra.mxu0 0.0
        %3210 = vmatprep.subr.mxu0 0.0
        %3211 = vmatpush2.xpose.msra.mxu0 0.0
        %3212 = vmatprep.subr.mxu0 0.0
        %3213 = vmatpush2.xpose.msra.mxu0 0.0
        %3214 = vmatprep.subr.mxu0 0.0
        %3215 = vmatpush2.xpose.msra.mxu0 0.0
        %3216 = vmatprep.mubr.f32.mxu0 0.0
        %3217 = vmatmul.mubr.f32.gmra.mxu0 %v3147
        %v3218 = vpop.f32.mrf.mxu0
        %v3219 = vadd.f32 0.0, %v3218
        %v3220 = vpop.f32.mrf.mxu0
        %3221 = vdwg.mxu0
        %v3223 = vsel %vm1362, %v2594, 0
        %v3226 = vsel %vm1362, %v3068, 0
        %3228 = vmatprep.subr.mxu0 0.0
        %3229 = vmatpush1.xpose.msra.mxu0 0.0
        %3230 = vmatprep.subr.mxu0 0.0
        %3231 = vmatpush1.xpose.msra.mxu0 0.0
        %3232 = vmatprep.subr.mxu0 0.0
        %3233 = vmatpush1.xpose.msra.mxu0 0.0
        %3234 = vmatprep.subr.mxu0 0.0
        %3235 = vmatpush1.xpose.msra.mxu0 0.0
        %3236 = vmatprep.subr.mxu0 0.0
        %3237 = vmatpush1.xpose.msra.mxu0 0.0
        %3238 = vmatprep.subr.mxu0 0.0
        %3239 = vmatpush1.xpose.msra.mxu0 0.0
        %3240 = vmatprep.subr.mxu0 0.0
        %3241 = vmatpush1.xpose.msra.mxu0 0.0
        %3242 = vmatprep.subr.mxu0 0.0
        %3243 = vmatpush1.xpose.msra.mxu0 0.0
        %3244 = vmatprep.subr.mxu0 0.0
        %3245 = vmatpush1.xpose.msra.mxu0 0.0
        %3246 = vmatprep.subr.mxu0 0.0
        %3247 = vmatpush1.xpose.msra.mxu0 0.0
        %3248 = vmatprep.subr.mxu0 0.0
        %3249 = vmatpush1.xpose.msra.mxu0 0.0
        %3250 = vmatprep.subr.mxu0 0.0
        %3251 = vmatpush1.xpose.msra.mxu0 0.0
        %3252 = vmatprep.subr.mxu0 0.0
        %3253 = vmatpush1.xpose.msra.mxu0 0.0
        %3254 = vmatprep.subr.mxu0 0.0
        %3255 = vmatpush1.xpose.msra.mxu0 0.0
        %3256 = vmatprep.subr.mxu0 0.0
        %3257 = vmatpush1.xpose.msra.mxu0 0.0
        %3258 = vmatprep.subr.mxu0 0.0
        %3259 = vmatpush1.xpose.msra.mxu0 %v3226
        %3260 = vmatprep.subr.mxu0 0.0
        %3261 = vmatpush2.xpose.msra.mxu0 0.0
        %3262 = vmatprep.subr.mxu0 0.0
        %3263 = vmatpush2.xpose.msra.mxu0 0.0
        %3264 = vmatprep.subr.mxu0 0.0
        %3265 = vmatpush2.xpose.msra.mxu0 0.0
        %3266 = vmatprep.subr.mxu0 0.0
        %3267 = vmatpush2.xpose.msra.mxu0 0.0
        %3268 = vmatprep.subr.mxu0 0.0
        %3269 = vmatpush2.xpose.msra.mxu0 0.0
        %3270 = vmatprep.subr.mxu0 0.0
        %3271 = vmatpush2.xpose.msra.mxu0 0.0
        %3272 = vmatprep.subr.mxu0 0.0
        %3273 = vmatpush2.xpose.msra.mxu0 0.0
        %3274 = vmatprep.subr.mxu0 0.0
        %3275 = vmatpush2.xpose.msra.mxu0 0.0
        %3276 = vmatprep.subr.mxu0 0.0
        %3277 = vmatpush2.xpose.msra.mxu0 0.0
        %3278 = vmatprep.subr.mxu0 0.0
        %3279 = vmatpush2.xpose.msra.mxu0 0.0
        %3280 = vmatprep.subr.mxu0 0.0
        %3281 = vmatpush2.xpose.msra.mxu0 0.0
        %3282 = vmatprep.subr.mxu0 0.0
        %3283 = vmatpush2.xpose.msra.mxu0 0.0
        %3284 = vmatprep.subr.mxu0 0.0
        %3285 = vmatpush2.xpose.msra.mxu0 0.0
        %3286 = vmatprep.subr.mxu0 0.0
        %3287 = vmatpush2.xpose.msra.mxu0 0.0
        %3288 = vmatprep.subr.mxu0 0.0
        %3289 = vmatpush2.xpose.msra.mxu0 0.0
        %3290 = vmatprep.subr.mxu0 0.0
        %3291 = vmatpush2.xpose.msra.mxu0 0.0
        %3292 = vmatprep.mubr.f32.mxu0 0.0
        %3293 = vmatmul.mubr.f32.gmra.mxu0 %v3223
        %v3294 = vpop.f32.mrf.mxu0
        %v3295 = vadd.f32 0.0, %v3294
        %v3296 = vpop.f32.mrf.mxu0
        %3297 = vdwg.mxu0
        %v3299 = vsel %vm1362, %v2599, 0
        %v3302 = vsel %vm1362, %v3069, 0
        %3304 = vmatprep.subr.mxu0 0.0
        %3305 = vmatpush1.xpose.msra.mxu0 0.0
        %3306 = vmatprep.subr.mxu0 0.0
        %3307 = vmatpush1.xpose.msra.mxu0 0.0
        %3308 = vmatprep.subr.mxu0 0.0
        %3309 = vmatpush1.xpose.msra.mxu0 0.0
        %3310 = vmatprep.subr.mxu0 0.0
        %3311 = vmatpush1.xpose.msra.mxu0 0.0
        %3312 = vmatprep.subr.mxu0 0.0
        %3313 = vmatpush1.xpose.msra.mxu0 0.0
        %3314 = vmatprep.subr.mxu0 0.0
        %3315 = vmatpush1.xpose.msra.mxu0 0.0
        %3316 = vmatprep.subr.mxu0 0.0
        %3317 = vmatpush1.xpose.msra.mxu0 0.0
        %3318 = vmatprep.subr.mxu0 0.0
        %3319 = vmatpush1.xpose.msra.mxu0 0.0
        %3320 = vmatprep.subr.mxu0 0.0
        %3321 = vmatpush1.xpose.msra.mxu0 0.0
        %3322 = vmatprep.subr.mxu0 0.0
        %3323 = vmatpush1.xpose.msra.mxu0 0.0
        %3324 = vmatprep.subr.mxu0 0.0
        %3325 = vmatpush1.xpose.msra.mxu0 0.0
        %3326 = vmatprep.subr.mxu0 0.0
        %3327 = vmatpush1.xpose.msra.mxu0 0.0
        %3328 = vmatprep.subr.mxu0 0.0
        %3329 = vmatpush1.xpose.msra.mxu0 0.0
        %3330 = vmatprep.subr.mxu0 0.0
        %3331 = vmatpush1.xpose.msra.mxu0 0.0
        %3332 = vmatprep.subr.mxu0 0.0
        %3333 = vmatpush1.xpose.msra.mxu0 0.0
        %3334 = vmatprep.subr.mxu0 0.0
        %3335 = vmatpush1.xpose.msra.mxu0 %v3302
        %3336 = vmatprep.subr.mxu0 0.0
        %3337 = vmatpush2.xpose.msra.mxu0 0.0
        %3338 = vmatprep.subr.mxu0 0.0
        %3339 = vmatpush2.xpose.msra.mxu0 0.0
        %3340 = vmatprep.subr.mxu0 0.0
        %3341 = vmatpush2.xpose.msra.mxu0 0.0
        %3342 = vmatprep.subr.mxu0 0.0
        %3343 = vmatpush2.xpose.msra.mxu0 0.0
        %3344 = vmatprep.subr.mxu0 0.0
        %3345 = vmatpush2.xpose.msra.mxu0 0.0
        %3346 = vmatprep.subr.mxu0 0.0
        %3347 = vmatpush2.xpose.msra.mxu0 0.0
        %3348 = vmatprep.subr.mxu0 0.0
        %3349 = vmatpush2.xpose.msra.mxu0 0.0
        %3350 = vmatprep.subr.mxu0 0.0
        %3351 = vmatpush2.xpose.msra.mxu0 0.0
        %3352 = vmatprep.subr.mxu0 0.0
        %3353 = vmatpush2.xpose.msra.mxu0 0.0
        %3354 = vmatprep.subr.mxu0 0.0
        %3355 = vmatpush2.xpose.msra.mxu0 0.0
        %3356 = vmatprep.subr.mxu0 0.0
        %3357 = vmatpush2.xpose.msra.mxu0 0.0
        %3358 = vmatprep.subr.mxu0 0.0
        %3359 = vmatpush2.xpose.msra.mxu0 0.0
        %3360 = vmatprep.subr.mxu0 0.0
        %3361 = vmatpush2.xpose.msra.mxu0 0.0
        %3362 = vmatprep.subr.mxu0 0.0
        %3363 = vmatpush2.xpose.msra.mxu0 0.0
        %3364 = vmatprep.subr.mxu0 0.0
        %3365 = vmatpush2.xpose.msra.mxu0 0.0
        %3366 = vmatprep.subr.mxu0 0.0
        %3367 = vmatpush2.xpose.msra.mxu0 0.0
        %3368 = vmatprep.mubr.f32.mxu0 0.0
        %3369 = vmatmul.mubr.f32.gmra.mxu0 %v3299
        %v3370 = vpop.f32.mrf.mxu0
        %v3371 = vadd.f32 0.0, %v3370
        %v3372 = vpop.f32.mrf.mxu0
        %3373 = vdwg.mxu0
        %3374 = vxpose.xlu0.b32.start [1/16] %v3143, 128
        %3375 = vxpose.xlu0.b32.cont [2/16] %v3219, 128
        %3376 = vxpose.xlu0.b32.cont [3/16] %v3295, 128
        %3377 = vxpose.xlu0.b32.cont [4/16] %v3371, 128
        %3378 = vxpose.xlu0.b32.cont [5/16] 0.0, 128
        %3379 = vxpose.xlu0.b32.cont [6/16] 0.0, 128
        %3380 = vxpose.xlu0.b32.cont [7/16] 0.0, 128
        %3381 = vxpose.xlu0.b32.cont [8/16] 0.0, 128
        %3382 = vxpose.xlu0.b32.cont [9/16] 0.0, 128
        %3383 = vxpose.xlu0.b32.cont [10/16] 0.0, 128
        %3384 = vxpose.xlu0.b32.cont [11/16] 0.0, 128
        %3385 = vxpose.xlu0.b32.cont [12/16] 0.0, 128
        %3386 = vxpose.xlu0.b32.cont [13/16] 0.0, 128
        %3387 = vxpose.xlu0.b32.cont [14/16] 0.0, 128
        %3388 = vxpose.xlu0.b32.cont [15/16] 0.0, 128
        %3389 = vxpose.xlu0.b32.end [16/16] 0.0, 128
        %v3390 = vpop.trf.xlu0
        %v3391 = vpop.trf.xlu0
        %v3392 = vpop.trf.xlu0
        %v3393 = vpop.trf.xlu0
        %v3394 = vpop.trf.xlu0
        %v3395 = vpop.trf.xlu0
        %v3396 = vpop.trf.xlu0
        %v3397 = vpop.trf.xlu0
        %v3398 = vpop.trf.xlu0
        %v3399 = vpop.trf.xlu0
        %v3400 = vpop.trf.xlu0
        %v3401 = vpop.trf.xlu0
        %v3402 = vpop.trf.xlu0
        %v3403 = vpop.trf.xlu0
        %v3404 = vpop.trf.xlu0
        %v3405 = vpop.trf.xlu0
        %v3406 = vld [vmem:[%s35] sm:$0xff]
        %v3407 = vld [vmem:[%s35 + $0x8] sm:$0xff]
        %v3408 = vld [vmem:[%s35 + $0x10] sm:$0xff]
        %v3409 = vld [vmem:[%s35 + $0x18] sm:$0xff]
        %v3410 = vld [vmem:[%s37] sm:$0x1]
        %v3412 = vlaneseq
        %v3413 = vshrl.u32 %v3412, 7
        %v3414 = vsub.s32 0, %v3413
        %v3415 = vrot.slane %v3410, %v3414
        %v3418 = vsel %vm1059, %v3390, 0
        %3420 = vmatprep.subr.mxu0 0.0
        %3421 = vmatpush1.msra.mxu0 0.0
        %3422 = vmatprep.subr.mxu0 0.0
        %3423 = vmatpush1.msra.mxu0 0.0
        %3424 = vmatprep.subr.mxu0 0.0
        %3425 = vmatpush1.msra.mxu0 0.0
        %3426 = vmatprep.subr.mxu0 0.0
        %3427 = vmatpush1.msra.mxu0 0.0
        %3428 = vmatprep.subr.mxu0 0.0
        %3429 = vmatpush1.msra.mxu0 0.0
        %3430 = vmatprep.subr.mxu0 0.0
        %3431 = vmatpush1.msra.mxu0 0.0
        %3432 = vmatprep.subr.mxu0 0.0
        %3433 = vmatpush1.msra.mxu0 0.0
        %3434 = vmatprep.subr.mxu0 0.0
        %3435 = vmatpush1.msra.mxu0 0.0
        %3436 = vmatprep.subr.mxu0 0.0
        %3437 = vmatpush1.msra.mxu0 0.0
        %3438 = vmatprep.subr.mxu0 0.0
        %3439 = vmatpush1.msra.mxu0 0.0
        %3440 = vmatprep.subr.mxu0 0.0
        %3441 = vmatpush1.msra.mxu0 0.0
        %3442 = vmatprep.subr.mxu0 0.0
        %3443 = vmatpush1.msra.mxu0 0.0
        %3444 = vmatprep.subr.mxu0 0.0
        %3445 = vmatpush1.msra.mxu0 %v3409
        %3446 = vmatprep.subr.mxu0 0.0
        %3447 = vmatpush1.msra.mxu0 %v3408
        %3448 = vmatprep.subr.mxu0 0.0
        %3449 = vmatpush1.msra.mxu0 %v3407
        %3450 = vmatprep.subr.mxu0 0.0
        %3451 = vmatpush1.msra.mxu0 %v3406
        %3452 = vmatprep.subr.mxu0 0.0
        %3453 = vmatpush2.msra.mxu0 0.0
        %3454 = vmatprep.subr.mxu0 0.0
        %3455 = vmatpush2.msra.mxu0 0.0
        %3456 = vmatprep.subr.mxu0 0.0
        %3457 = vmatpush2.msra.mxu0 0.0
        %3458 = vmatprep.subr.mxu0 0.0
        %3459 = vmatpush2.msra.mxu0 0.0
        %3460 = vmatprep.subr.mxu0 0.0
        %3461 = vmatpush2.msra.mxu0 0.0
        %3462 = vmatprep.subr.mxu0 0.0
        %3463 = vmatpush2.msra.mxu0 0.0
        %3464 = vmatprep.subr.mxu0 0.0
        %3465 = vmatpush2.msra.mxu0 0.0
        %3466 = vmatprep.subr.mxu0 0.0
        %3467 = vmatpush2.msra.mxu0 0.0
        %3468 = vmatprep.subr.mxu0 0.0
        %3469 = vmatpush2.msra.mxu0 0.0
        %3470 = vmatprep.subr.mxu0 0.0
        %3471 = vmatpush2.msra.mxu0 0.0
        %3472 = vmatprep.subr.mxu0 0.0
        %3473 = vmatpush2.msra.mxu0 0.0
        %3474 = vmatprep.subr.mxu0 0.0
        %3475 = vmatpush2.msra.mxu0 0.0
        %3476 = vmatprep.subr.mxu0 0.0
        %3477 = vmatpush2.msra.mxu0 0.0
        %3478 = vmatprep.subr.mxu0 0.0
        %3479 = vmatpush2.msra.mxu0 0.0
        %3480 = vmatprep.subr.mxu0 0.0
        %3481 = vmatpush2.msra.mxu0 0.0
        %3482 = vmatprep.subr.mxu0 0.0
        %3483 = vmatpush2.msra.mxu0 0.0
        %3484 = vmatprep.mubr.f32.mxu0 0.0
        %3485 = vmatmul.mubr.f32.gmra.mxu0 %v3418
        %v3486 = vpop.f32.mrf.mxu0
        %v3487 = vadd.f32 %v3415, %v3486
        %v3488 = vpop.f32.mrf.mxu0
        %3489 = vdwg.mxu0
        %v3490 = vadd.f32 %v2353, %v3487
        %v3491 = vld [vmem:[%s39] sm:$0x1]
        %v3492 = vld [vmem:[%s41] sm:$0x1]
        %v3493 = vsel %vm1059, %v3490, 0.0
        %3494 = vadd.xlane.f32.xlu0 %v3493
        %v3495 = vpop.xlane.xlu0 %3494
        %v3496 = vmul.f32 %v3495, %v2125
        %v3497 = vsub.f32 %v3490, %v3496
        %v3498 = vmul.f32 %v3497, %v3497
        %v3499 = vsel %vm1059, %v3498, 0.0
        %3500 = vadd.xlane.f32.xlu0 %v3499
        %v3501 = vpop.xlane.xlu0 %3500
        %v3502 = vmul.f32 %v3501, %v2125
        %v3503 = vadd.f32 %v3502, 1e-05
        %v3504 = vrsqrt.pop %v3503
        %v3505 = vmul.f32 %v3497, %v3504
        %v3507 = vlaneseq
        %v3508 = vshrl.u32 %v3507, 7
        %v3509 = vsub.s32 0, %v3508
        %v3510 = vrot.slane %v3491, %v3509
        %v3512 = vmul.f32 %v3505, %v3510
        %v3514 = vlaneseq
        %v3515 = vshrl.u32 %v3514, 7
        %v3516 = vsub.s32 0, %v3515
        %v3517 = vrot.slane %v3492, %v3516
        %v3519 = vadd.f32 %v3512, %v3517
        %v3520 = vld [vmem:[%s43] sm:$0xff]
        %v3521 = vld [vmem:[%s43 + $0x8] sm:$0xff]
        %v3522 = vld [vmem:[%s43 + $0x10] sm:$0xff]
        %v3523 = vld [vmem:[%s43 + $0x18] sm:$0xff]
        %v3524 = vld [vmem:[%s45] sm:$0x1]
        %v3526 = vlaneseq
        %v3527 = vshrl.u32 %v3526, 7
        %v3528 = vsub.s32 0, %v3527
        %v3529 = vrot.slane %v3524, %v3528
        %v3532 = vsel %vm1059, %v3519, 0
        %3534 = vmatprep.subr.mxu0 0.0
        %3535 = vmatpush1.msra.mxu0 0.0
        %3536 = vmatprep.subr.mxu0 0.0
        %3537 = vmatpush1.msra.mxu0 0.0
        %3538 = vmatprep.subr.mxu0 0.0
        %3539 = vmatpush1.msra.mxu0 0.0
        %3540 = vmatprep.subr.mxu0 0.0
        %3541 = vmatpush1.msra.mxu0 0.0
        %3542 = vmatprep.subr.mxu0 0.0
        %3543 = vmatpush1.msra.mxu0 0.0
        %3544 = vmatprep.subr.mxu0 0.0
        %3545 = vmatpush1.msra.mxu0 0.0
        %3546 = vmatprep.subr.mxu0 0.0
        %3547 = vmatpush1.msra.mxu0 0.0
        %3548 = vmatprep.subr.mxu0 0.0
        %3549 = vmatpush1.msra.mxu0 0.0
        %3550 = vmatprep.subr.mxu0 0.0
        %3551 = vmatpush1.msra.mxu0 0.0
        %3552 = vmatprep.subr.mxu0 0.0
        %3553 = vmatpush1.msra.mxu0 0.0
        %3554 = vmatprep.subr.mxu0 0.0
        %3555 = vmatpush1.msra.mxu0 0.0
        %3556 = vmatprep.subr.mxu0 0.0
        %3557 = vmatpush1.msra.mxu0 0.0
        %3558 = vmatprep.subr.mxu0 0.0
        %3559 = vmatpush1.msra.mxu0 %v3523
        %3560 = vmatprep.subr.mxu0 0.0
        %3561 = vmatpush1.msra.mxu0 %v3522
        %3562 = vmatprep.subr.mxu0 0.0
        %3563 = vmatpush1.msra.mxu0 %v3521
        %3564 = vmatprep.subr.mxu0 0.0
        %3565 = vmatpush1.msra.mxu0 %v3520
        %3566 = vmatprep.subr.mxu0 0.0
        %3567 = vmatpush2.msra.mxu0 0.0
        %3568 = vmatprep.subr.mxu0 0.0
        %3569 = vmatpush2.msra.mxu0 0.0
        %3570 = vmatprep.subr.mxu0 0.0
        %3571 = vmatpush2.msra.mxu0 0.0
        %3572 = vmatprep.subr.mxu0 0.0
        %3573 = vmatpush2.msra.mxu0 0.0
        %3574 = vmatprep.subr.mxu0 0.0
        %3575 = vmatpush2.msra.mxu0 0.0
        %3576 = vmatprep.subr.mxu0 0.0
        %3577 = vmatpush2.msra.mxu0 0.0
        %3578 = vmatprep.subr.mxu0 0.0
        %3579 = vmatpush2.msra.mxu0 0.0
        %3580 = vmatprep.subr.mxu0 0.0
        %3581 = vmatpush2.msra.mxu0 0.0
        %3582 = vmatprep.subr.mxu0 0.0
        %3583 = vmatpush2.msra.mxu0 0.0
        %3584 = vmatprep.subr.mxu0 0.0
        %3585 = vmatpush2.msra.mxu0 0.0
        %3586 = vmatprep.subr.mxu0 0.0
        %3587 = vmatpush2.msra.mxu0 0.0
        %3588 = vmatprep.subr.mxu0 0.0
        %3589 = vmatpush2.msra.mxu0 0.0
        %3590 = vmatprep.subr.mxu0 0.0
        %3591 = vmatpush2.msra.mxu0 0.0
        %3592 = vmatprep.subr.mxu0 0.0
        %3593 = vmatpush2.msra.mxu0 0.0
        %3594 = vmatprep.subr.mxu0 0.0
        %3595 = vmatpush2.msra.mxu0 0.0
        %3596 = vmatprep.subr.mxu0 0.0
        %3597 = vmatpush2.msra.mxu0 0.0
        %3598 = vmatprep.mubr.f32.mxu0 0.0
        %3599 = vmatmul.mubr.f32.gmra.mxu0 %v3532
        %v3600 = vpop.f32.mrf.mxu0
        %v3601 = vadd.f32 %v3529, %v3600
        %v3602 = vpop.f32.mrf.mxu0
        %3603 = vdwg.mxu0
        %v3604 = vmax.f32 %v3601, 0.0
        %v3605 = vld [vmem:[%s47] sm:$0xff]
        %v3606 = vld [vmem:[%s47 + $0x8] sm:$0xff]
        %v3607 = vld [vmem:[%s47 + $0x10] sm:$0xff]
        %v3608 = vld [vmem:[%s47 + $0x18] sm:$0xff]
        %v3609 = vld [vmem:[%s47 + $0x20] sm:$0xff]
        %v3610 = vld [vmem:[%s47 + $0x28] sm:$0xff]
        %v3611 = vld [vmem:[%s47 + $0x30] sm:$0xff]
        %v3612 = vld [vmem:[%s47 + $0x38] sm:$0xff]
        %v3613 = vld [vmem:[%s49] sm:$0x1]
        %v3615 = vlaneseq
        %v3616 = vshrl.u32 %v3615, 7
        %v3617 = vsub.s32 0, %v3616
        %v3618 = vrot.slane %v3613, %v3617
        %v3621 = vsel %vm2250, %v3604, 0
        %3623 = vmatprep.subr.mxu0 0.0
        %3624 = vmatpush1.msra.mxu0 0.0
        %3625 = vmatprep.subr.mxu0 0.0
        %3626 = vmatpush1.msra.mxu0 0.0
        %3627 = vmatprep.subr.mxu0 0.0
        %3628 = vmatpush1.msra.mxu0 0.0
        %3629 = vmatprep.subr.mxu0 0.0
        %3630 = vmatpush1.msra.mxu0 0.0
        %3631 = vmatprep.subr.mxu0 0.0
        %3632 = vmatpush1.msra.mxu0 0.0
        %3633 = vmatprep.subr.mxu0 0.0
        %3634 = vmatpush1.msra.mxu0 0.0
        %3635 = vmatprep.subr.mxu0 0.0
        %3636 = vmatpush1.msra.mxu0 0.0
        %3637 = vmatprep.subr.mxu0 0.0
        %3638 = vmatpush1.msra.mxu0 0.0
        %3639 = vmatprep.subr.mxu0 0.0
        %3640 = vmatpush1.msra.mxu0 %v3612
        %3641 = vmatprep.subr.mxu0 0.0
        %3642 = vmatpush1.msra.mxu0 %v3611
        %3643 = vmatprep.subr.mxu0 0.0
        %3644 = vmatpush1.msra.mxu0 %v3610
        %3645 = vmatprep.subr.mxu0 0.0
        %3646 = vmatpush1.msra.mxu0 %v3609
        %3647 = vmatprep.subr.mxu0 0.0
        %3648 = vmatpush1.msra.mxu0 %v3608
        %3649 = vmatprep.subr.mxu0 0.0
        %3650 = vmatpush1.msra.mxu0 %v3607
        %3651 = vmatprep.subr.mxu0 0.0
        %3652 = vmatpush1.msra.mxu0 %v3606
        %3653 = vmatprep.subr.mxu0 0.0
        %3654 = vmatpush1.msra.mxu0 %v3605
        %3655 = vmatprep.subr.mxu0 0.0
        %3656 = vmatpush2.msra.mxu0 0.0
        %3657 = vmatprep.subr.mxu0 0.0
        %3658 = vmatpush2.msra.mxu0 0.0
        %3659 = vmatprep.subr.mxu0 0.0
        %3660 = vmatpush2.msra.mxu0 0.0
        %3661 = vmatprep.subr.mxu0 0.0
        %3662 = vmatpush2.msra.mxu0 0.0
        %3663 = vmatprep.subr.mxu0 0.0
        %3664 = vmatpush2.msra.mxu0 0.0
        %3665 = vmatprep.subr.mxu0 0.0
        %3666 = vmatpush2.msra.mxu0 0.0
        %3667 = vmatprep.subr.mxu0 0.0
        %3668 = vmatpush2.msra.mxu0 0.0
        %3669 = vmatprep.subr.mxu0 0.0
        %3670 = vmatpush2.msra.mxu0 0.0
        %3671 = vmatprep.subr.mxu0 0.0
        %3672 = vmatpush2.msra.mxu0 0.0
        %3673 = vmatprep.subr.mxu0 0.0
        %3674 = vmatpush2.msra.mxu0 0.0
        %3675 = vmatprep.subr.mxu0 0.0
        %3676 = vmatpush2.msra.mxu0 0.0
        %3677 = vmatprep.subr.mxu0 0.0
        %3678 = vmatpush2.msra.mxu0 0.0
        %3679 = vmatprep.subr.mxu0 0.0
        %3680 = vmatpush2.msra.mxu0 0.0
        %3681 = vmatprep.subr.mxu0 0.0
        %3682 = vmatpush2.msra.mxu0 0.0
        %3683 = vmatprep.subr.mxu0 0.0
        %3684 = vmatpush2.msra.mxu0 0.0
        %3685 = vmatprep.subr.mxu0 0.0
        %3686 = vmatpush2.msra.mxu0 0.0
        %3687 = vmatprep.mubr.f32.mxu0 0.0
        %3688 = vmatmul.mubr.f32.gmra.mxu0 %v3621
        %v3689 = vpop.f32.mrf.mxu0
        %v3690 = vadd.f32 %v3618, %v3689
        %v3691 = vpop.f32.mrf.mxu0
        %3692 = vdwg.mxu0
        %v3693 = vadd.f32 %v3519, %v3690
        %v3694 = vld [vmem:[%s51] sm:$0x1]
        %v3695 = vld [vmem:[%s53] sm:$0x1]
        %v3696 = vsel %vm1059, %v3693, 0.0
        %3697 = vadd.xlane.f32.xlu0 %v3696
        %v3698 = vpop.xlane.xlu0 %3697
        %v3699 = vmul.f32 %v3698, %v2125
        %v3700 = vsub.f32 %v3693, %v3699
        %v3701 = vmul.f32 %v3700, %v3700
        %v3702 = vsel %vm1059, %v3701, 0.0
        %3703 = vadd.xlane.f32.xlu0 %v3702
        %v3704 = vpop.xlane.xlu0 %3703
        %v3705 = vmul.f32 %v3704, %v2125
        %v3706 = vadd.f32 %v3705, 1e-05
        %v3707 = vrsqrt.pop %v3706
        %v3708 = vmul.f32 %v3700, %v3707
        %v3710 = vlaneseq
        %v3711 = vshrl.u32 %v3710, 7
        %v3712 = vsub.s32 0, %v3711
        %v3713 = vrot.slane %v3694, %v3712
        %v3715 = vmul.f32 %v3708, %v3713
        %v3717 = vlaneseq
        %v3718 = vshrl.u32 %v3717, 7
        %v3719 = vsub.s32 0, %v3718
        %v3720 = vrot.slane %v3695, %v3719
        %v3722 = vadd.f32 %v3715, %v3720
        %v3723 = vld [vmem:[%s55] sm:$0xff]
        %v3724 = vld [vmem:[%s55 + $0x8] sm:$0xff]
        %v3725 = vld [vmem:[%s55 + $0x10] sm:$0xff]
        %v3726 = vld [vmem:[%s55 + $0x18] sm:$0xff]
        %v3727 = vld [vmem:[%s55 + $0x20] sm:$0xff]
        %v3728 = vld [vmem:[%s55 + $0x28] sm:$0xff]
        %v3729 = vld [vmem:[%s55 + $0x30] sm:$0xff]
        %v3730 = vld [vmem:[%s55 + $0x38] sm:$0xff]
        %v3731 = vld [vmem:[%s55 + $0x40] sm:$0xff]
        %v3732 = vld [vmem:[%s55 + $0x48] sm:$0xff]
        %v3733 = vld [vmem:[%s55 + $0x50] sm:$0xff]
        %v3734 = vld [vmem:[%s55 + $0x58] sm:$0xff]
        %v3735 = vld [vmem:[%s55 + $0x60] sm:$0xff]
        %v3736 = vld [vmem:[%s55 + $0x68] sm:$0xff]
        %v3737 = vld [vmem:[%s55 + $0x70] sm:$0xff]
        %v3738 = vld [vmem:[%s55 + $0x78] sm:$0xff]
        %v3739 = vld [vmem:[%s57] sm:$0xf]
        %v3741 = vlaneseq
        %v3742 = vshrl.u32 %v3741, 7
        %v3743 = vsub.s32 0, %v3742
        %v3744 = vrot.slane %v3739, %v3743
        %v3745 = vlaneseq
        %v3746 = vshrl.u32 %v3745, 7
        %v3747 = vsub.s32 1, %v3746
        %v3748 = vrot.slane %v3739, %v3747
        %v3749 = vlaneseq
        %v3750 = vshrl.u32 %v3749, 7
        %v3751 = vsub.s32 2, %v3750
        %v3752 = vrot.slane %v3739, %v3751
        %v3753 = vlaneseq
        %v3754 = vshrl.u32 %v3753, 7
        %v3755 = vsub.s32 3, %v3754
        %v3756 = vrot.slane %v3739, %v3755
        %v3762 = vsel %vm1059, %v3722, 0
        %3764 = vmatprep.subr.mxu0 0.0
        %3765 = vmatpush1.msra.mxu0 0.0
        %3766 = vmatprep.subr.mxu0 0.0
        %3767 = vmatpush1.msra.mxu0 0.0
        %3768 = vmatprep.subr.mxu0 0.0
        %3769 = vmatpush1.msra.mxu0 0.0
        %3770 = vmatprep.subr.mxu0 0.0
        %3771 = vmatpush1.msra.mxu0 0.0
        %3772 = vmatprep.subr.mxu0 0.0
        %3773 = vmatpush1.msra.mxu0 0.0
        %3774 = vmatprep.subr.mxu0 0.0
        %3775 = vmatpush1.msra.mxu0 0.0
        %3776 = vmatprep.subr.mxu0 0.0
        %3777 = vmatpush1.msra.mxu0 0.0
        %3778 = vmatprep.subr.mxu0 0.0
        %3779 = vmatpush1.msra.mxu0 0.0
        %3780 = vmatprep.subr.mxu0 0.0
        %3781 = vmatpush1.msra.mxu0 0.0
        %3782 = vmatprep.subr.mxu0 0.0
        %3783 = vmatpush1.msra.mxu0 0.0
        %3784 = vmatprep.subr.mxu0 0.0
        %3785 = vmatpush1.msra.mxu0 0.0
        %3786 = vmatprep.subr.mxu0 0.0
        %3787 = vmatpush1.msra.mxu0 0.0
        %3788 = vmatprep.subr.mxu0 %v3736
        %3789 = vmatpush1.msra.mxu0 %v3735
        %3790 = vmatprep.subr.mxu0 %v3732
        %3791 = vmatpush1.msra.mxu0 %v3731
        %3792 = vmatprep.subr.mxu0 %v3728
        %3793 = vmatpush1.msra.mxu0 %v3727
        %3794 = vmatprep.subr.mxu0 %v3724
        %3795 = vmatpush1.msra.mxu0 %v3723
        %3796 = vmatprep.subr.mxu0 0.0
        %3797 = vmatpush2.msra.mxu0 0.0
        %3798 = vmatprep.subr.mxu0 0.0
        %3799 = vmatpush2.msra.mxu0 0.0
        %3800 = vmatprep.subr.mxu0 0.0
        %3801 = vmatpush2.msra.mxu0 0.0
        %3802 = vmatprep.subr.mxu0 0.0
        %3803 = vmatpush2.msra.mxu0 0.0
        %3804 = vmatprep.subr.mxu0 0.0
        %3805 = vmatpush2.msra.mxu0 0.0
        %3806 = vmatprep.subr.mxu0 0.0
        %3807 = vmatpush2.msra.mxu0 0.0
        %3808 = vmatprep.subr.mxu0 0.0
        %3809 = vmatpush2.msra.mxu0 0.0
        %3810 = vmatprep.subr.mxu0 0.0
        %3811 = vmatpush2.msra.mxu0 0.0
        %3812 = vmatprep.subr.mxu0 0.0
        %3813 = vmatpush2.msra.mxu0 0.0
        %3814 = vmatprep.subr.mxu0 0.0
        %3815 = vmatpush2.msra.mxu0 0.0
        %3816 = vmatprep.subr.mxu0 0.0
        %3817 = vmatpush2.msra.mxu0 0.0
        %3818 = vmatprep.subr.mxu0 0.0
        %3819 = vmatpush2.msra.mxu0 0.0
        %3820 = vmatprep.subr.mxu0 0.0
        %3821 = vmatpush2.msra.mxu0 0.0
        %3822 = vmatprep.subr.mxu0 0.0
        %3823 = vmatpush2.msra.mxu0 0.0
        %3824 = vmatprep.subr.mxu0 0.0
        %3825 = vmatpush2.msra.mxu0 0.0
        %3826 = vmatprep.subr.mxu0 0.0
        %3827 = vmatpush2.msra.mxu0 0.0
        %3828 = vmatprep.mubr.f32.mxu0 0.0
        %3829 = vmatmul.mubr.f32.gmra.mxu0 %v3762
        %v3830 = vpop.f32.mrf.mxu0
        %v3831 = vadd.f32 %v3744, %v3830
        %v3832 = vpop.f32.mrf.mxu0
        %v3833 = vadd.f32 %v3748, %v3832
        %3834 = vdwg.mxu0
        %3835 = vmatprep.subr.mxu0 0.0
        %3836 = vmatpush1.msra.mxu0 0.0
        %3837 = vmatprep.subr.mxu0 0.0
        %3838 = vmatpush1.msra.mxu0 0.0
        %3839 = vmatprep.subr.mxu0 0.0
        %3840 = vmatpush1.msra.mxu0 0.0
        %3841 = vmatprep.subr.mxu0 0.0
        %3842 = vmatpush1.msra.mxu0 0.0
        %3843 = vmatprep.subr.mxu0 0.0
        %3844 = vmatpush1.msra.mxu0 0.0
        %3845 = vmatprep.subr.mxu0 0.0
        %3846 = vmatpush1.msra.mxu0 0.0
        %3847 = vmatprep.subr.mxu0 0.0
        %3848 = vmatpush1.msra.mxu0 0.0
        %3849 = vmatprep.subr.mxu0 0.0
        %3850 = vmatpush1.msra.mxu0 0.0
        %3851 = vmatprep.subr.mxu0 0.0
        %3852 = vmatpush1.msra.mxu0 0.0
        %3853 = vmatprep.subr.mxu0 0.0
        %3854 = vmatpush1.msra.mxu0 0.0
        %3855 = vmatprep.subr.mxu0 0.0
        %3856 = vmatpush1.msra.mxu0 0.0
        %3857 = vmatprep.subr.mxu0 0.0
        %3858 = vmatpush1.msra.mxu0 0.0
        %3859 = vmatprep.subr.mxu0 %v3738
        %3860 = vmatpush1.msra.mxu0 %v3737
        %3861 = vmatprep.subr.mxu0 %v3734
        %3862 = vmatpush1.msra.mxu0 %v3733
        %3863 = vmatprep.subr.mxu0 %v3730
        %3864 = vmatpush1.msra.mxu0 %v3729
        %3865 = vmatprep.subr.mxu0 %v3726
        %3866 = vmatpush1.msra.mxu0 %v3725
        %3867 = vmatprep.subr.mxu0 0.0
        %3868 = vmatpush2.msra.mxu0 0.0
        %3869 = vmatprep.subr.mxu0 0.0
        %3870 = vmatpush2.msra.mxu0 0.0
        %3871 = vmatprep.subr.mxu0 0.0
        %3872 = vmatpush2.msra.mxu0 0.0
        %3873 = vmatprep.subr.mxu0 0.0
        %3874 = vmatpush2.msra.mxu0 0.0
        %3875 = vmatprep.subr.mxu0 0.0
        %3876 = vmatpush2.msra.mxu0 0.0
        %3877 = vmatprep.subr.mxu0 0.0
        %3878 = vmatpush2.msra.mxu0 0.0
        %3879 = vmatprep.subr.mxu0 0.0
        %3880 = vmatpush2.msra.mxu0 0.0
        %3881 = vmatprep.subr.mxu0 0.0
        %3882 = vmatpush2.msra.mxu0 0.0
        %3883 = vmatprep.subr.mxu0 0.0
        %3884 = vmatpush2.msra.mxu0 0.0
        %3885 = vmatprep.subr.mxu0 0.0
        %3886 = vmatpush2.msra.mxu0 0.0
        %3887 = vmatprep.subr.mxu0 0.0
        %3888 = vmatpush2.msra.mxu0 0.0
        %3889 = vmatprep.subr.mxu0 0.0
        %3890 = vmatpush2.msra.mxu0 0.0
        %3891 = vmatprep.subr.mxu0 0.0
        %3892 = vmatpush2.msra.mxu0 0.0
        %3893 = vmatprep.subr.mxu0 0.0
        %3894 = vmatpush2.msra.mxu0 0.0
        %3895 = vmatprep.subr.mxu0 0.0
        %3896 = vmatpush2.msra.mxu0 0.0
        %3897 = vmatprep.subr.mxu0 0.0
        %3898 = vmatpush2.msra.mxu0 0.0
        %3899 = vmatprep.mubr.f32.mxu0 0.0
        %3900 = vmatmul.mubr.f32.gmra.mxu0 %v3762
        %v3901 = vpop.f32.mrf.mxu0
        %v3902 = vadd.f32 %v3752, %v3901
        %v3903 = vpop.f32.mrf.mxu0
        %v3904 = vadd.f32 %v3756, %v3903
        %3905 = vdwg.mxu0
        %3906 = vst [vmem:[%s947] sm:$0xff] %v3831
        %3907 = vst [vmem:[%s947 + $0x8] sm:$0xff] %v3833
        %3908 = vst [vmem:[%s954] sm:$0xff] %v3902
        %3909 = vst [vmem:[%s954 + $0x8] sm:$0xff] %v3904
        %s3910 = sand.u32 %s711, 1
        %s3911 = scalar_lea.sflag [#allocation3], %s3910
        %s3912 = sand.u32 %s711, 1
        %s3913 = smul.addr %s3912, 16
        %s3914 = scalar_lea.vmem [#allocation2], %s3913
        %s3915 = sand.u32 %s737, 1
        %s3916 = scalar_lea.sflag [#allocation5], %s3915
        %s3917 = sand.u32 %s737, 1
        %s3918 = smul.addr %s3917, 16
        %s3919 = scalar_lea.vmem [#allocation4], %s3918
        // Predicated region
        $region137: #{tpu_custom_call.1} parent=135 // pred_check
          %p3920 = pneg %p721
        $region138: #{tpu_custom_call.1} parent=135 // pred_check_branch
          %3922 = sbr.rel (%p3920) target = $region140
        $region139: #{tpu_custom_call.1} parent=135 // pred_region
          %s3924 = ssub.s32 256, 256
          %3925 = vsyncadd %s3911, %s3924
          %s3926 = smul.addr %s79, 2
          %s3927 = smul.addr %s3926, 128
          %s3928 = scalar_lea.hbm %s59, %s3927
          %s3930 = sshll.u32 %s3914, 4
          %s3931 = int_to_ptr.vmem [resolvable:$true] %s3930
          %3933 = dma.vmem_to_hbm [thread:$0]  %s3931, 256, %s3928, %s3911
        $region140: #{tpu_custom_call.1} parent=135 // pred_fallthru
          _
        // Predicated region
        $region141: #{tpu_custom_call.1} parent=135 // pred_check
          %p3934 = pneg %p747
        $region142: #{tpu_custom_call.1} parent=135 // pred_check_branch
          %3936 = sbr.rel (%p3934) target = $region144
        $region143: #{tpu_custom_call.1} parent=135 // pred_region
          %s3938 = ssub.s32 256, 256
          %3939 = vsyncadd %s3916, %s3938
          %s3940 = smul.addr %s79, 2
          %s3941 = smul.addr %s3940, 128
          %s3942 = scalar_lea.hbm %s61, %s3941
          %s3944 = sshll.u32 %s3919, 4
          %s3945 = int_to_ptr.vmem [resolvable:$true] %s3944
          %3947 = dma.vmem_to_hbm [thread:$0]  %s3945, 256, %s3942, %s3916
        $region144: #{tpu_custom_call.1} parent=135 // pred_fallthru
          _
      $region136: #{tpu_custom_call.1} parent=5 // pred_fallthru
        _
      %p3948 = scmp.le.s32.totalorder 2, %s74
      // Predicated region
      $region145: #{tpu_custom_call.1} parent=5 // pred_check
        %p3949 = pneg %p3948
      $region146: #{tpu_custom_call.1} parent=5 // pred_check_branch
        %3951 = sbr.rel (%p3949) target = $region148
      $region147: #{tpu_custom_call.1} parent=5 // pred_region
        %s3952 = ssub.s32 %s74, 2
        // Predicated region
        $region149: #{tpu_custom_call.1} parent=147 // pred_check
          %p3953 = pneg %p727
        $region150: #{tpu_custom_call.1} parent=147 // pred_check_branch
          %3955 = sbr.rel (%p3953) target = $region152
        $region151: #{tpu_custom_call.1} parent=147 // pred_region
          %s3956 = sand.u32 %s712, 1
          %s3957 = scalar_lea.sflag [#allocation3], %s3956
          %s3958 = sand.u32 %s712, 1
          %s3959 = smul.addr %s3958, 16
          %s3960 = scalar_lea.vmem [#allocation2], %s3959
          %3961 = dma.done %s3957, 256
        $region152: #{tpu_custom_call.1} parent=147 // pred_fallthru
          _
        // Predicated region
        $region153: #{tpu_custom_call.1} parent=147 // pred_check
          %p3962 = pneg %p753
        $region154: #{tpu_custom_call.1} parent=147 // pred_check_branch
          %3964 = sbr.rel (%p3962) target = $region156
        $region155: #{tpu_custom_call.1} parent=147 // pred_region
          %s3965 = sand.u32 %s738, 1
          %s3966 = scalar_lea.sflag [#allocation5], %s3965
          %s3967 = sand.u32 %s738, 1
          %s3968 = smul.addr %s3967, 16
          %s3969 = scalar_lea.vmem [#allocation4], %s3968
          %3970 = dma.done %s3966, 256
        $region156: #{tpu_custom_call.1} parent=147 // pred_fallthru
          _
      $region148: #{tpu_custom_call.1} parent=5 // pred_fallthru
        _
    $region6: #{tpu_custom_call.1} parent=1 // loop_footer
      %s78 = sadd.s32 1, %s74
    $region7: #{tpu_custom_call.1} parent=1 // loop_footer_branch
      %73 = sbr.rel target = $region3
    $region8: #{tpu_custom_call.1} parent=1 // loop_exit
      _
    %3971 = vsyncpa [#allocation3], 1
    %s3972 = scalar_lea.sflag [#allocation3], 1
    %3973 = vsyncpa %s3972, 1
    %3974 = vsyncpa [#allocation5], 1
    %s3975 = scalar_lea.sflag [#allocation5], 1
    %3976 = vsyncpa %s3975, 1

</llo_original>
